<compile_context>
chip_gen: v5e
topology: v5e:2x2
jax: 0.10.0
libtpu: 0.0.40
codegen_flags: <defaults>
</compile_context>

<pallas_src>
import numpy as np

import jax
import jax.numpy as jnp
from jax.experimental import pallas as pl
from jax.experimental.pallas import tpu as pltpu

_PI = float(np.pi)
_PAD_L = 8   # left halo width in the padded scratch (keeps interior sublane-aligned)


# ---------------------------------------------------------------------------
# In-kernel math helpers
# ---------------------------------------------------------------------------

def _atan_poly(z):
    # odd minimax polynomial for atan on [0, 1] (abs err ~1e-5)
    z2 = z * z
    p = jnp.float32(0.0208351)
    p = p * z2 - jnp.float32(0.0851330)
    p = p * z2 + jnp.float32(0.1801410)
    p = p * z2 - jnp.float32(0.3302995)
    p = p * z2 + jnp.float32(0.9998660)
    return z * p


def _atan2_approx(y, x):
    # torch.atan2 semantics via the min/max trick (den >= num >= 0).
    ax = jnp.abs(x)
    ay = jnp.abs(y)
    num = jnp.minimum(ax, ay)
    den = jnp.maximum(jnp.maximum(ax, ay), jnp.float32(1e-30))
    z = num * pl.reciprocal(den, approx=True)          # EUP vrcp
    r = _atan_poly(z)
    r = jnp.where(ay > ax, jnp.float32(_PI / 2.0) - r, r)
    r = jnp.where(x < 0.0, jnp.float32(_PI) - r, r)
    r = jnp.where(y < 0.0, -r, r)
    return r


# ---------------------------------------------------------------------------
# Fused forward kernel: shared conv + all head convs + box decode
# ---------------------------------------------------------------------------

def _make_fused_kernel(H, W, Cin, Cmid, ncls_tot, code, n_heads, head_wp,
                       svx, svz):
    HW = H * W
    WPAD = _PAD_L + W + 8
    vel = code - 8 if code > 8 else 0

    def conv3x3(buf, w_ref, C):
        # buf: (H+2, WPAD, C) value; interior at rows [1, H+1),
        # cols [_PAD_L, _PAD_L+W); the read halo strips are zero.
        # Per-kw tap + per-tap lane concat over kh (3*C) + 3 accumulated
        # bf16 MXU matmuls (f32 accumulation).
        acc = None
        for kw in range(3):
            c0 = _PAD_L - 1 + kw
            tap = buf[:, c0:c0 + W, :]                               # (H+2, W, C)
            lhs = jnp.concatenate([tap[kh:kh + H] for kh in range(3)],
                                  axis=-1)                           # (H, W, 3C)
            part = jnp.dot(lhs.reshape(HW, 3 * C).astype(jnp.bfloat16),
                           w_ref[kw],
                           preferred_element_type=jnp.float32)       # (HW, Cout)
            acc = part if acc is None else acc + part
        return acc

    def kernel(x_ref, ws_ref, shift_ref, wh_ref, bh_ref, grid_ref,
               cls_ref, dec_ref, padx, padf):
        # 1) zero only the halo strips the conv taps read (not the full
        #    buffer); done every step so a "parallel" (multi-core) grid
        #    sharding stays correct.
        zx_row = jnp.zeros((1, WPAD, Cin), jnp.float32)
        zx_col = jnp.zeros((H + 2, 1, Cin), jnp.float32)
        padx[0:1, :, :] = zx_row
        padx[H + 1:H + 2, :, :] = zx_row
        padx[:, _PAD_L - 1:_PAD_L, :] = zx_col
        padx[:, _PAD_L + W:_PAD_L + W + 1, :] = zx_col
        zf_row = jnp.zeros((1, WPAD, Cmid), jnp.float32)
        zf_col = jnp.zeros((H + 2, 1, Cmid), jnp.float32)
        padf[0:1, :, :] = zf_row
        padf[H + 1:H + 2, :, :] = zf_row
        padf[:, _PAD_L - 1:_PAD_L, :] = zf_col
        padf[:, _PAD_L + W:_PAD_L + W + 1, :] = zf_col

        # 2) interior write is sublane-aligned (column offset _PAD_L = 8).
        padx[1:1 + H, _PAD_L:_PAD_L + W, :] = x_ref[0]

        # 3) shared 3x3 conv (BN scale folded into ws) + shift + ReLU.
        feat = conv3x3(padx[...], ws_ref, Cin)
        feat = jnp.maximum(feat + shift_ref[...], 0.0)               # (HW, Cmid)
        padf[1:1 + H, _PAD_L:_PAD_L + W, :] = feat.reshape(H, W, Cmid)

        # 4) every head's conv_cls + conv_box as one matmul against the
        #    Cout-concatenated (and 128-padded) weight.
        head = conv3x3(padf[...], wh_ref, Cmid) + bh_ref[...]        # (HW, head_wp)

        # 5) one fully tile-aligned transpose so all downstream compute and
        #    stores are lane-dense (fields on sublanes, HW=256 on lanes).
        head_t = jnp.transpose(head)                                 # (head_wp, HW)

        # 6) raw cls logits, field-major (ncls_tot, HW).
        cls_ref[0] = head_t[0:ncls_tot, :]

        # 7) generate_predicted_boxes decode; every store is (rows, HW) with
        #    full 128-lane tiles on the lane axis.
        xs = grid_ref[0:1, :]
        ys = grid_ref[1:2, :]
        for h in range(n_heads):
            off = ncls_tot + h * code
            b = head_t[off:off + code, :]                            # (code, HW)
            r0 = h * HW
            dec_ref[0, 0:1, r0:r0 + HW] = b[0:1, :] * svx + xs
            dec_ref[0, 1:2, r0:r0 + HW] = b[1:2, :]
            dec_ref[0, 2:3, r0:r0 + HW] = b[2:3, :] * svz + ys
            dec_ref[0, 3:6, r0:r0 + HW] = jnp.exp(b[3:6, :])
            dec_ref[0, 6:7, r0:r0 + HW] = _atan2_approx(b[6:7, :], b[7:8, :])
            if vel > 0:
                dec_ref[0, 7:7 + vel, r0:r0 + HW] = b[8:8 + vel, :]

    return kernel


def _fused_forward(x_nhwc, prep):
    B, H, W, Cin = x_nhwc.shape
    Cmid = prep['shift'].shape[-1]
    ncls_tot = prep['ncls_tot']
    code = prep['code']
    n_heads = prep['n_heads']
    head_wp = prep['wh'].shape[-1]
    HW = H * W
    N = n_heads * HW
    vel = code - 8 if code > 8 else 0
    out_code = 7 + vel
    WPAD = _PAD_L + W + 8

    assert W % 8 == 0 and HW % 128 == 0, "feature map must be TPU-tile friendly"

    kernel = _make_fused_kernel(H, W, Cin, Cmid, ncls_tot, code, n_heads,
                                head_wp, prep['svx'], prep['svz'])

    cls_t, dec_t = pl.pallas_call(
        kernel,
        out_shape=(jax.ShapeDtypeStruct((B, ncls_tot, HW), jnp.float32),
                   jax.ShapeDtypeStruct((B, out_code, N), jnp.float32)),
        grid=(B,),
        in_specs=[
            pl.BlockSpec((1, H, W, Cin), lambda b: (b, 0, 0, 0)),
            pl.BlockSpec((3, 3 * Cin, Cmid), lambda b: (0, 0, 0)),
            pl.BlockSpec((1, Cmid), lambda b: (0, 0)),
            pl.BlockSpec((3, 3 * Cmid, head_wp), lambda b: (0, 0, 0)),
            pl.BlockSpec((1, head_wp), lambda b: (0, 0)),
            pl.BlockSpec((2, HW), lambda b: (0, 0)),
        ],
        out_specs=(pl.BlockSpec((1, ncls_tot, HW), lambda b: (b, 0, 0)),
                   pl.BlockSpec((1, out_code, N), lambda b: (b, 0, 0))),
        scratch_shapes=[
            pltpu.VMEM((H + 2, WPAD, Cin), jnp.float32),    # padded input
            pltpu.VMEM((H + 2, WPAD, Cmid), jnp.float32),   # padded shared feat
        ],
        compiler_params=pltpu.CompilerParams(
            dimension_semantics=("parallel",)),
    )(x_nhwc, prep['ws'], prep['shift'], prep['wh'], prep['bh'],
      prep['grid_xy'])
    return cls_t, dec_t


# ---------------------------------------------------------------------------
# Parameters (deterministic synthetic init — mirrors the module's __init__)
# ---------------------------------------------------------------------------

def init_params(key, input_channels, shared_channels, last_ks,
                head_num_classes, code_size):
    Ks = 3  # ConvBlock(kernel_size=3) of the shared conv
    k_shared, key = jax.random.split(key)
    params = {
        # kaiming-normal (fan_out, relu), bias=False; HWIO layout
        'shared_w': jax.random.normal(
            k_shared, (Ks, Ks, input_channels, shared_channels), jnp.float32)
            * np.sqrt(2.0 / (Ks * Ks * shared_channels)),
        # BatchNorm2d(eps=1e-3) inference stats (default init here)
        'bn_gamma': jnp.ones((shared_channels,), jnp.float32),
        'bn_beta': jnp.zeros((shared_channels,), jnp.float32),
        'bn_mean': jnp.zeros((shared_channels,), jnp.float32),
        'bn_var': jnp.ones((shared_channels,), jnp.float32),
        'bn_eps': 1e-3,
        'heads': [],
    }
    for ncls in head_num_classes:
        key, kc, kb = jax.random.split(key, 3)
        wc = jax.random.normal(kc, (last_ks, last_ks, shared_channels, ncls),
                               jnp.float32) * np.sqrt(
                                   2.0 / (last_ks * last_ks * max(ncls, 1)))
        bc = jnp.full((ncls,), -2.19, jnp.float32)  # CenterSingleHead offset
        wb = jax.random.normal(kb, (last_ks, last_ks, shared_channels, code_size),
                               jnp.float32) * np.sqrt(
                                   2.0 / (last_ks * last_ks * code_size))
        bb = jnp.zeros((code_size,), jnp.float32)   # conv_box bias init 0
        params['heads'].append(dict(wc=wc, bc=bc, wb=wb, bb=bb))
    return params


def prepare_inference_params(params, cfg):
    """One-time weight folding / packing so the forward is a single kernel."""
    Ks = 3
    Kh = cfg['last_kernel_size']
    assert Kh == 3, "kernel is specialized for 3x3 head convs"
    w = params['shared_w']                       # (3, 3, Cin, Cmid) HWIO
    Cin, Cmid = w.shape[2], w.shape[3]

    # Full BN fold: scale = gamma/sqrt(var+eps) into the weight,
    # shift = beta - mean*scale added in the kernel epilogue.
    scale = params['bn_gamma'] * jax.lax.rsqrt(params['bn_var'] + params['bn_eps'])
    shift = (params['bn_beta'] - params['bn_mean'] * scale).reshape(1, Cmid)
    wf = w * scale[None, None, None, :]
    # per-kw stacking, kh-major rows, bf16 for the MXU
    ws = jnp.transpose(wf, (1, 0, 2, 3)).reshape(Ks, Ks * Cin, Cmid)
    ws = ws.astype(jnp.bfloat16)

    heads = params['heads']
    ncls_list = [int(hp['wc'].shape[-1]) for hp in heads]
    code = int(heads[0]['wb'].shape[-1])
    n_heads = len(heads)
    head_w = sum(ncls_list) + n_heads * code
    head_wp = ((head_w + 127) // 128) * 128   # pad Cout to 128 (aligned transpose)

    wh_full = jnp.concatenate([hp['wc'] for hp in heads]
                              + [hp['wb'] for hp in heads], axis=-1)
    wh_full = jnp.pad(wh_full, ((0, 0), (0, 0), (0, 0), (0, head_wp - head_w)))
    wh = jnp.transpose(wh_full, (1, 0, 2, 3)).reshape(Kh, Kh * Cmid, head_wp)
    wh = wh.astype(jnp.bfloat16)
    bh_full = jnp.concatenate([hp['bc'] for hp in heads]
                              + [hp['bb'] for hp in heads], axis=0)
    bh = jnp.pad(bh_full, (0, head_wp - head_w)).reshape(1, head_wp)
    bh = bh.astype(jnp.float32)

    # Decode grid, stored lane-dense as (2, HW): row 0 = xs, row 1 = ys.
    sh, sw = cfg['proposal_stride'][0], cfg['proposal_stride'][2]
    vx, vz = cfg['voxel_size'][0], cfg['voxel_size'][2]
    scope = cfg['pc_area_scope']
    svx, svz = sh * vx, sw * vz
    Hd = int(round((scope[0][1] - scope[0][0]) / vx / sh))
    Wd = int(round((scope[2][1] - scope[2][0]) / vz / sw))
    xs, ys = np.meshgrid(np.arange(Hd, dtype=np.float32),
                         np.arange(Wd, dtype=np.float32), indexing='ij')
    xs = xs.reshape(-1) * svx + scope[0][0]
    ys = ys.reshape(-1) * svz + scope[2][0]
    grid_xy = jnp.asarray(np.stack([xs, ys], axis=0), jnp.float32)   # (2, Hd*Wd)

    return dict(ws=ws, shift=shift, wh=wh, bh=bh, grid_xy=grid_xy,
                ncls_list=ncls_list, ncls_tot=sum(ncls_list),
                code=code, n_heads=n_heads, svx=float(svx), svz=float(svz))


# ---------------------------------------------------------------------------
# CenterHeadMulti.forward (inference path: training=False, gt_boxes=None)
# ---------------------------------------------------------------------------

def center_head_multi_forward(prep, cfg, x_nchw):
    B, _, H, W = x_nchw.shape
    # The decode grid (from pc_area_scope/voxel/stride) must match the
    # feature map, exactly as the torch module implicitly requires.
    assert prep['grid_xy'].shape[-1] == H * W

    x = jnp.transpose(x_nchw, (0, 2, 3, 1)).astype(jnp.float32)  # NCHW -> NHWC
    cls_t, dec_t = _fused_forward(x, prep)

    # Kernel outputs are field-major / lane-dense; restore torch layouts here.
    cls_all = jnp.transpose(cls_t, (0, 2, 1))                    # (B, HW, ncls_tot)
    batch_box_preds = jnp.transpose(dec_t, (0, 2, 1))            # (B, n_heads*HW, 9)

    cls_preds = []
    off = 0
    for ncls in prep['ncls_list']:
        cls_preds.append(cls_all[:, :, off:off + ncls].reshape(B, H, W, ncls))
        off += ncls

    ret = dict(batch_cls_preds=cls_preds,             # list, like torch
               batch_box_preds=batch_box_preds,       # (B, n_heads*H*W, 9)
               batch_iou_preds=None,                  # use_iou_head=False
               multihead_label_mapping=cfg['head_label_indices'])
    targets = {}
    return ret, targets


# ---------------------------------------------------------------------------
# Example run
# ---------------------------------------------------------------------------

if __name__ == "__main__":
    key = jax.random.PRNGKey(0)
    B, Cin, H, W = 2, 32, 16, 16

    rpn_head_configs = [{'head_cls_name': ['car']},
                        {'head_cls_name': ['pedestrian', 'cyclist']}]
    all_names = []
    for c in rpn_head_configs:
        all_names += c['head_cls_name']
    head_label_indices = [
        jnp.array([all_names.index(n) + 1 for n in c['head_cls_name']],
                  dtype=jnp.int32) for c in rpn_head_configs]
    head_num_classes = [len(c['head_cls_name']) for c in rpn_head_configs]
    code_size = 9 + 1   # encode_angle_by_sincos=True

    cfg = dict(
        last_kernel_size=3,
        proposal_stride=(8, 8, 8),
        voxel_size=(0.1, 0.2, 0.1),
        # chosen so the decode grid (Hd, Wd) matches the 16x16 feature map
        pc_area_scope=[[-6.4, 6.4], [-3.0, 1.0], [-6.4, 6.4]],
        head_label_indices=head_label_indices,
    )

    kp, kx = jax.random.split(key)
    params = init_params(kp, Cin, shared_channels=32,
                         last_ks=cfg['last_kernel_size'],
                         head_num_classes=head_num_classes,
                         code_size=code_size)
    prep = prepare_inference_params(params, cfg)
    x = jax.random.normal(kx, (B, Cin, H, W), jnp.float32)  # NCHW, like torch

    ret, targets = center_head_multi_forward(prep, cfg, x)
    jax.block_until_ready(ret['batch_box_preds'])
    for cp in ret['batch_cls_preds']:
        jax.block_until_ready(cp)

    assert ret['batch_box_preds'].shape == (B, len(rpn_head_configs) * H * W, 9)
    assert ret['batch_cls_preds'][0].shape == (B, H, W, 1)
    assert ret['batch_cls_preds'][1].shape == (B, H, W, 2)
    assert len(ret['multihead_label_mapping']) == 2
    assert bool(jnp.all(jnp.isfinite(ret['batch_box_preds'])))
    for cp in ret['batch_cls_preds']:
        assert bool(jnp.all(jnp.isfinite(cp)))

    print("KERNEL_OK")
</pallas_src>

<mosaic_0001>
module attributes {stable_mosaic.version = 11 : i64} {
  func.func @kernel(%arg0: i32, %arg1: memref<1x16x16x32xf32, #tpu.memory_space<vmem>>, %arg2: memref<3x96x32xbf16, #tpu.memory_space<vmem>>, %arg3: memref<1x32xf32, #tpu.memory_space<vmem>>, %arg4: memref<3x96x128xbf16, #tpu.memory_space<vmem>>, %arg5: memref<1x128xf32, #tpu.memory_space<vmem>>, %arg6: memref<2x256xf32, #tpu.memory_space<vmem>>, %arg7: memref<1x3x256xf32, #tpu.memory_space<vmem>>, %arg8: memref<1x9x512xf32, #tpu.memory_space<vmem>>, %arg9: memref<18x32x32xf32, #tpu.memory_space<vmem>>, %arg10: memref<18x32x32xf32, #tpu.memory_space<vmem>>) attributes {dimension_semantics = [#tpu.dimension_semantics<parallel>], iteration_bounds = array<i64: 2>, scalar_prefetch = 0 : i64, scratch_operands = 2 : i64, tpu.core_type = #tpu.core_type<tc>, window_params = [{transform_indices = @transform_0, window_bounds = array<i64: 1, 16, 16, 32>}, {pipeline_mode = #tpu.pipeline_mode<synchronous>, transform_indices = @transform_1, window_bounds = array<i64: 3, 96, 32>}, {pipeline_mode = #tpu.pipeline_mode<synchronous>, transform_indices = @transform_2, window_bounds = array<i64: 1, 32>}, {pipeline_mode = #tpu.pipeline_mode<synchronous>, transform_indices = @transform_3, window_bounds = array<i64: 3, 96, 128>}, {pipeline_mode = #tpu.pipeline_mode<synchronous>, transform_indices = @transform_4, window_bounds = array<i64: 1, 128>}, {pipeline_mode = #tpu.pipeline_mode<synchronous>, transform_indices = @transform_5, window_bounds = array<i64: 2, 256>}, {transform_indices = @transform_6, window_bounds = array<i64: 1, 3, 256>}, {transform_indices = @transform_7, window_bounds = array<i64: 1, 9, 512>}]} {
    %cst = arith.constant 0.000000e+00 : f32
    %0 = vector.broadcast %cst : f32 to vector<1x32x32xf32>
    %cst_0 = arith.constant 0.000000e+00 : f32
    %1 = vector.broadcast %cst_0 : f32 to vector<18x1x32xf32>
    %c0 = arith.constant 0 : index
    %c0_1 = arith.constant 0 : index
    %c0_2 = arith.constant 0 : index
    %2 = vector.load %arg9[%c0, %c0_1, %c0_2] : memref<18x32x32xf32, #tpu.memory_space<vmem>>, vector<1x32x32xf32>
    tpu.vector_store %arg9[%c0, %c0_1, %c0_2], %0 {strides = array<i32>} : memref<18x32x32xf32, #tpu.memory_space<vmem>>, vector<1x32x32xf32>,
    %c17 = arith.constant 17 : index
    %c0_3 = arith.constant 0 : index
    %c0_4 = arith.constant 0 : index
    %3 = vector.load %arg9[%c17, %c0_3, %c0_4] : memref<18x32x32xf32, #tpu.memory_space<vmem>>, vector<1x32x32xf32>
    tpu.vector_store %arg9[%c17, %c0_3, %c0_4], %0 {strides = array<i32>} : memref<18x32x32xf32, #tpu.memory_space<vmem>>, vector<1x32x32xf32>,
    %c0_5 = arith.constant 0 : index
    %c7 = arith.constant 7 : index
    %c0_6 = arith.constant 0 : index
    %4 = vector.load %arg9[%c0_5, %c7, %c0_6] : memref<18x32x32xf32, #tpu.memory_space<vmem>>, vector<18x1x32xf32>
    tpu.vector_store %arg9[%c0_5, %c7, %c0_6], %1 {strides = array<i32>} : memref<18x32x32xf32, #tpu.memory_space<vmem>>, vector<18x1x32xf32>,
    %c0_7 = arith.constant 0 : index
    %c24 = arith.constant 24 : index
    %c0_8 = arith.constant 0 : index
    %5 = vector.load %arg9[%c0_7, %c24, %c0_8] : memref<18x32x32xf32, #tpu.memory_space<vmem>>, vector<18x1x32xf32>
    tpu.vector_store %arg9[%c0_7, %c24, %c0_8], %1 {strides = array<i32>} : memref<18x32x32xf32, #tpu.memory_space<vmem>>, vector<18x1x32xf32>,
    %cst_9 = arith.constant 0.000000e+00 : f32
    %6 = vector.broadcast %cst_9 : f32 to vector<1x32x32xf32>
    %cst_10 = arith.constant 0.000000e+00 : f32
    %7 = vector.broadcast %cst_10 : f32 to vector<18x1x32xf32>
    %c0_11 = arith.constant 0 : index
    %c0_12 = arith.constant 0 : index
    %c0_13 = arith.constant 0 : index
    %8 = vector.load %arg10[%c0_11, %c0_12, %c0_13] : memref<18x32x32xf32, #tpu.memory_space<vmem>>, vector<1x32x32xf32>
    tpu.vector_store %arg10[%c0_11, %c0_12, %c0_13], %6 {strides = array<i32>} : memref<18x32x32xf32, #tpu.memory_space<vmem>>, vector<1x32x32xf32>,
    %c17_14 = arith.constant 17 : index
    %c0_15 = arith.constant 0 : index
    %c0_16 = arith.constant 0 : index
    %9 = vector.load %arg10[%c17_14, %c0_15, %c0_16] : memref<18x32x32xf32, #tpu.memory_space<vmem>>, vector<1x32x32xf32>
    tpu.vector_store %arg10[%c17_14, %c0_15, %c0_16], %6 {strides = array<i32>} : memref<18x32x32xf32, #tpu.memory_space<vmem>>, vector<1x32x32xf32>,
    %c0_17 = arith.constant 0 : index
    %c7_18 = arith.constant 7 : index
    %c0_19 = arith.constant 0 : index
    %10 = vector.load %arg10[%c0_17, %c7_18, %c0_19] : memref<18x32x32xf32, #tpu.memory_space<vmem>>, vector<18x1x32xf32>
    tpu.vector_store %arg10[%c0_17, %c7_18, %c0_19], %7 {strides = array<i32>} : memref<18x32x32xf32, #tpu.memory_space<vmem>>, vector<18x1x32xf32>,
    %c0_20 = arith.constant 0 : index
    %c24_21 = arith.constant 24 : index
    %c0_22 = arith.constant 0 : index
    %11 = vector.load %arg10[%c0_20, %c24_21, %c0_22] : memref<18x32x32xf32, #tpu.memory_space<vmem>>, vector<18x1x32xf32>
    tpu.vector_store %arg10[%c0_20, %c24_21, %c0_22], %7 {strides = array<i32>} : memref<18x32x32xf32, #tpu.memory_space<vmem>>, vector<18x1x32xf32>,
    %c0_23 = arith.constant 0 : index
    %c0_24 = arith.constant 0 : index
    %c0_25 = arith.constant 0 : index
    %c0_26 = arith.constant 0 : index
    %12 = vector.load %arg1[%c0_23, %c0_24, %c0_25, %c0_26] : memref<1x16x16x32xf32, #tpu.memory_space<vmem>>, vector<1x16x16x32xf32>
    %13 = vector.shape_cast %12 : vector<1x16x16x32xf32> to vector<16x16x32xf32>
    %c1 = arith.constant 1 : index
    %c8 = arith.constant 8 : index
    %c0_27 = arith.constant 0 : index
    %14 = vector.load %arg9[%c1, %c8, %c0_27] : memref<18x32x32xf32, #tpu.memory_space<vmem>>, vector<16x16x32xf32>
    tpu.vector_store %arg9[%c1, %c8, %c0_27], %13 {strides = array<i32>} : memref<18x32x32xf32, #tpu.memory_space<vmem>>, vector<16x16x32xf32>,
    %c0_28 = arith.constant 0 : index
    %c0_29 = arith.constant 0 : index
    %c0_30 = arith.constant 0 : index
    %15 = vector.load %arg9[%c0_28, %c0_29, %c0_30] : memref<18x32x32xf32, #tpu.memory_space<vmem>>, vector<18x32x32xf32>
    %16 = vector.extract_strided_slice %15 {offsets = [0, 7, 0], sizes = [18, 16, 32], strides = [1, 1, 1]} : vector<18x32x32xf32> to vector<18x16x32xf32>
    %17 = vector.extract_strided_slice %16 {offsets = [0, 0, 0], sizes = [16, 16, 32], strides = [1, 1, 1]} : vector<18x16x32xf32> to vector<16x16x32xf32>
    %18 = vector.extract_strided_slice %16 {offsets = [1, 0, 0], sizes = [16, 16, 32], strides = [1, 1, 1]} : vector<18x16x32xf32> to vector<16x16x32xf32>
    %19 = vector.extract_strided_slice %16 {offsets = [2, 0, 0], sizes = [16, 16, 32], strides = [1, 1, 1]} : vector<18x16x32xf32> to vector<16x16x32xf32>
    %20 = tpu.concatenate %17, %18, %19 in 2 : vector<16x16x32xf32>, vector<16x16x32xf32>, vector<16x16x32xf32> -> vector<16x16x96xf32>
    %21 = vector.shape_cast %20 : vector<16x16x96xf32> to vector<256x96xf32>
    %22 = arith.truncf %21 : vector<256x96xf32> to vector<256x96xbf16>
    %c0_31 = arith.constant 0 : index
    %c0_32 = arith.constant 0 : index
    %c0_33 = arith.constant 0 : index
    %23 = vector.load %arg2[%c0_31, %c0_32, %c0_33] : memref<3x96x32xbf16, #tpu.memory_space<vmem>>, vector<1x96x32xbf16>
    %24 = vector.shape_cast %23 : vector<1x96x32xbf16> to vector<96x32xbf16>
    %cst_34 = arith.constant dense<0.000000e+00> : vector<256x32xf32>
    %25 = tpu.matmul %22, %24, %cst_34 {dimension_numbers = #tpu.dot_dimension_numbers<[1], [0], [0], [1], [0, 0, 1, 1], [], []>} : vector<256x96xbf16>, vector<96x32xbf16>, vector<256x32xf32> -> vector<256x32xf32>
    %26 = vector.extract_strided_slice %15 {offsets = [0, 8, 0], sizes = [18, 16, 32], strides = [1, 1, 1]} : vector<18x32x32xf32> to vector<18x16x32xf32>
    %27 = vector.extract_strided_slice %26 {offsets = [0, 0, 0], sizes = [16, 16, 32], strides = [1, 1, 1]} : vector<18x16x32xf32> to vector<16x16x32xf32>
    %28 = vector.extract_strided_slice %26 {offsets = [1, 0, 0], sizes = [16, 16, 32], strides = [1, 1, 1]} : vector<18x16x32xf32> to vector<16x16x32xf32>
    %29 = vector.extract_strided_slice %26 {offsets = [2, 0, 0], sizes = [16, 16, 32], strides = [1, 1, 1]} : vector<18x16x32xf32> to vector<16x16x32xf32>
    %30 = tpu.concatenate %27, %28, %29 in 2 : vector<16x16x32xf32>, vector<16x16x32xf32>, vector<16x16x32xf32> -> vector<16x16x96xf32>
    %31 = vector.shape_cast %30 : vector<16x16x96xf32> to vector<256x96xf32>
    %32 = arith.truncf %31 : vector<256x96xf32> to vector<256x96xbf16>
    %c1_35 = arith.constant 1 : index
    %c0_36 = arith.constant 0 : index
    %c0_37 = arith.constant 0 : index
    %33 = vector.load %arg2[%c1_35, %c0_36, %c0_37] : memref<3x96x32xbf16, #tpu.memory_space<vmem>>, vector<1x96x32xbf16>
    %34 = vector.shape_cast %33 : vector<1x96x32xbf16> to vector<96x32xbf16>
    %cst_38 = arith.constant dense<0.000000e+00> : vector<256x32xf32>
    %35 = tpu.matmul %32, %34, %cst_38 {dimension_numbers = #tpu.dot_dimension_numbers<[1], [0], [0], [1], [0, 0, 1, 1], [], []>} : vector<256x96xbf16>, vector<96x32xbf16>, vector<256x32xf32> -> vector<256x32xf32>
    %36 = arith.addf %25, %35 : vector<256x32xf32>
    %37 = vector.extract_strided_slice %15 {offsets = [0, 9, 0], sizes = [18, 16, 32], strides = [1, 1, 1]} : vector<18x32x32xf32> to vector<18x16x32xf32>
    %38 = vector.extract_strided_slice %37 {offsets = [0, 0, 0], sizes = [16, 16, 32], strides = [1, 1, 1]} : vector<18x16x32xf32> to vector<16x16x32xf32>
    %39 = vector.extract_strided_slice %37 {offsets = [1, 0, 0], sizes = [16, 16, 32], strides = [1, 1, 1]} : vector<18x16x32xf32> to vector<16x16x32xf32>
    %40 = vector.extract_strided_slice %37 {offsets = [2, 0, 0], sizes = [16, 16, 32], strides = [1, 1, 1]} : vector<18x16x32xf32> to vector<16x16x32xf32>
    %41 = tpu.concatenate %38, %39, %40 in 2 : vector<16x16x32xf32>, vector<16x16x32xf32>, vector<16x16x32xf32> -> vector<16x16x96xf32>
    %42 = vector.shape_cast %41 : vector<16x16x96xf32> to vector<256x96xf32>
    %43 = arith.truncf %42 : vector<256x96xf32> to vector<256x96xbf16>
    %c2 = arith.constant 2 : index
    %c0_39 = arith.constant 0 : index
    %c0_40 = arith.constant 0 : index
    %44 = vector.load %arg2[%c2, %c0_39, %c0_40] : memref<3x96x32xbf16, #tpu.memory_space<vmem>>, vector<1x96x32xbf16>
    %45 = vector.shape_cast %44 : vector<1x96x32xbf16> to vector<96x32xbf16>
    %cst_41 = arith.constant dense<0.000000e+00> : vector<256x32xf32>
    %46 = tpu.matmul %43, %45, %cst_41 {dimension_numbers = #tpu.dot_dimension_numbers<[1], [0], [0], [1], [0, 0, 1, 1], [], []>} : vector<256x96xbf16>, vector<96x32xbf16>, vector<256x32xf32> -> vector<256x32xf32>
    %47 = arith.addf %36, %46 : vector<256x32xf32>
    %c0_42 = arith.constant 0 : index
    %c0_43 = arith.constant 0 : index
    %48 = vector.load %arg3[%c0_42, %c0_43] : memref<1x32xf32, #tpu.memory_space<vmem>>, vector<1x32xf32>
    %49 = vector.broadcast %48 : vector<1x32xf32> to vector<256x32xf32>
    %50 = arith.addf %47, %49 : vector<256x32xf32>
    %cst_44 = arith.constant 0.000000e+00 : f32
    %51 = vector.broadcast %cst_44 : f32 to vector<256x32xf32>
    %52 = arith.maximumf %50, %51 : vector<256x32xf32>
    %53 = vector.shape_cast %52 : vector<256x32xf32> to vector<16x16x32xf32>
    %c1_45 = arith.constant 1 : index
    %c8_46 = arith.constant 8 : index
    %c0_47 = arith.constant 0 : index
    %54 = vector.load %arg10[%c1_45, %c8_46, %c0_47] : memref<18x32x32xf32, #tpu.memory_space<vmem>>, vector<16x16x32xf32>
    tpu.vector_store %arg10[%c1_45, %c8_46, %c0_47], %53 {strides = array<i32>} : memref<18x32x32xf32, #tpu.memory_space<vmem>>, vector<16x16x32xf32>,
    %c0_48 = arith.constant 0 : index
    %c0_49 = arith.constant 0 : index
    %c0_50 = arith.constant 0 : index
    %55 = vector.load %arg10[%c0_48, %c0_49, %c0_50] : memref<18x32x32xf32, #tpu.memory_space<vmem>>, vector<18x32x32xf32>
    %56 = vector.extract_strided_slice %55 {offsets = [0, 7, 0], sizes = [18, 16, 32], strides = [1, 1, 1]} : vector<18x32x32xf32> to vector<18x16x32xf32>
    %57 = vector.extract_strided_slice %56 {offsets = [0, 0, 0], sizes = [16, 16, 32], strides = [1, 1, 1]} : vector<18x16x32xf32> to vector<16x16x32xf32>
    %58 = vector.extract_strided_slice %56 {offsets = [1, 0, 0], sizes = [16, 16, 32], strides = [1, 1, 1]} : vector<18x16x32xf32> to vector<16x16x32xf32>
    %59 = vector.extract_strided_slice %56 {offsets = [2, 0, 0], sizes = [16, 16, 32], strides = [1, 1, 1]} : vector<18x16x32xf32> to vector<16x16x32xf32>
    %60 = tpu.concatenate %57, %58, %59 in 2 : vector<16x16x32xf32>, vector<16x16x32xf32>, vector<16x16x32xf32> -> vector<16x16x96xf32>
    %61 = vector.shape_cast %60 : vector<16x16x96xf32> to vector<256x96xf32>
    %62 = arith.truncf %61 : vector<256x96xf32> to vector<256x96xbf16>
    %c0_51 = arith.constant 0 : index
    %c0_52 = arith.constant 0 : index
    %c0_53 = arith.constant 0 : index
    %63 = vector.load %arg4[%c0_51, %c0_52, %c0_53] : memref<3x96x128xbf16, #tpu.memory_space<vmem>>, vector<1x96x128xbf16>
    %64 = vector.shape_cast %63 : vector<1x96x128xbf16> to vector<96x128xbf16>
    %cst_54 = arith.constant dense<0.000000e+00> : vector<256x128xf32>
    %65 = tpu.matmul %62, %64, %cst_54 {dimension_numbers = #tpu.dot_dimension_numbers<[1], [0], [0], [1], [0, 0, 1, 1], [], []>} : vector<256x96xbf16>, vector<96x128xbf16>, vector<256x128xf32> -> vector<256x128xf32>
    %66 = vector.extract_strided_slice %55 {offsets = [0, 8, 0], sizes = [18, 16, 32], strides = [1, 1, 1]} : vector<18x32x32xf32> to vector<18x16x32xf32>
    %67 = vector.extract_strided_slice %66 {offsets = [0, 0, 0], sizes = [16, 16, 32], strides = [1, 1, 1]} : vector<18x16x32xf32> to vector<16x16x32xf32>
    %68 = vector.extract_strided_slice %66 {offsets = [1, 0, 0], sizes = [16, 16, 32], strides = [1, 1, 1]} : vector<18x16x32xf32> to vector<16x16x32xf32>
    %69 = vector.extract_strided_slice %66 {offsets = [2, 0, 0], sizes = [16, 16, 32], strides = [1, 1, 1]} : vector<18x16x32xf32> to vector<16x16x32xf32>
    %70 = tpu.concatenate %67, %68, %69 in 2 : vector<16x16x32xf32>, vector<16x16x32xf32>, vector<16x16x32xf32> -> vector<16x16x96xf32>
    %71 = vector.shape_cast %70 : vector<16x16x96xf32> to vector<256x96xf32>
    %72 = arith.truncf %71 : vector<256x96xf32> to vector<256x96xbf16>
    %c1_55 = arith.constant 1 : index
    %c0_56 = arith.constant 0 : index
    %c0_57 = arith.constant 0 : index
    %73 = vector.load %arg4[%c1_55, %c0_56, %c0_57] : memref<3x96x128xbf16, #tpu.memory_space<vmem>>, vector<1x96x128xbf16>
    %74 = vector.shape_cast %73 : vector<1x96x128xbf16> to vector<96x128xbf16>
    %cst_58 = arith.constant dense<0.000000e+00> : vector<256x128xf32>
    %75 = tpu.matmul %72, %74, %cst_58 {dimension_numbers = #tpu.dot_dimension_numbers<[1], [0], [0], [1], [0, 0, 1, 1], [], []>} : vector<256x96xbf16>, vector<96x128xbf16>, vector<256x128xf32> -> vector<256x128xf32>
    %76 = arith.addf %65, %75 : vector<256x128xf32>
    %77 = vector.extract_strided_slice %55 {offsets = [0, 9, 0], sizes = [18, 16, 32], strides = [1, 1, 1]} : vector<18x32x32xf32> to vector<18x16x32xf32>
    %78 = vector.extract_strided_slice %77 {offsets = [0, 0, 0], sizes = [16, 16, 32], strides = [1, 1, 1]} : vector<18x16x32xf32> to vector<16x16x32xf32>
    %79 = vector.extract_strided_slice %77 {offsets = [1, 0, 0], sizes = [16, 16, 32], strides = [1, 1, 1]} : vector<18x16x32xf32> to vector<16x16x32xf32>
    %80 = vector.extract_strided_slice %77 {offsets = [2, 0, 0], sizes = [16, 16, 32], strides = [1, 1, 1]} : vector<18x16x32xf32> to vector<16x16x32xf32>
    %81 = tpu.concatenate %78, %79, %80 in 2 : vector<16x16x32xf32>, vector<16x16x32xf32>, vector<16x16x32xf32> -> vector<16x16x96xf32>
    %82 = vector.shape_cast %81 : vector<16x16x96xf32> to vector<256x96xf32>
    %83 = arith.truncf %82 : vector<256x96xf32> to vector<256x96xbf16>
    %c2_59 = arith.constant 2 : index
    %c0_60 = arith.constant 0 : index
    %c0_61 = arith.constant 0 : index
    %84 = vector.load %arg4[%c2_59, %c0_60, %c0_61] : memref<3x96x128xbf16, #tpu.memory_space<vmem>>, vector<1x96x128xbf16>
    %85 = vector.shape_cast %84 : vector<1x96x128xbf16> to vector<96x128xbf16>
    %cst_62 = arith.constant dense<0.000000e+00> : vector<256x128xf32>
    %86 = tpu.matmul %83, %85, %cst_62 {dimension_numbers = #tpu.dot_dimension_numbers<[1], [0], [0], [1], [0, 0, 1, 1], [], []>} : vector<256x96xbf16>, vector<96x128xbf16>, vector<256x128xf32> -> vector<256x128xf32>
    %87 = arith.addf %76, %86 : vector<256x128xf32>
    %c0_63 = arith.constant 0 : index
    %c0_64 = arith.constant 0 : index
    %88 = vector.load %arg5[%c0_63, %c0_64] : memref<1x128xf32, #tpu.memory_space<vmem>>, vector<1x128xf32>
    %89 = vector.broadcast %88 : vector<1x128xf32> to vector<256x128xf32>
    %90 = arith.addf %87, %89 : vector<256x128xf32>
    %91 = tpu.transpose %90, [1, 0] : vector<256x128xf32> -> vector<128x256xf32>
    %92 = vector.extract_strided_slice %91 {offsets = [0, 0], sizes = [3, 256], strides = [1, 1]} : vector<128x256xf32> to vector<3x256xf32>
    %c0_65 = arith.constant 0 : index
    %c0_66 = arith.constant 0 : index
    %c0_67 = arith.constant 0 : index
    %93 = vector.load %arg7[%c0_65, %c0_66, %c0_67] : memref<1x3x256xf32, #tpu.memory_space<vmem>>, vector<1x3x256xf32>
    %94 = vector.shape_cast %93 : vector<1x3x256xf32> to vector<3x256xf32>
    %95 = vector.shape_cast %92 : vector<3x256xf32> to vector<1x3x256xf32>
    tpu.vector_store %arg7[%c0_65, %c0_66, %c0_67], %95 {strides = array<i32>} : memref<1x3x256xf32, #tpu.memory_space<vmem>>, vector<1x3x256xf32>,
    %c0_68 = arith.constant 0 : index
    %c0_69 = arith.constant 0 : index
    %96 = vector.load %arg6[%c0_68, %c0_69] : memref<2x256xf32, #tpu.memory_space<vmem>>, vector<1x256xf32>
    %c1_70 = arith.constant 1 : index
    %c0_71 = arith.constant 0 : index
    %97 = vector.load %arg6[%c1_70, %c0_71] : memref<2x256xf32, #tpu.memory_space<vmem>>, vector<1x256xf32>
    %98 = vector.extract_strided_slice %91 {offsets = [3, 0], sizes = [10, 256], strides = [1, 1]} : vector<128x256xf32> to vector<10x256xf32>
    %99 = vector.extract_strided_slice %98 {offsets = [0, 0], sizes = [1, 256], strides = [1, 1]} : vector<10x256xf32> to vector<1x256xf32>
    %cst_72 = arith.constant 8.000000e-01 : f32
    %100 = vector.broadcast %cst_72 : f32 to vector<1x256xf32>
    %101 = arith.mulf %99, %100 : vector<1x256xf32>
    %102 = arith.addf %101, %96 : vector<1x256xf32>
    %c0_73 = arith.constant 0 : index
    %c0_74 = arith.constant 0 : index
    %c0_75 = arith.constant 0 : index
    %103 = vector.load %arg8[%c0_73, %c0_74, %c0_75] : memref<1x9x512xf32, #tpu.memory_space<vmem>>, vector<1x1x256xf32>
    %104 = vector.shape_cast %103 : vector<1x1x256xf32> to vector<1x256xf32>
    %105 = vector.shape_cast %102 : vector<1x256xf32> to vector<1x1x256xf32>
    tpu.vector_store %arg8[%c0_73, %c0_74, %c0_75], %105 {strides = array<i32>} : memref<1x9x512xf32, #tpu.memory_space<vmem>>, vector<1x1x256xf32>,
    %106 = vector.extract_strided_slice %98 {offsets = [1, 0], sizes = [1, 256], strides = [1, 1]} : vector<10x256xf32> to vector<1x256xf32>
    %c0_76 = arith.constant 0 : index
    %c1_77 = arith.constant 1 : index
    %c0_78 = arith.constant 0 : index
    %107 = vector.load %arg8[%c0_76, %c1_77, %c0_78] : memref<1x9x512xf32, #tpu.memory_space<vmem>>, vector<1x1x256xf32>
    %108 = vector.shape_cast %107 : vector<1x1x256xf32> to vector<1x256xf32>
    %109 = vector.shape_cast %106 : vector<1x256xf32> to vector<1x1x256xf32>
    tpu.vector_store %arg8[%c0_76, %c1_77, %c0_78], %109 {strides = array<i32>} : memref<1x9x512xf32, #tpu.memory_space<vmem>>, vector<1x1x256xf32>,
    %110 = vector.extract_strided_slice %98 {offsets = [2, 0], sizes = [1, 256], strides = [1, 1]} : vector<10x256xf32> to vector<1x256xf32>
    %cst_79 = arith.constant 8.000000e-01 : f32
    %111 = vector.broadcast %cst_79 : f32 to vector<1x256xf32>
    %112 = arith.mulf %110, %111 : vector<1x256xf32>
    %113 = arith.addf %112, %97 : vector<1x256xf32>
    %c0_80 = arith.constant 0 : index
    %c2_81 = arith.constant 2 : index
    %c0_82 = arith.constant 0 : index
    %114 = vector.load %arg8[%c0_80, %c2_81, %c0_82] : memref<1x9x512xf32, #tpu.memory_space<vmem>>, vector<1x1x256xf32>
    %115 = vector.shape_cast %114 : vector<1x1x256xf32> to vector<1x256xf32>
    %116 = vector.shape_cast %113 : vector<1x256xf32> to vector<1x1x256xf32>
    tpu.vector_store %arg8[%c0_80, %c2_81, %c0_82], %116 {strides = array<i32>} : memref<1x9x512xf32, #tpu.memory_space<vmem>>, vector<1x1x256xf32>,
    %117 = vector.extract_strided_slice %98 {offsets = [3, 0], sizes = [3, 256], strides = [1, 1]} : vector<10x256xf32> to vector<3x256xf32>
    %118 = math.exp %117 : vector<3x256xf32>
    %c0_83 = arith.constant 0 : index
    %c3 = arith.constant 3 : index
    %c0_84 = arith.constant 0 : index
    %119 = vector.load %arg8[%c0_83, %c3, %c0_84] : memref<1x9x512xf32, #tpu.memory_space<vmem>>, vector<1x3x256xf32>
    %120 = vector.shape_cast %119 : vector<1x3x256xf32> to vector<3x256xf32>
    %121 = vector.shape_cast %118 : vector<3x256xf32> to vector<1x3x256xf32>
    tpu.vector_store %arg8[%c0_83, %c3, %c0_84], %121 {strides = array<i32>} : memref<1x9x512xf32, #tpu.memory_space<vmem>>, vector<1x3x256xf32>,
    %122 = vector.extract_strided_slice %98 {offsets = [6, 0], sizes = [1, 256], strides = [1, 1]} : vector<10x256xf32> to vector<1x256xf32>
    %123 = vector.extract_strided_slice %98 {offsets = [7, 0], sizes = [1, 256], strides = [1, 1]} : vector<10x256xf32> to vector<1x256xf32>
    %124 = math.absf %123 : vector<1x256xf32>
    %125 = math.absf %122 : vector<1x256xf32>
    %126 = arith.minimumf %124, %125 : vector<1x256xf32>
    %127 = arith.maximumf %124, %125 : vector<1x256xf32>
    %cst_85 = arith.constant 1.000000e-30 : f32
    %128 = vector.broadcast %cst_85 : f32 to vector<1x256xf32>
    %129 = arith.maximumf %127, %128 : vector<1x256xf32>
    %130 = tpu.reciprocal %129 {approx = true} : vector<1x256xf32> -> vector<1x256xf32>
    %131 = arith.mulf %126, %130 : vector<1x256xf32>
    %132 = arith.mulf %131, %131 : vector<1x256xf32>
    %cst_86 = arith.constant 2.083510e-02 : f32
    %133 = vector.broadcast %cst_86 : f32 to vector<1x256xf32>
    %134 = arith.mulf %133, %132 : vector<1x256xf32>
    %cst_87 = arith.constant 8.513300e-02 : f32
    %135 = vector.broadcast %cst_87 : f32 to vector<1x256xf32>
    %136 = arith.subf %134, %135 : vector<1x256xf32>
    %137 = arith.mulf %136, %132 : vector<1x256xf32>
    %cst_88 = arith.constant 1.801410e-01 : f32
    %138 = vector.broadcast %cst_88 : f32 to vector<1x256xf32>
    %139 = arith.addf %137, %138 : vector<1x256xf32>
    %140 = arith.mulf %139, %132 : vector<1x256xf32>
    %cst_89 = arith.constant 0.330299497 : f32
    %141 = vector.broadcast %cst_89 : f32 to vector<1x256xf32>
    %142 = arith.subf %140, %141 : vector<1x256xf32>
    %143 = arith.mulf %142, %132 : vector<1x256xf32>
    %cst_90 = arith.constant 9.998660e-01 : f32
    %144 = vector.broadcast %cst_90 : f32 to vector<1x256xf32>
    %145 = arith.addf %143, %144 : vector<1x256xf32>
    %146 = arith.mulf %131, %145 : vector<1x256xf32>
    %147 = arith.cmpf ogt, %125, %124 : vector<1x256xf32>
    %cst_91 = arith.constant 1.57079637 : f32
    %148 = vector.broadcast %cst_91 : f32 to vector<1x256xf32>
    %149 = arith.subf %148, %146 : vector<1x256xf32>
    %150 = arith.select %147, %149, %146 : vector<1x256xi1>, vector<1x256xf32>
    %cst_92 = arith.constant 0.000000e+00 : f32
    %151 = vector.broadcast %cst_92 : f32 to vector<1x256xf32>
    %152 = arith.cmpf olt, %123, %151 : vector<1x256xf32>
    %cst_93 = arith.constant 3.14159274 : f32
    %153 = vector.broadcast %cst_93 : f32 to vector<1x256xf32>
    %154 = arith.subf %153, %150 : vector<1x256xf32>
    %155 = arith.select %152, %154, %150 : vector<1x256xi1>, vector<1x256xf32>
    %cst_94 = arith.constant 0.000000e+00 : f32
    %156 = vector.broadcast %cst_94 : f32 to vector<1x256xf32>
    %157 = arith.cmpf olt, %122, %156 : vector<1x256xf32>
    %cst_95 = arith.constant 0.000000e+00 : f32
    %158 = vector.broadcast %cst_95 : f32 to vector<1x256xf32>
    %159 = arith.subf %158, %155 : vector<1x256xf32>
    %160 = arith.select %157, %159, %155 : vector<1x256xi1>, vector<1x256xf32>
    %c0_96 = arith.constant 0 : index
    %c6 = arith.constant 6 : index
    %c0_97 = arith.constant 0 : index
    %161 = vector.load %arg8[%c0_96, %c6, %c0_97] : memref<1x9x512xf32, #tpu.memory_space<vmem>>, vector<1x1x256xf32>
    %162 = vector.shape_cast %161 : vector<1x1x256xf32> to vector<1x256xf32>
    %163 = vector.shape_cast %160 : vector<1x256xf32> to vector<1x1x256xf32>
    tpu.vector_store %arg8[%c0_96, %c6, %c0_97], %163 {strides = array<i32>} : memref<1x9x512xf32, #tpu.memory_space<vmem>>, vector<1x1x256xf32>,
    %164 = vector.extract_strided_slice %98 {offsets = [8, 0], sizes = [2, 256], strides = [1, 1]} : vector<10x256xf32> to vector<2x256xf32>
    %c0_98 = arith.constant 0 : index
    %c7_99 = arith.constant 7 : index
    %c0_100 = arith.constant 0 : index
    %165 = vector.load %arg8[%c0_98, %c7_99, %c0_100] : memref<1x9x512xf32, #tpu.memory_space<vmem>>, vector<1x2x256xf32>
    %166 = vector.shape_cast %165 : vector<1x2x256xf32> to vector<2x256xf32>
    %167 = vector.shape_cast %164 : vector<2x256xf32> to vector<1x2x256xf32>
    tpu.vector_store %arg8[%c0_98, %c7_99, %c0_100], %167 {strides = array<i32>} : memref<1x9x512xf32, #tpu.memory_space<vmem>>, vector<1x2x256xf32>,
    %168 = vector.extract_strided_slice %91 {offsets = [13, 0], sizes = [10, 256], strides = [1, 1]} : vector<128x256xf32> to vector<10x256xf32>
    %169 = vector.extract_strided_slice %168 {offsets = [0, 0], sizes = [1, 256], strides = [1, 1]} : vector<10x256xf32> to vector<1x256xf32>
    %cst_101 = arith.constant 8.000000e-01 : f32
    %170 = vector.broadcast %cst_101 : f32 to vector<1x256xf32>
    %171 = arith.mulf %169, %170 : vector<1x256xf32>
    %172 = arith.addf %171, %96 : vector<1x256xf32>
    %c0_102 = arith.constant 0 : index
    %c0_103 = arith.constant 0 : index
    %c256 = arith.constant 256 : index
    %173 = vector.load %arg8[%c0_102, %c0_103, %c256] : memref<1x9x512xf32, #tpu.memory_space<vmem>>, vector<1x1x256xf32>
    %174 = vector.shape_cast %173 : vector<1x1x256xf32> to vector<1x256xf32>
    %175 = vector.shape_cast %172 : vector<1x256xf32> to vector<1x1x256xf32>
    tpu.vector_store %arg8[%c0_102, %c0_103, %c256], %175 {strides = array<i32>} : memref<1x9x512xf32, #tpu.memory_space<vmem>>, vector<1x1x256xf32>,
    %176 = vector.extract_strided_slice %168 {offsets = [1, 0], sizes = [1, 256], strides = [1, 1]} : vector<10x256xf32> to vector<1x256xf32>
    %c0_104 = arith.constant 0 : index
    %c1_105 = arith.constant 1 : index
    %c256_106 = arith.constant 256 : index
    %177 = vector.load %arg8[%c0_104, %c1_105, %c256_106] : memref<1x9x512xf32, #tpu.memory_space<vmem>>, vector<1x1x256xf32>
    %178 = vector.shape_cast %177 : vector<1x1x256xf32> to vector<1x256xf32>
    %179 = vector.shape_cast %176 : vector<1x256xf32> to vector<1x1x256xf32>
    tpu.vector_store %arg8[%c0_104, %c1_105, %c256_106], %179 {strides = array<i32>} : memref<1x9x512xf32, #tpu.memory_space<vmem>>, vector<1x1x256xf32>,
    %180 = vector.extract_strided_slice %168 {offsets = [2, 0], sizes = [1, 256], strides = [1, 1]} : vector<10x256xf32> to vector<1x256xf32>
    %cst_107 = arith.constant 8.000000e-01 : f32
    %181 = vector.broadcast %cst_107 : f32 to vector<1x256xf32>
    %182 = arith.mulf %180, %181 : vector<1x256xf32>
    %183 = arith.addf %182, %97 : vector<1x256xf32>
    %c0_108 = arith.constant 0 : index
    %c2_109 = arith.constant 2 : index
    %c256_110 = arith.constant 256 : index
    %184 = vector.load %arg8[%c0_108, %c2_109, %c256_110] : memref<1x9x512xf32, #tpu.memory_space<vmem>>, vector<1x1x256xf32>
    %185 = vector.shape_cast %184 : vector<1x1x256xf32> to vector<1x256xf32>
    %186 = vector.shape_cast %183 : vector<1x256xf32> to vector<1x1x256xf32>
    tpu.vector_store %arg8[%c0_108, %c2_109, %c256_110], %186 {strides = array<i32>} : memref<1x9x512xf32, #tpu.memory_space<vmem>>, vector<1x1x256xf32>,
    %187 = vector.extract_strided_slice %168 {offsets = [3, 0], sizes = [3, 256], strides = [1, 1]} : vector<10x256xf32> to vector<3x256xf32>
    %188 = math.exp %187 : vector<3x256xf32>
    %c0_111 = arith.constant 0 : index
    %c3_112 = arith.constant 3 : index
    %c256_113 = arith.constant 256 : index
    %189 = vector.load %arg8[%c0_111, %c3_112, %c256_113] : memref<1x9x512xf32, #tpu.memory_space<vmem>>, vector<1x3x256xf32>
    %190 = vector.shape_cast %189 : vector<1x3x256xf32> to vector<3x256xf32>
    %191 = vector.shape_cast %188 : vector<3x256xf32> to vector<1x3x256xf32>
    tpu.vector_store %arg8[%c0_111, %c3_112, %c256_113], %191 {strides = array<i32>} : memref<1x9x512xf32, #tpu.memory_space<vmem>>, vector<1x3x256xf32>,
    %192 = vector.extract_strided_slice %168 {offsets = [6, 0], sizes = [1, 256], strides = [1, 1]} : vector<10x256xf32> to vector<1x256xf32>
    %193 = vector.extract_strided_slice %168 {offsets = [7, 0], sizes = [1, 256], strides = [1, 1]} : vector<10x256xf32> to vector<1x256xf32>
    %194 = math.absf %193 : vector<1x256xf32>
    %195 = math.absf %192 : vector<1x256xf32>
    %196 = arith.minimumf %194, %195 : vector<1x256xf32>
    %197 = arith.maximumf %194, %195 : vector<1x256xf32>
    %cst_114 = arith.constant 1.000000e-30 : f32
    %198 = vector.broadcast %cst_114 : f32 to vector<1x256xf32>
    %199 = arith.maximumf %197, %198 : vector<1x256xf32>
    %200 = tpu.reciprocal %199 {approx = true} : vector<1x256xf32> -> vector<1x256xf32>
    %201 = arith.mulf %196, %200 : vector<1x256xf32>
    %202 = arith.mulf %201, %201 : vector<1x256xf32>
    %cst_115 = arith.constant 2.083510e-02 : f32
    %203 = vector.broadcast %cst_115 : f32 to vector<1x256xf32>
    %204 = arith.mulf %203, %202 : vector<1x256xf32>
    %cst_116 = arith.constant 8.513300e-02 : f32
    %205 = vector.broadcast %cst_116 : f32 to vector<1x256xf32>
    %206 = arith.subf %204, %205 : vector<1x256xf32>
    %207 = arith.mulf %206, %202 : vector<1x256xf32>
    %cst_117 = arith.constant 1.801410e-01 : f32
    %208 = vector.broadcast %cst_117 : f32 to vector<1x256xf32>
    %209 = arith.addf %207, %208 : vector<1x256xf32>
    %210 = arith.mulf %209, %202 : vector<1x256xf32>
    %cst_118 = arith.constant 0.330299497 : f32
    %211 = vector.broadcast %cst_118 : f32 to vector<1x256xf32>
    %212 = arith.subf %210, %211 : vector<1x256xf32>
    %213 = arith.mulf %212, %202 : vector<1x256xf32>
    %cst_119 = arith.constant 9.998660e-01 : f32
    %214 = vector.broadcast %cst_119 : f32 to vector<1x256xf32>
    %215 = arith.addf %213, %214 : vector<1x256xf32>
    %216 = arith.mulf %201, %215 : vector<1x256xf32>
    %217 = arith.cmpf ogt, %195, %194 : vector<1x256xf32>
    %cst_120 = arith.constant 1.57079637 : f32
    %218 = vector.broadcast %cst_120 : f32 to vector<1x256xf32>
    %219 = arith.subf %218, %216 : vector<1x256xf32>
    %220 = arith.select %217, %219, %216 : vector<1x256xi1>, vector<1x256xf32>
    %cst_121 = arith.constant 0.000000e+00 : f32
    %221 = vector.broadcast %cst_121 : f32 to vector<1x256xf32>
    %222 = arith.cmpf olt, %193, %221 : vector<1x256xf32>
    %cst_122 = arith.constant 3.14159274 : f32
    %223 = vector.broadcast %cst_122 : f32 to vector<1x256xf32>
    %224 = arith.subf %223, %220 : vector<1x256xf32>
    %225 = arith.select %222, %224, %220 : vector<1x256xi1>, vector<1x256xf32>
    %cst_123 = arith.constant 0.000000e+00 : f32
    %226 = vector.broadcast %cst_123 : f32 to vector<1x256xf32>
    %227 = arith.cmpf olt, %192, %226 : vector<1x256xf32>
    %cst_124 = arith.constant 0.000000e+00 : f32
    %228 = vector.broadcast %cst_124 : f32 to vector<1x256xf32>
    %229 = arith.subf %228, %225 : vector<1x256xf32>
    %230 = arith.select %227, %229, %225 : vector<1x256xi1>, vector<1x256xf32>
    %c0_125 = arith.constant 0 : index
    %c6_126 = arith.constant 6 : index
    %c256_127 = arith.constant 256 : index
    %231 = vector.load %arg8[%c0_125, %c6_126, %c256_127] : memref<1x9x512xf32, #tpu.memory_space<vmem>>, vector<1x1x256xf32>
    %232 = vector.shape_cast %231 : vector<1x1x256xf32> to vector<1x256xf32>
    %233 = vector.shape_cast %230 : vector<1x256xf32> to vector<1x1x256xf32>
    tpu.vector_store %arg8[%c0_125, %c6_126, %c256_127], %233 {strides = array<i32>} : memref<1x9x512xf32, #tpu.memory_space<vmem>>, vector<1x1x256xf32>,
    %234 = vector.extract_strided_slice %168 {offsets = [8, 0], sizes = [2, 256], strides = [1, 1]} : vector<10x256xf32> to vector<2x256xf32>
    %c0_128 = arith.constant 0 : index
    %c7_129 = arith.constant 7 : index
    %c256_130 = arith.constant 256 : index
    %235 = vector.load %arg8[%c0_128, %c7_129, %c256_130] : memref<1x9x512xf32, #tpu.memory_space<vmem>>, vector<1x2x256xf32>
    %236 = vector.shape_cast %235 : vector<1x2x256xf32> to vector<2x256xf32>
    %237 = vector.shape_cast %234 : vector<2x256xf32> to vector<1x2x256xf32>
    tpu.vector_store %arg8[%c0_128, %c7_129, %c256_130], %237 {strides = array<i32>} : memref<1x9x512xf32, #tpu.memory_space<vmem>>, vector<1x2x256xf32>,
    return
  }
  func.func @transform_0(%arg0: i32) -> (i32, i32, i32, i32) {
    %c0_i32 = arith.constant 0 : i32
    %c0_i32_0 = arith.constant 0 : i32
    %c0_i32_1 = arith.constant 0 : i32
    %c0_i32_2 = arith.constant 0 : i32
    return %arg0, %c0_i32, %c0_i32_0, %c0_i32_1 : i32, i32, i32, i32
  }
  func.func @transform_1(%arg0: i32) -> (i32, i32, i32) {
    %c0_i32 = arith.constant 0 : i32
    %c0_i32_0 = arith.constant 0 : i32
    %c0_i32_1 = arith.constant 0 : i32
    %c0_i32_2 = arith.constant 0 : i32
    return %c0_i32, %c0_i32_0, %c0_i32_1 : i32, i32, i32
  }
  func.func @transform_2(%arg0: i32) -> (i32, i32) {
    %c0_i32 = arith.constant 0 : i32
    %c0_i32_0 = arith.constant 0 : i32
    %c0_i32_1 = arith.constant 0 : i32
    return %c0_i32, %c0_i32_0 : i32, i32
  }
  func.func @transform_3(%arg0: i32) -> (i32, i32, i32) {
    %c0_i32 = arith.constant 0 : i32
    %c0_i32_0 = arith.constant 0 : i32
    %c0_i32_1 = arith.constant 0 : i32
    %c0_i32_2 = arith.constant 0 : i32
    return %c0_i32, %c0_i32_0, %c0_i32_1 : i32, i32, i32
  }
  func.func @transform_4(%arg0: i32) -> (i32, i32) {
    %c0_i32 = arith.constant 0 : i32
    %c0_i32_0 = arith.constant 0 : i32
    %c0_i32_1 = arith.constant 0 : i32
    return %c0_i32, %c0_i32_0 : i32, i32
  }
  func.func @transform_5(%arg0: i32) -> (i32, i32) {
    %c0_i32 = arith.constant 0 : i32
    %c0_i32_0 = arith.constant 0 : i32
    %c0_i32_1 = arith.constant 0 : i32
    return %c0_i32, %c0_i32_0 : i32, i32
  }
  func.func @transform_6(%arg0: i32) -> (i32, i32, i32) {
    %c0_i32 = arith.constant 0 : i32
    %c0_i32_0 = arith.constant 0 : i32
    %c0_i32_1 = arith.constant 0 : i32
    return %arg0, %c0_i32, %c0_i32_0 : i32, i32, i32
  }
  func.func @transform_7(%arg0: i32) -> (i32, i32, i32) {
    %c0_i32 = arith.constant 0 : i32
    %c0_i32_0 = arith.constant 0 : i32
    %c0_i32_1 = arith.constant 0 : i32
    return %arg0, %c0_i32, %c0_i32_0 : i32, i32, i32
  }
}

</mosaic_0001>

<llo_original>
// kernel: tpu_custom_call.1
$region0: #{tpu_custom_call.1}
  #allocation0 [shape = 'u32[]', space=smem, size = 0x4, offset = 0x4, fixed_abs, tag = 'smem constant byte address 0x4 - core index']
  #allocation1 [shape = 'u32[72,128]{1,0:T(1,128)}', space=vmem, size = 0x9000, scoped, tag = 'internal scratch']
  #allocation2 [shape = 'f32[18,32,32]{2,1,0:T(8,128)}', space=vmem, size = 0x48000, scoped, tag = 'scratch operand']
  #allocation3 [shape = 'f32[18,32,32]{2,1,0:T(8,128)}', space=vmem, size = 0x48000, scoped, tag = 'scratch operand']
  %s0 = inlined_call_operand.hbm [shape: f32[2,16,16,32], index: 0, kind: input, shape index: {}]
  %s1 = inlined_call_operand.vmem [shape: bf16[3,96,32], index: 1, kind: input, shape index: {}]
  %s2 = inlined_call_operand.vmem [shape: f32[1,32], index: 2, kind: input, shape index: {}]
  %s3 = inlined_call_operand.vmem [shape: bf16[3,96,128], index: 3, kind: input, shape index: {}]
  %s4 = inlined_call_operand.vmem [shape: f32[1,128], index: 4, kind: input, shape index: {}]
  %s5 = inlined_call_operand.vmem [shape: f32[2,256], index: 5, kind: input, shape index: {}]
  %s6 = inlined_call_operand.vmem [shape: f32[2,3,256], index: 6, kind: output, shape index: {0}]
  %s7 = inlined_call_operand.vmem [shape: f32[2,9,512], index: 7, kind: output, shape index: {1}]
  %8 = xla_tuple %s6, %s7
  %s9 = sld [smem:[#allocation0]]
  $region69: #{tpu_custom_call.1} parent=0
    _
  %s11 = ssub.s32 1, %s9
  %s12 = scalar_select 0, %s11, %s9
  $region1: #{tpu_custom_call.1} parent=0
    #allocation4 [shape = 'u8[262144]{0}', space=vmem, size = 0x40000, scoped, tag = 'input window, operand 0']
    #allocation5 [shape = 's32[2]{0}', space=sflag, size = 0x8, scoped, tag = 'scoped memory for tpu_custom_call.1']
    %13 = vsyncpa [#allocation5], 0
    %s14 = scalar_lea.sflag [#allocation5], 1
    %15 = vsyncpa %s14, 0
    loop: start=0, step=1, limit=4
    $region2: #{tpu_custom_call.1} parent=1 // loop_pre_header
      _
    $region3: #{tpu_custom_call.1} parent=1 // loop_header
      %s17 = sphi 0, %s21
      %p18 = scmp.ge.s32.totalorder %s17, 4
      %s27 = sphi 0, %s29
      %s30 = sphi 0, %s27
      %s31 = sphi 0, %s30
      %s47 = sphi 0, %s31
      %s51 = sphi 0, %s51
      %s53 = sphi 0, %s51
      %s54 = sphi 0, %s53
      %s68 = sphi 0, %s54
      %s72 = sphi 0, %s72
      %s74 = sphi 0, %s72
      %s75 = sphi 0, %s74
      %s89 = sphi 0, %s75
      %s93 = sphi 0, %s93
      %s95 = sphi 0, %s93
      %s96 = sphi 0, %s95
      %s110 = sphi 0, %s96
      %s114 = sphi 0, %s114
      %s116 = sphi 0, %s114
      %s117 = sphi 0, %s116
      %s131 = sphi 0, %s117
      %s135 = sphi 0, %s135
      %s137 = sphi 0, %s135
      %s138 = sphi 0, %s137
      %s152 = sphi 0, %s138
      %s158 = sphi 0, %s160
      %s161 = sphi 0, %s158
      %s162 = sphi 0, %s161
      %s178 = sphi 0, %s162
      %s184 = sphi 0, %s186
      %s187 = sphi 0, %s184
      %s188 = sphi 0, %s187
      %s204 = sphi 0, %s188
    $region4: #{tpu_custom_call.1} parent=1 // loop_header_branch
      %20 = sbr.rel (%p18) target = $region8
    $region5: #{tpu_custom_call.1} parent=1 // loop_body
      %s22 = ssub.s32 %s17, 1
      %s23 = ssub.s32 %s17, 2
      %s24 = sadd.s32 %s17, 1
      %s25 = ssub.s32 %s17, %s24
      %p26 = scmp.eq.s32.totalorder %s25, 0
      %s28 = sadd.s32 %s27, 1
      %s29 = scalar_select %p26, %s27, %s28
      %p32 = pneg %p26
      %p33 = scmp.eq.s32.totalorder %s17, 1
      %p34 = por %p32, %p33
      %p35 = scmp.ne.s32.totalorder %s27, %s30
      %p36 = scmp.eq.s32.totalorder %s17, 0
      %p37 = por %p35, %p36
      %p38 = scmp.ne.s32.totalorder %s27, %s30
      %p39 = scmp.eq.s32.totalorder %s22, 1
      %p40 = por %p38, %p39
      %p41 = scmp.ne.s32.totalorder %s30, %s31
      %p42 = scmp.eq.s32.totalorder %s22, 0
      %p43 = por %p41, %p42
      %p44 = scmp.ne.s32.totalorder %s30, %s31
      %p45 = scmp.eq.s32.totalorder %s23, 1
      %p46 = por %p44, %p45
      %p48 = scmp.ne.s32.totalorder %s31, %s47
      %p49 = scmp.eq.s32.totalorder %s23, 0
      %p50 = por %p48, %p49
      %s52 = sadd.s32 %s51, 1
      %p55 = scmp.eq.s32.totalorder %s17, 1
      %p56 = scmp.ne.s32.totalorder %s51, %s53
      %p57 = scmp.eq.s32.totalorder %s17, 0
      %p58 = por %p56, %p57
      %p59 = scmp.ne.s32.totalorder %s51, %s53
      %p60 = scmp.eq.s32.totalorder %s22, 1
      %p61 = por %p59, %p60
      %p62 = scmp.ne.s32.totalorder %s53, %s54
      %p63 = scmp.eq.s32.totalorder %s22, 0
      %p64 = por %p62, %p63
      %p65 = scmp.ne.s32.totalorder %s53, %s54
      %p66 = scmp.eq.s32.totalorder %s23, 1
      %p67 = por %p65, %p66
      %p69 = scmp.ne.s32.totalorder %s54, %s68
      %p70 = scmp.eq.s32.totalorder %s23, 0
      %p71 = por %p69, %p70
      %s73 = sadd.s32 %s72, 1
      %p76 = scmp.eq.s32.totalorder %s17, 1
      %p77 = scmp.ne.s32.totalorder %s72, %s74
      %p78 = scmp.eq.s32.totalorder %s17, 0
      %p79 = por %p77, %p78
      %p80 = scmp.ne.s32.totalorder %s72, %s74
      %p81 = scmp.eq.s32.totalorder %s22, 1
      %p82 = por %p80, %p81
      %p83 = scmp.ne.s32.totalorder %s74, %s75
      %p84 = scmp.eq.s32.totalorder %s22, 0
      %p85 = por %p83, %p84
      %p86 = scmp.ne.s32.totalorder %s74, %s75
      %p87 = scmp.eq.s32.totalorder %s23, 1
      %p88 = por %p86, %p87
      %p90 = scmp.ne.s32.totalorder %s75, %s89
      %p91 = scmp.eq.s32.totalorder %s23, 0
      %p92 = por %p90, %p91
      %s94 = sadd.s32 %s93, 1
      %p97 = scmp.eq.s32.totalorder %s17, 1
      %p98 = scmp.ne.s32.totalorder %s93, %s95
      %p99 = scmp.eq.s32.totalorder %s17, 0
      %p100 = por %p98, %p99
      %p101 = scmp.ne.s32.totalorder %s93, %s95
      %p102 = scmp.eq.s32.totalorder %s22, 1
      %p103 = por %p101, %p102
      %p104 = scmp.ne.s32.totalorder %s95, %s96
      %p105 = scmp.eq.s32.totalorder %s22, 0
      %p106 = por %p104, %p105
      %p107 = scmp.ne.s32.totalorder %s95, %s96
      %p108 = scmp.eq.s32.totalorder %s23, 1
      %p109 = por %p107, %p108
      %p111 = scmp.ne.s32.totalorder %s96, %s110
      %p112 = scmp.eq.s32.totalorder %s23, 0
      %p113 = por %p111, %p112
      %s115 = sadd.s32 %s114, 1
      %p118 = scmp.eq.s32.totalorder %s17, 1
      %p119 = scmp.ne.s32.totalorder %s114, %s116
      %p120 = scmp.eq.s32.totalorder %s17, 0
      %p121 = por %p119, %p120
      %p122 = scmp.ne.s32.totalorder %s114, %s116
      %p123 = scmp.eq.s32.totalorder %s22, 1
      %p124 = por %p122, %p123
      %p125 = scmp.ne.s32.totalorder %s116, %s117
      %p126 = scmp.eq.s32.totalorder %s22, 0
      %p127 = por %p125, %p126
      %p128 = scmp.ne.s32.totalorder %s116, %s117
      %p129 = scmp.eq.s32.totalorder %s23, 1
      %p130 = por %p128, %p129
      %p132 = scmp.ne.s32.totalorder %s117, %s131
      %p133 = scmp.eq.s32.totalorder %s23, 0
      %p134 = por %p132, %p133
      %s136 = sadd.s32 %s135, 1
      %p139 = scmp.eq.s32.totalorder %s17, 1
      %p140 = scmp.ne.s32.totalorder %s135, %s137
      %p141 = scmp.eq.s32.totalorder %s17, 0
      %p142 = por %p140, %p141
      %p143 = scmp.ne.s32.totalorder %s135, %s137
      %p144 = scmp.eq.s32.totalorder %s22, 1
      %p145 = por %p143, %p144
      %p146 = scmp.ne.s32.totalorder %s137, %s138
      %p147 = scmp.eq.s32.totalorder %s22, 0
      %p148 = por %p146, %p147
      %p149 = scmp.ne.s32.totalorder %s137, %s138
      %p150 = scmp.eq.s32.totalorder %s23, 1
      %p151 = por %p149, %p150
      %p153 = scmp.ne.s32.totalorder %s138, %s152
      %p154 = scmp.eq.s32.totalorder %s23, 0
      %p155 = por %p153, %p154
      %s156 = ssub.s32 %s17, %s24
      %p157 = scmp.eq.s32.totalorder %s156, 0
      %s159 = sadd.s32 %s158, 1
      %s160 = scalar_select %p157, %s158, %s159
      %p163 = pneg %p157
      %p164 = scmp.eq.s32.totalorder %s17, 1
      %p165 = por %p163, %p164
      %p166 = scmp.ne.s32.totalorder %s158, %s161
      %p167 = scmp.eq.s32.totalorder %s17, 0
      %p168 = por %p166, %p167
      %p169 = scmp.ne.s32.totalorder %s158, %s161
      %p170 = scmp.eq.s32.totalorder %s22, 1
      %p171 = por %p169, %p170
      %p172 = scmp.ne.s32.totalorder %s161, %s162
      %p173 = scmp.eq.s32.totalorder %s22, 0
      %p174 = por %p172, %p173
      %p175 = scmp.ne.s32.totalorder %s161, %s162
      %p176 = scmp.eq.s32.totalorder %s23, 1
      %p177 = por %p175, %p176
      %p179 = scmp.ne.s32.totalorder %s162, %s178
      %p180 = scmp.eq.s32.totalorder %s23, 0
      %p181 = por %p179, %p180
      %s182 = ssub.s32 %s17, %s24
      %p183 = scmp.eq.s32.totalorder %s182, 0
      %s185 = sadd.s32 %s184, 1
      %s186 = scalar_select %p183, %s184, %s185
      %p189 = pneg %p183
      %p190 = scmp.eq.s32.totalorder %s17, 1
      %p191 = por %p189, %p190
      %p192 = scmp.ne.s32.totalorder %s184, %s187
      %p193 = scmp.eq.s32.totalorder %s17, 0
      %p194 = por %p192, %p193
      %p195 = scmp.ne.s32.totalorder %s184, %s187
      %p196 = scmp.eq.s32.totalorder %s22, 1
      %p197 = por %p195, %p196
      %p198 = scmp.ne.s32.totalorder %s187, %s188
      %p199 = scmp.eq.s32.totalorder %s22, 0
      %p200 = por %p198, %p199
      %p201 = scmp.ne.s32.totalorder %s187, %s188
      %p202 = scmp.eq.s32.totalorder %s23, 1
      %p203 = por %p201, %p202
      %p205 = scmp.ne.s32.totalorder %s188, %s204
      %p206 = scmp.eq.s32.totalorder %s23, 0
      %p207 = por %p205, %p206
      %p208 = scmp.le.s32.totalorder 1, %s17
      %p209 = scmp.lt.s32.totalorder %s17, 3
      %p210 = pnand %p208, %p209
      %p211 = pneg %p210
      // Predicated region
      $region9: #{tpu_custom_call.1} parent=5 // pred_check
        _
      $region10: #{tpu_custom_call.1} parent=5 // pred_check_branch
        %213 = sbr.rel (%p210) target = $region12
      $region11: #{tpu_custom_call.1} parent=5 // pred_region
        %s214 = ssub.s32 %s17, 1
        // Predicated region
        $region13: #{tpu_custom_call.1} parent=11 // pred_check
          %p215 = pneg %p64
        $region14: #{tpu_custom_call.1} parent=11 // pred_check_branch
          %217 = sbr.rel (%p215) target = $region16
        $region15: #{tpu_custom_call.1} parent=11 // pred_region
          _
        $region16: #{tpu_custom_call.1} parent=11 // pred_fallthru
          _
        // Predicated region
        $region17: #{tpu_custom_call.1} parent=11 // pred_check
          %p218 = pneg %p85
        $region18: #{tpu_custom_call.1} parent=11 // pred_check_branch
          %220 = sbr.rel (%p218) target = $region20
        $region19: #{tpu_custom_call.1} parent=11 // pred_region
          _
        $region20: #{tpu_custom_call.1} parent=11 // pred_fallthru
          _
        // Predicated region
        $region21: #{tpu_custom_call.1} parent=11 // pred_check
          %p221 = pneg %p106
        $region22: #{tpu_custom_call.1} parent=11 // pred_check_branch
          %223 = sbr.rel (%p221) target = $region24
        $region23: #{tpu_custom_call.1} parent=11 // pred_region
          _
        $region24: #{tpu_custom_call.1} parent=11 // pred_fallthru
          _
        // Predicated region
        $region25: #{tpu_custom_call.1} parent=11 // pred_check
          %p224 = pneg %p127
        $region26: #{tpu_custom_call.1} parent=11 // pred_check_branch
          %226 = sbr.rel (%p224) target = $region28
        $region27: #{tpu_custom_call.1} parent=11 // pred_region
          _
        $region28: #{tpu_custom_call.1} parent=11 // pred_fallthru
          _
        // Predicated region
        $region29: #{tpu_custom_call.1} parent=11 // pred_check
          %p227 = pneg %p148
        $region30: #{tpu_custom_call.1} parent=11 // pred_check_branch
          %229 = sbr.rel (%p227) target = $region32
        $region31: #{tpu_custom_call.1} parent=11 // pred_region
          _
        $region32: #{tpu_custom_call.1} parent=11 // pred_fallthru
          _
      $region12: #{tpu_custom_call.1} parent=5 // pred_fallthru
        _
      %p230 = scmp.lt.s32.totalorder %s17, 2
      // Predicated region
      $region33: #{tpu_custom_call.1} parent=5 // pred_check
        %p231 = pneg %p230
      $region34: #{tpu_custom_call.1} parent=5 // pred_check_branch
        %233 = sbr.rel (%p231) target = $region36
      $region35: #{tpu_custom_call.1} parent=5 // pred_region
        // Predicated region
        $region37: #{tpu_custom_call.1} parent=35 // pred_check
          %p234 = pneg %p37
        $region38: #{tpu_custom_call.1} parent=35 // pred_check_branch
          %236 = sbr.rel (%p234) target = $region40
        $region39: #{tpu_custom_call.1} parent=35 // pred_region
          %s237 = sand.u32 %s27, 1
          %s238 = scalar_lea.sflag [#allocation5], %s237
          %s239 = sand.u32 %s27, 1
          %s240 = smul.addr %s239, 256
          %s241 = scalar_lea.vmem [#allocation4], %s240
          %243 = vsyncadd %s238, 0
          %s244 = smul.addr %s17, 32
          %s245 = smul.addr %s244, 8
          %s246 = scalar_lea.hbm %s0, %s245
          %s247 = sshll.u32 %s246, 4
          %s248 = int_to_ptr.hbm [resolvable:$true] %s247
          %s249 = sshll.u32 %s241, 4
          %s250 = int_to_ptr.vmem [resolvable:$true] %s249
          %255 = dma.hbm_to_vmem [thread:$0]  %s248, 4096, %s250, %s238, 128, 128, 8
        $region40: #{tpu_custom_call.1} parent=35 // pred_fallthru
          _
      $region36: #{tpu_custom_call.1} parent=5 // pred_fallthru
        _
      %p256 = scmp.le.s32.totalorder 1, %s17
      %p257 = scmp.lt.s32.totalorder %s17, 3
      %p258 = pnand %p256, %p257
      %p259 = pneg %p258
      // Predicated region
      $region41: #{tpu_custom_call.1} parent=5 // pred_check
        _
      $region42: #{tpu_custom_call.1} parent=5 // pred_check_branch
        %261 = sbr.rel (%p258) target = $region44
      $region43: #{tpu_custom_call.1} parent=5 // pred_region
        %s262 = ssub.s32 %s17, 1
        %s263 = sand.u32 %s30, 1
        %s264 = scalar_lea.sflag [#allocation5], %s263
        %s265 = sand.u32 %s30, 1
        %s266 = smul.addr %s265, 256
        %s267 = scalar_lea.vmem [#allocation4], %s266
        // Predicated region
        $region45: #{tpu_custom_call.1} parent=43 // pred_check
          %p268 = pneg %p43
        $region46: #{tpu_custom_call.1} parent=43 // pred_check_branch
          %270 = sbr.rel (%p268) target = $region48
        $region47: #{tpu_custom_call.1} parent=43 // pred_region
          %272 = dma.done %s264, 4096
        $region48: #{tpu_custom_call.1} parent=43 // pred_fallthru
          _
        %s273 = sand.u32 %s30, 1
        %s274 = scalar_lea.sflag [#allocation5], %s273
        %s275 = sand.u32 %s30, 1
        %s276 = smul.addr %s275, 256
        %s277 = scalar_lea.vmem [#allocation4], %s276
        %p278 = pneg %p43
        %p279 = pneg %p40
        %p280 = pneg %p64
        %p281 = pneg %p61
        %p282 = pneg %p85
        %p283 = pneg %p82
        %p284 = pneg %p106
        %p285 = pneg %p103
        %p286 = pneg %p127
        %p287 = pneg %p124
        %p288 = pneg %p148
        %p289 = pneg %p145
        %p290 = pneg %p174
        %p291 = pneg %p171
        %p292 = scmp.lt.s32.totalorder %s22, 1
        %s293 = scalar_select %p292, %s22, 1
        %s294 = smul.addr %s293, 2
        %s295 = smul.addr %s294, 4
        %s296 = scalar_lea.vmem %s6, %s295
        %p297 = pneg %p200
        %p298 = pneg %p197
        %p299 = scmp.lt.s32.totalorder %s22, 1
        %s300 = scalar_select %p299, %s22, 1
        %s301 = smul.addr %s300, 8
        %s302 = smul.addr %s301, 8
        %s303 = scalar_lea.vmem %s7, %s302
        %p304 = scmp.lt.s32.totalorder %s22, 1
        %s305 = scalar_select %p304, %s22, 1
        %s306 = smul.addr %s305, 2
        %s307 = smul.addr %s306, 4
        %s308 = scalar_lea.vmem %s6, %s307
        %p309 = scmp.lt.s32.totalorder %s22, 1
        %s310 = scalar_select %p309, %s22, 1
        %s311 = smul.addr %s310, 8
        %s312 = smul.addr %s311, 8
        %s313 = scalar_lea.vmem %s7, %s312
        %vm315 = vcmask 261120
        %316 = vst.msk [vmem:[#allocation2] sm:$0xff] %vm315, 0.0
        %317 = vst.msk [vmem:[#allocation2 + $0x8] sm:$0xff] %vm315, 0.0
        %318 = vst.msk [vmem:[#allocation2 + $0x10] sm:$0xff] %vm315, 0.0
        %319 = vst.msk [vmem:[#allocation2 + $0x18] sm:$0xff] %vm315, 0.0
        %s320 = scalar_lea.vmem [#allocation2], 544
        %321 = vst.msk [vmem:[%s320] sm:$0xff] %vm315, 0.0
        %322 = vst.msk [vmem:[%s320 + $0x8] sm:$0xff] %vm315, 0.0
        %323 = vst.msk [vmem:[%s320 + $0x10] sm:$0xff] %vm315, 0.0
        %324 = vst.msk [vmem:[%s320 + $0x18] sm:$0xff] %vm315, 0.0
        %vm325 = vcmask 253952
        %326 = vst.msk [vmem:[#allocation2 + $0x7] sm:$0x1] %vm325, 0.0
        %327 = vst.msk [vmem:[#allocation2 + $0x27] sm:$0x1] %vm325, 0.0
        %328 = vst.msk [vmem:[#allocation2 + $0x47] sm:$0x1] %vm325, 0.0
        %329 = vst.msk [vmem:[#allocation2 + $0x67] sm:$0x1] %vm325, 0.0
        %330 = vst.msk [vmem:[#allocation2 + $0x87] sm:$0x1] %vm325, 0.0
        %331 = vst.msk [vmem:[#allocation2 + $0xa7] sm:$0x1] %vm325, 0.0
        %332 = vst.msk [vmem:[#allocation2 + $0xc7] sm:$0x1] %vm325, 0.0
        %333 = vst.msk [vmem:[#allocation2 + $0xe7] sm:$0x1] %vm325, 0.0
        %334 = vst.msk [vmem:[#allocation2 + $0x107] sm:$0x1] %vm325, 0.0
        %335 = vst.msk [vmem:[#allocation2 + $0x127] sm:$0x1] %vm325, 0.0
        %336 = vst.msk [vmem:[#allocation2 + $0x147] sm:$0x1] %vm325, 0.0
        %337 = vst.msk [vmem:[#allocation2 + $0x167] sm:$0x1] %vm325, 0.0
        %338 = vst.msk [vmem:[#allocation2 + $0x187] sm:$0x1] %vm325, 0.0
        %339 = vst.msk [vmem:[#allocation2 + $0x1a7] sm:$0x1] %vm325, 0.0
        %340 = vst.msk [vmem:[#allocation2 + $0x1c7] sm:$0x1] %vm325, 0.0
        %341 = vst.msk [vmem:[#allocation2 + $0x1e7] sm:$0x1] %vm325, 0.0
        %342 = vst.msk [vmem:[#allocation2 + $0x207] sm:$0x1] %vm325, 0.0
        %343 = vst.msk [vmem:[#allocation2 + $0x227] sm:$0x1] %vm325, 0.0
        %344 = vst.msk [vmem:[#allocation2 + $0x18] sm:$0x1] %vm325, 0.0
        %345 = vst.msk [vmem:[#allocation2 + $0x38] sm:$0x1] %vm325, 0.0
        %346 = vst.msk [vmem:[#allocation2 + $0x58] sm:$0x1] %vm325, 0.0
        %347 = vst.msk [vmem:[#allocation2 + $0x78] sm:$0x1] %vm325, 0.0
        %348 = vst.msk [vmem:[#allocation2 + $0x98] sm:$0x1] %vm325, 0.0
        %349 = vst.msk [vmem:[#allocation2 + $0xb8] sm:$0x1] %vm325, 0.0
        %350 = vst.msk [vmem:[#allocation2 + $0xd8] sm:$0x1] %vm325, 0.0
        %351 = vst.msk [vmem:[#allocation2 + $0xf8] sm:$0x1] %vm325, 0.0
        %352 = vst.msk [vmem:[#allocation2 + $0x118] sm:$0x1] %vm325, 0.0
        %353 = vst.msk [vmem:[#allocation2 + $0x138] sm:$0x1] %vm325, 0.0
        %354 = vst.msk [vmem:[#allocation2 + $0x158] sm:$0x1] %vm325, 0.0
        %355 = vst.msk [vmem:[#allocation2 + $0x178] sm:$0x1] %vm325, 0.0
        %356 = vst.msk [vmem:[#allocation2 + $0x198] sm:$0x1] %vm325, 0.0
        %357 = vst.msk [vmem:[#allocation2 + $0x1b8] sm:$0x1] %vm325, 0.0
        %358 = vst.msk [vmem:[#allocation2 + $0x1d8] sm:$0x1] %vm325, 0.0
        %359 = vst.msk [vmem:[#allocation2 + $0x1f8] sm:$0x1] %vm325, 0.0
        %360 = vst.msk [vmem:[#allocation2 + $0x218] sm:$0x1] %vm325, 0.0
        %361 = vst.msk [vmem:[#allocation2 + $0x238] sm:$0x1] %vm325, 0.0
        %362 = vst.msk [vmem:[#allocation3] sm:$0xff] %vm315, 0.0
        %363 = vst.msk [vmem:[#allocation3 + $0x8] sm:$0xff] %vm315, 0.0
        %364 = vst.msk [vmem:[#allocation3 + $0x10] sm:$0xff] %vm315, 0.0
        %365 = vst.msk [vmem:[#allocation3 + $0x18] sm:$0xff] %vm315, 0.0
        %s366 = scalar_lea.vmem [#allocation3], 544
        %367 = vst.msk [vmem:[%s366] sm:$0xff] %vm315, 0.0
        %368 = vst.msk [vmem:[%s366 + $0x8] sm:$0xff] %vm315, 0.0
        %369 = vst.msk [vmem:[%s366 + $0x10] sm:$0xff] %vm315, 0.0
        %370 = vst.msk [vmem:[%s366 + $0x18] sm:$0xff] %vm315, 0.0
        %371 = vst.msk [vmem:[#allocation3 + $0x7] sm:$0x1] %vm325, 0.0
        %372 = vst.msk [vmem:[#allocation3 + $0x27] sm:$0x1] %vm325, 0.0
        %373 = vst.msk [vmem:[#allocation3 + $0x47] sm:$0x1] %vm325, 0.0
        %374 = vst.msk [vmem:[#allocation3 + $0x67] sm:$0x1] %vm325, 0.0
        %375 = vst.msk [vmem:[#allocation3 + $0x87] sm:$0x1] %vm325, 0.0
        %376 = vst.msk [vmem:[#allocation3 + $0xa7] sm:$0x1] %vm325, 0.0
        %377 = vst.msk [vmem:[#allocation3 + $0xc7] sm:$0x1] %vm325, 0.0
        %378 = vst.msk [vmem:[#allocation3 + $0xe7] sm:$0x1] %vm325, 0.0
        %379 = vst.msk [vmem:[#allocation3 + $0x107] sm:$0x1] %vm325, 0.0
        %380 = vst.msk [vmem:[#allocation3 + $0x127] sm:$0x1] %vm325, 0.0
        %381 = vst.msk [vmem:[#allocation3 + $0x147] sm:$0x1] %vm325, 0.0
        %382 = vst.msk [vmem:[#allocation3 + $0x167] sm:$0x1] %vm325, 0.0
        %383 = vst.msk [vmem:[#allocation3 + $0x187] sm:$0x1] %vm325, 0.0
        %384 = vst.msk [vmem:[#allocation3 + $0x1a7] sm:$0x1] %vm325, 0.0
        %385 = vst.msk [vmem:[#allocation3 + $0x1c7] sm:$0x1] %vm325, 0.0
        %386 = vst.msk [vmem:[#allocation3 + $0x1e7] sm:$0x1] %vm325, 0.0
        %387 = vst.msk [vmem:[#allocation3 + $0x207] sm:$0x1] %vm325, 0.0
        %388 = vst.msk [vmem:[#allocation3 + $0x227] sm:$0x1] %vm325, 0.0
        %389 = vst.msk [vmem:[#allocation3 + $0x18] sm:$0x1] %vm325, 0.0
        %390 = vst.msk [vmem:[#allocation3 + $0x38] sm:$0x1] %vm325, 0.0
        %391 = vst.msk [vmem:[#allocation3 + $0x58] sm:$0x1] %vm325, 0.0
        %392 = vst.msk [vmem:[#allocation3 + $0x78] sm:$0x1] %vm325, 0.0
        %393 = vst.msk [vmem:[#allocation3 + $0x98] sm:$0x1] %vm325, 0.0
        %394 = vst.msk [vmem:[#allocation3 + $0xb8] sm:$0x1] %vm325, 0.0
        %395 = vst.msk [vmem:[#allocation3 + $0xd8] sm:$0x1] %vm325, 0.0
        %396 = vst.msk [vmem:[#allocation3 + $0xf8] sm:$0x1] %vm325, 0.0
        %397 = vst.msk [vmem:[#allocation3 + $0x118] sm:$0x1] %vm325, 0.0
        %398 = vst.msk [vmem:[#allocation3 + $0x138] sm:$0x1] %vm325, 0.0
        %399 = vst.msk [vmem:[#allocation3 + $0x158] sm:$0x1] %vm325, 0.0
        %400 = vst.msk [vmem:[#allocation3 + $0x178] sm:$0x1] %vm325, 0.0
        %401 = vst.msk [vmem:[#allocation3 + $0x198] sm:$0x1] %vm325, 0.0
        %402 = vst.msk [vmem:[#allocation3 + $0x1b8] sm:$0x1] %vm325, 0.0
        %403 = vst.msk [vmem:[#allocation3 + $0x1d8] sm:$0x1] %vm325, 0.0
        %404 = vst.msk [vmem:[#allocation3 + $0x1f8] sm:$0x1] %vm325, 0.0
        %405 = vst.msk [vmem:[#allocation3 + $0x218] sm:$0x1] %vm325, 0.0
        %406 = vst.msk [vmem:[#allocation3 + $0x238] sm:$0x1] %vm325, 0.0
        %v407 = vld [vmem:[%s267] sm:$0xff]
        %v408 = vld [vmem:[%s267 + $0x8] sm:$0xff]
        %v409 = vld [vmem:[%s267 + $0x10] sm:$0xff]
        %v410 = vld [vmem:[%s267 + $0x18] sm:$0xff]
        %v411 = vld [vmem:[%s267 + $0x20] sm:$0xff]
        %v412 = vld [vmem:[%s267 + $0x28] sm:$0xff]
        %v413 = vld [vmem:[%s267 + $0x30] sm:$0xff]
        %v414 = vld [vmem:[%s267 + $0x38] sm:$0xff]
        %v415 = vld [vmem:[%s267 + $0x40] sm:$0xff]
        %v416 = vld [vmem:[%s267 + $0x48] sm:$0xff]
        %v417 = vld [vmem:[%s267 + $0x50] sm:$0xff]
        %v418 = vld [vmem:[%s267 + $0x58] sm:$0xff]
        %v419 = vld [vmem:[%s267 + $0x60] sm:$0xff]
        %v420 = vld [vmem:[%s267 + $0x68] sm:$0xff]
        %v421 = vld [vmem:[%s267 + $0x70] sm:$0xff]
        %v422 = vld [vmem:[%s267 + $0x78] sm:$0xff]
        %v423 = vld [vmem:[%s267 + $0x80] sm:$0xff]
        %v424 = vld [vmem:[%s267 + $0x88] sm:$0xff]
        %v425 = vld [vmem:[%s267 + $0x90] sm:$0xff]
        %v426 = vld [vmem:[%s267 + $0x98] sm:$0xff]
        %v427 = vld [vmem:[%s267 + $0xa0] sm:$0xff]
        %v428 = vld [vmem:[%s267 + $0xa8] sm:$0xff]
        %v429 = vld [vmem:[%s267 + $0xb0] sm:$0xff]
        %v430 = vld [vmem:[%s267 + $0xb8] sm:$0xff]
        %v431 = vld [vmem:[%s267 + $0xc0] sm:$0xff]
        %v432 = vld [vmem:[%s267 + $0xc8] sm:$0xff]
        %v433 = vld [vmem:[%s267 + $0xd0] sm:$0xff]
        %v434 = vld [vmem:[%s267 + $0xd8] sm:$0xff]
        %v435 = vld [vmem:[%s267 + $0xe0] sm:$0xff]
        %v436 = vld [vmem:[%s267 + $0xe8] sm:$0xff]
        %v437 = vld [vmem:[%s267 + $0xf0] sm:$0xff]
        %v438 = vld [vmem:[%s267 + $0xf8] sm:$0xff]
        %s439 = scalar_lea.vmem [#allocation2], 32
        %440 = vst.msk [vmem:[%s439 + $0x8] sm:$0xff] %vm315, %v407
        %441 = vst.msk [vmem:[%s439 + $0x10] sm:$0xff] %vm315, %v408
        %442 = vst.msk [vmem:[%s439 + $0x28] sm:$0xff] %vm315, %v409
        %443 = vst.msk [vmem:[%s439 + $0x30] sm:$0xff] %vm315, %v410
        %444 = vst.msk [vmem:[%s439 + $0x48] sm:$0xff] %vm315, %v411
        %445 = vst.msk [vmem:[%s439 + $0x50] sm:$0xff] %vm315, %v412
        %446 = vst.msk [vmem:[%s439 + $0x68] sm:$0xff] %vm315, %v413
        %447 = vst.msk [vmem:[%s439 + $0x70] sm:$0xff] %vm315, %v414
        %448 = vst.msk [vmem:[%s439 + $0x88] sm:$0xff] %vm315, %v415
        %449 = vst.msk [vmem:[%s439 + $0x90] sm:$0xff] %vm315, %v416
        %450 = vst.msk [vmem:[%s439 + $0xa8] sm:$0xff] %vm315, %v417
        %451 = vst.msk [vmem:[%s439 + $0xb0] sm:$0xff] %vm315, %v418
        %452 = vst.msk [vmem:[%s439 + $0xc8] sm:$0xff] %vm315, %v419
        %453 = vst.msk [vmem:[%s439 + $0xd0] sm:$0xff] %vm315, %v420
        %454 = vst.msk [vmem:[%s439 + $0xe8] sm:$0xff] %vm315, %v421
        %455 = vst.msk [vmem:[%s439 + $0xf0] sm:$0xff] %vm315, %v422
        %456 = vst.msk [vmem:[%s439 + $0x108] sm:$0xff] %vm315, %v423
        %457 = vst.msk [vmem:[%s439 + $0x110] sm:$0xff] %vm315, %v424
        %458 = vst.msk [vmem:[%s439 + $0x128] sm:$0xff] %vm315, %v425
        %459 = vst.msk [vmem:[%s439 + $0x130] sm:$0xff] %vm315, %v426
        %460 = vst.msk [vmem:[%s439 + $0x148] sm:$0xff] %vm315, %v427
        %461 = vst.msk [vmem:[%s439 + $0x150] sm:$0xff] %vm315, %v428
        %462 = vst.msk [vmem:[%s439 + $0x168] sm:$0xff] %vm315, %v429
        %463 = vst.msk [vmem:[%s439 + $0x170] sm:$0xff] %vm315, %v430
        %464 = vst.msk [vmem:[%s439 + $0x188] sm:$0xff] %vm315, %v431
        %465 = vst.msk [vmem:[%s439 + $0x190] sm:$0xff] %vm315, %v432
        %466 = vst.msk [vmem:[%s439 + $0x1a8] sm:$0xff] %vm315, %v433
        %467 = vst.msk [vmem:[%s439 + $0x1b0] sm:$0xff] %vm315, %v434
        %468 = vst.msk [vmem:[%s439 + $0x1c8] sm:$0xff] %vm315, %v435
        %469 = vst.msk [vmem:[%s439 + $0x1d0] sm:$0xff] %vm315, %v436
        %470 = vst.msk [vmem:[%s439 + $0x1e8] sm:$0xff] %vm315, %v437
        %471 = vst.msk [vmem:[%s439 + $0x1f0] sm:$0xff] %vm315, %v438
        %v472 = vld [vmem:[#allocation2] sm:$0xff]
        %v473 = vld [vmem:[#allocation2 + $0x8] sm:$0xff]
        %v474 = vld [vmem:[#allocation2 + $0x10] sm:$0xff]
        %v475 = vld [vmem:[#allocation2 + $0x18] sm:$0xff]
        %v476 = vld [vmem:[#allocation2 + $0x20] sm:$0xff]
        %v477 = vld [vmem:[#allocation2 + $0x28] sm:$0xff]
        %v478 = vld [vmem:[#allocation2 + $0x30] sm:$0xff]
        %v479 = vld [vmem:[#allocation2 + $0x38] sm:$0xff]
        %v480 = vld [vmem:[#allocation2 + $0x40] sm:$0xff]
        %v481 = vld [vmem:[#allocation2 + $0x48] sm:$0xff]
        %v482 = vld [vmem:[#allocation2 + $0x50] sm:$0xff]
        %v483 = vld [vmem:[#allocation2 + $0x58] sm:$0xff]
        %v484 = vld [vmem:[#allocation2 + $0x60] sm:$0xff]
        %v485 = vld [vmem:[#allocation2 + $0x68] sm:$0xff]
        %v486 = vld [vmem:[#allocation2 + $0x70] sm:$0xff]
        %v487 = vld [vmem:[#allocation2 + $0x78] sm:$0xff]
        %v488 = vld [vmem:[#allocation2 + $0x80] sm:$0xff]
        %v489 = vld [vmem:[#allocation2 + $0x88] sm:$0xff]
        %v490 = vld [vmem:[#allocation2 + $0x90] sm:$0xff]
        %v491 = vld [vmem:[#allocation2 + $0x98] sm:$0xff]
        %v492 = vld [vmem:[#allocation2 + $0xa0] sm:$0xff]
        %v493 = vld [vmem:[#allocation2 + $0xa8] sm:$0xff]
        %v494 = vld [vmem:[#allocation2 + $0xb0] sm:$0xff]
        %v495 = vld [vmem:[#allocation2 + $0xb8] sm:$0xff]
        %v496 = vld [vmem:[#allocation2 + $0xc0] sm:$0xff]
        %v497 = vld [vmem:[#allocation2 + $0xc8] sm:$0xff]
        %v498 = vld [vmem:[#allocation2 + $0xd0] sm:$0xff]
        %v499 = vld [vmem:[#allocation2 + $0xd8] sm:$0xff]
        %v500 = vld [vmem:[#allocation2 + $0xe0] sm:$0xff]
        %v501 = vld [vmem:[#allocation2 + $0xe8] sm:$0xff]
        %v502 = vld [vmem:[#allocation2 + $0xf0] sm:$0xff]
        %v503 = vld [vmem:[#allocation2 + $0xf8] sm:$0xff]
        %v504 = vld [vmem:[#allocation2 + $0x100] sm:$0xff]
        %v505 = vld [vmem:[#allocation2 + $0x108] sm:$0xff]
        %v506 = vld [vmem:[#allocation2 + $0x110] sm:$0xff]
        %v507 = vld [vmem:[#allocation2 + $0x118] sm:$0xff]
        %v508 = vld [vmem:[#allocation2 + $0x120] sm:$0xff]
        %v509 = vld [vmem:[#allocation2 + $0x128] sm:$0xff]
        %v510 = vld [vmem:[#allocation2 + $0x130] sm:$0xff]
        %v511 = vld [vmem:[#allocation2 + $0x138] sm:$0xff]
        %v512 = vld [vmem:[#allocation2 + $0x140] sm:$0xff]
        %v513 = vld [vmem:[#allocation2 + $0x148] sm:$0xff]
        %v514 = vld [vmem:[#allocation2 + $0x150] sm:$0xff]
        %v515 = vld [vmem:[#allocation2 + $0x158] sm:$0xff]
        %v516 = vld [vmem:[#allocation2 + $0x160] sm:$0xff]
        %v517 = vld [vmem:[#allocation2 + $0x168] sm:$0xff]
        %v518 = vld [vmem:[#allocation2 + $0x170] sm:$0xff]
        %v519 = vld [vmem:[#allocation2 + $0x178] sm:$0xff]
        %v520 = vld [vmem:[#allocation2 + $0x180] sm:$0xff]
        %v521 = vld [vmem:[#allocation2 + $0x188] sm:$0xff]
        %v522 = vld [vmem:[#allocation2 + $0x190] sm:$0xff]
        %v523 = vld [vmem:[#allocation2 + $0x198] sm:$0xff]
        %v524 = vld [vmem:[#allocation2 + $0x1a0] sm:$0xff]
        %v525 = vld [vmem:[#allocation2 + $0x1a8] sm:$0xff]
        %v526 = vld [vmem:[#allocation2 + $0x1b0] sm:$0xff]
        %v527 = vld [vmem:[#allocation2 + $0x1b8] sm:$0xff]
        %v528 = vld [vmem:[#allocation2 + $0x1c0] sm:$0xff]
        %v529 = vld [vmem:[#allocation2 + $0x1c8] sm:$0xff]
        %v530 = vld [vmem:[#allocation2 + $0x1d0] sm:$0xff]
        %v531 = vld [vmem:[#allocation2 + $0x1d8] sm:$0xff]
        %v532 = vld [vmem:[#allocation2 + $0x1e0] sm:$0xff]
        %v533 = vld [vmem:[#allocation2 + $0x1e8] sm:$0xff]
        %v534 = vld [vmem:[#allocation2 + $0x1f0] sm:$0xff]
        %v535 = vld [vmem:[#allocation2 + $0x1f8] sm:$0xff]
        %v536 = vld [vmem:[#allocation2 + $0x200] sm:$0xff]
        %v537 = vld [vmem:[#allocation2 + $0x208] sm:$0xff]
        %v538 = vld [vmem:[#allocation2 + $0x210] sm:$0xff]
        %v539 = vld [vmem:[#allocation2 + $0x218] sm:$0xff]
        %v540 = vld [vmem:[#allocation2 + $0x220] sm:$0xff]
        %v541 = vld [vmem:[#allocation2 + $0x228] sm:$0xff]
        %v542 = vld [vmem:[#allocation2 + $0x230] sm:$0xff]
        %v543 = vld [vmem:[#allocation2 + $0x238] sm:$0xff]
        %592 = vrot.lane.b32.xlu0 %v476, 32
        %v593 = vpop.permute.xlu0 %592
        %594 = vrot.lane.b32.xlu0 %v477, 32
        %v595 = vpop.permute.xlu0 %594
        %596 = vrot.lane.b32.xlu0 %v478, 32
        %v597 = vpop.permute.xlu0 %596
        %598 = vrot.lane.b32.xlu0 %v480, 32
        %v599 = vpop.permute.xlu0 %598
        %600 = vrot.lane.b32.xlu0 %v481, 32
        %v601 = vpop.permute.xlu0 %600
        %602 = vrot.lane.b32.xlu0 %v482, 32
        %v603 = vpop.permute.xlu0 %602
        %604 = vrot.lane.b32.xlu0 %v484, 32
        %v605 = vpop.permute.xlu0 %604
        %606 = vrot.lane.b32.xlu0 %v485, 32
        %v607 = vpop.permute.xlu0 %606
        %608 = vrot.lane.b32.xlu0 %v486, 32
        %v609 = vpop.permute.xlu0 %608
        %610 = vrot.lane.b32.xlu0 %v488, 32
        %v611 = vpop.permute.xlu0 %610
        %612 = vrot.lane.b32.xlu0 %v489, 32
        %v613 = vpop.permute.xlu0 %612
        %614 = vrot.lane.b32.xlu0 %v490, 32
        %v615 = vpop.permute.xlu0 %614
        %616 = vrot.lane.b32.xlu0 %v492, 32
        %v617 = vpop.permute.xlu0 %616
        %618 = vrot.lane.b32.xlu0 %v493, 32
        %v619 = vpop.permute.xlu0 %618
        %620 = vrot.lane.b32.xlu0 %v494, 32
        %v621 = vpop.permute.xlu0 %620
        %622 = vrot.lane.b32.xlu0 %v496, 32
        %v623 = vpop.permute.xlu0 %622
        %624 = vrot.lane.b32.xlu0 %v497, 32
        %v625 = vpop.permute.xlu0 %624
        %626 = vrot.lane.b32.xlu0 %v498, 32
        %v627 = vpop.permute.xlu0 %626
        %628 = vrot.lane.b32.xlu0 %v500, 32
        %v629 = vpop.permute.xlu0 %628
        %630 = vrot.lane.b32.xlu0 %v501, 32
        %v631 = vpop.permute.xlu0 %630
        %632 = vrot.lane.b32.xlu0 %v502, 32
        %v633 = vpop.permute.xlu0 %632
        %634 = vrot.lane.b32.xlu0 %v504, 32
        %v635 = vpop.permute.xlu0 %634
        %636 = vrot.lane.b32.xlu0 %v505, 32
        %v637 = vpop.permute.xlu0 %636
        %638 = vrot.lane.b32.xlu0 %v506, 32
        %v639 = vpop.permute.xlu0 %638
        %640 = vrot.lane.b32.xlu0 %v508, 32
        %v641 = vpop.permute.xlu0 %640
        %642 = vrot.lane.b32.xlu0 %v509, 32
        %v643 = vpop.permute.xlu0 %642
        %644 = vrot.lane.b32.xlu0 %v510, 32
        %v645 = vpop.permute.xlu0 %644
        %646 = vrot.lane.b32.xlu0 %v512, 32
        %v647 = vpop.permute.xlu0 %646
        %648 = vrot.lane.b32.xlu0 %v513, 32
        %v649 = vpop.permute.xlu0 %648
        %650 = vrot.lane.b32.xlu0 %v514, 32
        %v651 = vpop.permute.xlu0 %650
        %652 = vrot.lane.b32.xlu0 %v516, 32
        %v653 = vpop.permute.xlu0 %652
        %654 = vrot.lane.b32.xlu0 %v517, 32
        %v655 = vpop.permute.xlu0 %654
        %656 = vrot.lane.b32.xlu0 %v518, 32
        %v657 = vpop.permute.xlu0 %656
        %658 = vrot.lane.b32.xlu0 %v520, 32
        %v659 = vpop.permute.xlu0 %658
        %660 = vrot.lane.b32.xlu0 %v521, 32
        %v661 = vpop.permute.xlu0 %660
        %662 = vrot.lane.b32.xlu0 %v522, 32
        %v663 = vpop.permute.xlu0 %662
        %664 = vrot.lane.b32.xlu0 %v524, 32
        %v665 = vpop.permute.xlu0 %664
        %666 = vrot.lane.b32.xlu0 %v525, 32
        %v667 = vpop.permute.xlu0 %666
        %668 = vrot.lane.b32.xlu0 %v526, 32
        %v669 = vpop.permute.xlu0 %668
        %670 = vrot.lane.b32.xlu0 %v528, 32
        %v671 = vpop.permute.xlu0 %670
        %672 = vrot.lane.b32.xlu0 %v529, 32
        %v673 = vpop.permute.xlu0 %672
        %674 = vrot.lane.b32.xlu0 %v530, 32
        %v675 = vpop.permute.xlu0 %674
        %676 = vrot.lane.b32.xlu0 %v532, 32
        %v677 = vpop.permute.xlu0 %676
        %678 = vrot.lane.b32.xlu0 %v533, 32
        %v679 = vpop.permute.xlu0 %678
        %680 = vrot.lane.b32.xlu0 %v534, 32
        %v681 = vpop.permute.xlu0 %680
        %682 = vrot.lane.b32.xlu0 %v536, 32
        %v683 = vpop.permute.xlu0 %682
        %684 = vrot.lane.b32.xlu0 %v537, 32
        %v685 = vpop.permute.xlu0 %684
        %686 = vrot.lane.b32.xlu0 %v538, 32
        %v687 = vpop.permute.xlu0 %686
        %739 = vrot.lane.b32.xlu0 %v480, 64
        %v740 = vpop.permute.xlu0 %739
        %741 = vrot.lane.b32.xlu0 %v481, 64
        %v742 = vpop.permute.xlu0 %741
        %743 = vrot.lane.b32.xlu0 %v482, 64
        %v744 = vpop.permute.xlu0 %743
        %745 = vrot.lane.b32.xlu0 %v484, 64
        %v746 = vpop.permute.xlu0 %745
        %747 = vrot.lane.b32.xlu0 %v485, 64
        %v748 = vpop.permute.xlu0 %747
        %749 = vrot.lane.b32.xlu0 %v486, 64
        %v750 = vpop.permute.xlu0 %749
        %751 = vrot.lane.b32.xlu0 %v488, 64
        %v752 = vpop.permute.xlu0 %751
        %753 = vrot.lane.b32.xlu0 %v489, 64
        %v754 = vpop.permute.xlu0 %753
        %755 = vrot.lane.b32.xlu0 %v490, 64
        %v756 = vpop.permute.xlu0 %755
        %757 = vrot.lane.b32.xlu0 %v492, 64
        %v758 = vpop.permute.xlu0 %757
        %759 = vrot.lane.b32.xlu0 %v493, 64
        %v760 = vpop.permute.xlu0 %759
        %761 = vrot.lane.b32.xlu0 %v494, 64
        %v762 = vpop.permute.xlu0 %761
        %763 = vrot.lane.b32.xlu0 %v496, 64
        %v764 = vpop.permute.xlu0 %763
        %765 = vrot.lane.b32.xlu0 %v497, 64
        %v766 = vpop.permute.xlu0 %765
        %767 = vrot.lane.b32.xlu0 %v498, 64
        %v768 = vpop.permute.xlu0 %767
        %769 = vrot.lane.b32.xlu0 %v500, 64
        %v770 = vpop.permute.xlu0 %769
        %771 = vrot.lane.b32.xlu0 %v501, 64
        %v772 = vpop.permute.xlu0 %771
        %773 = vrot.lane.b32.xlu0 %v502, 64
        %v774 = vpop.permute.xlu0 %773
        %775 = vrot.lane.b32.xlu0 %v504, 64
        %v776 = vpop.permute.xlu0 %775
        %777 = vrot.lane.b32.xlu0 %v505, 64
        %v778 = vpop.permute.xlu0 %777
        %779 = vrot.lane.b32.xlu0 %v506, 64
        %v780 = vpop.permute.xlu0 %779
        %781 = vrot.lane.b32.xlu0 %v508, 64
        %v782 = vpop.permute.xlu0 %781
        %783 = vrot.lane.b32.xlu0 %v509, 64
        %v784 = vpop.permute.xlu0 %783
        %785 = vrot.lane.b32.xlu0 %v510, 64
        %v786 = vpop.permute.xlu0 %785
        %787 = vrot.lane.b32.xlu0 %v512, 64
        %v788 = vpop.permute.xlu0 %787
        %789 = vrot.lane.b32.xlu0 %v513, 64
        %v790 = vpop.permute.xlu0 %789
        %791 = vrot.lane.b32.xlu0 %v514, 64
        %v792 = vpop.permute.xlu0 %791
        %793 = vrot.lane.b32.xlu0 %v516, 64
        %v794 = vpop.permute.xlu0 %793
        %795 = vrot.lane.b32.xlu0 %v517, 64
        %v796 = vpop.permute.xlu0 %795
        %797 = vrot.lane.b32.xlu0 %v518, 64
        %v798 = vpop.permute.xlu0 %797
        %799 = vrot.lane.b32.xlu0 %v520, 64
        %v800 = vpop.permute.xlu0 %799
        %801 = vrot.lane.b32.xlu0 %v521, 64
        %v802 = vpop.permute.xlu0 %801
        %803 = vrot.lane.b32.xlu0 %v522, 64
        %v804 = vpop.permute.xlu0 %803
        %805 = vrot.lane.b32.xlu0 %v524, 64
        %v806 = vpop.permute.xlu0 %805
        %807 = vrot.lane.b32.xlu0 %v525, 64
        %v808 = vpop.permute.xlu0 %807
        %809 = vrot.lane.b32.xlu0 %v526, 64
        %v810 = vpop.permute.xlu0 %809
        %811 = vrot.lane.b32.xlu0 %v528, 64
        %v812 = vpop.permute.xlu0 %811
        %813 = vrot.lane.b32.xlu0 %v529, 64
        %v814 = vpop.permute.xlu0 %813
        %815 = vrot.lane.b32.xlu0 %v530, 64
        %v816 = vpop.permute.xlu0 %815
        %817 = vrot.lane.b32.xlu0 %v532, 64
        %v818 = vpop.permute.xlu0 %817
        %819 = vrot.lane.b32.xlu0 %v533, 64
        %v820 = vpop.permute.xlu0 %819
        %821 = vrot.lane.b32.xlu0 %v534, 64
        %v822 = vpop.permute.xlu0 %821
        %823 = vrot.lane.b32.xlu0 %v536, 64
        %v824 = vpop.permute.xlu0 %823
        %825 = vrot.lane.b32.xlu0 %v537, 64
        %v826 = vpop.permute.xlu0 %825
        %827 = vrot.lane.b32.xlu0 %v538, 64
        %v828 = vpop.permute.xlu0 %827
        %829 = vrot.lane.b32.xlu0 %v540, 64
        %v830 = vpop.permute.xlu0 %829
        %831 = vrot.lane.b32.xlu0 %v541, 64
        %v832 = vpop.permute.xlu0 %831
        %833 = vrot.lane.b32.xlu0 %v542, 64
        %v834 = vpop.permute.xlu0 %833
        %v883 = vsel %vm315, %v472, %v593
        %v884 = vsel %vm315, %v473, %v595
        %v885 = vsel %vm315, %v474, %v597
        %v886 = vsel %vm315, %v476, %v599
        %v887 = vsel %vm315, %v477, %v601
        %v888 = vsel %vm315, %v478, %v603
        %v889 = vsel %vm315, %v480, %v605
        %v890 = vsel %vm315, %v481, %v607
        %v891 = vsel %vm315, %v482, %v609
        %v892 = vsel %vm315, %v484, %v611
        %v893 = vsel %vm315, %v485, %v613
        %v894 = vsel %vm315, %v486, %v615
        %v895 = vsel %vm315, %v488, %v617
        %v896 = vsel %vm315, %v489, %v619
        %v897 = vsel %vm315, %v490, %v621
        %v898 = vsel %vm315, %v492, %v623
        %v899 = vsel %vm315, %v493, %v625
        %v900 = vsel %vm315, %v494, %v627
        %v901 = vsel %vm315, %v496, %v629
        %v902 = vsel %vm315, %v497, %v631
        %v903 = vsel %vm315, %v498, %v633
        %v904 = vsel %vm315, %v500, %v635
        %v905 = vsel %vm315, %v501, %v637
        %v906 = vsel %vm315, %v502, %v639
        %v907 = vsel %vm315, %v504, %v641
        %v908 = vsel %vm315, %v505, %v643
        %v909 = vsel %vm315, %v506, %v645
        %v910 = vsel %vm315, %v508, %v647
        %v911 = vsel %vm315, %v509, %v649
        %v912 = vsel %vm315, %v510, %v651
        %v913 = vsel %vm315, %v512, %v653
        %v914 = vsel %vm315, %v513, %v655
        %v915 = vsel %vm315, %v514, %v657
        %v916 = vsel %vm315, %v516, %v659
        %v917 = vsel %vm315, %v517, %v661
        %v918 = vsel %vm315, %v518, %v663
        %v919 = vsel %vm315, %v520, %v665
        %v920 = vsel %vm315, %v521, %v667
        %v921 = vsel %vm315, %v522, %v669
        %v922 = vsel %vm315, %v524, %v671
        %v923 = vsel %vm315, %v525, %v673
        %v924 = vsel %vm315, %v526, %v675
        %v925 = vsel %vm315, %v528, %v677
        %v926 = vsel %vm315, %v529, %v679
        %v927 = vsel %vm315, %v530, %v681
        %v928 = vsel %vm315, %v532, %v683
        %v929 = vsel %vm315, %v533, %v685
        %v930 = vsel %vm315, %v534, %v687
        %vm931 = vcmask 523264
        %v932 = vsel %vm931, %v883, %v740
        %v933 = vsel %vm931, %v884, %v742
        %v934 = vsel %vm931, %v885, %v744
        %v935 = vsel %vm931, %v886, %v746
        %v936 = vsel %vm931, %v887, %v748
        %v937 = vsel %vm931, %v888, %v750
        %v938 = vsel %vm931, %v889, %v752
        %v939 = vsel %vm931, %v890, %v754
        %v940 = vsel %vm931, %v891, %v756
        %v941 = vsel %vm931, %v892, %v758
        %v942 = vsel %vm931, %v893, %v760
        %v943 = vsel %vm931, %v894, %v762
        %v944 = vsel %vm931, %v895, %v764
        %v945 = vsel %vm931, %v896, %v766
        %v946 = vsel %vm931, %v897, %v768
        %v947 = vsel %vm931, %v898, %v770
        %v948 = vsel %vm931, %v899, %v772
        %v949 = vsel %vm931, %v900, %v774
        %v950 = vsel %vm931, %v901, %v776
        %v951 = vsel %vm931, %v902, %v778
        %v952 = vsel %vm931, %v903, %v780
        %v953 = vsel %vm931, %v904, %v782
        %v954 = vsel %vm931, %v905, %v784
        %v955 = vsel %vm931, %v906, %v786
        %v956 = vsel %vm931, %v907, %v788
        %v957 = vsel %vm931, %v908, %v790
        %v958 = vsel %vm931, %v909, %v792
        %v959 = vsel %vm931, %v910, %v794
        %v960 = vsel %vm931, %v911, %v796
        %v961 = vsel %vm931, %v912, %v798
        %v962 = vsel %vm931, %v913, %v800
        %v963 = vsel %vm931, %v914, %v802
        %v964 = vsel %vm931, %v915, %v804
        %v965 = vsel %vm931, %v916, %v806
        %v966 = vsel %vm931, %v917, %v808
        %v967 = vsel %vm931, %v918, %v810
        %v968 = vsel %vm931, %v919, %v812
        %v969 = vsel %vm931, %v920, %v814
        %v970 = vsel %vm931, %v921, %v816
        %v971 = vsel %vm931, %v922, %v818
        %v972 = vsel %vm931, %v923, %v820
        %v973 = vsel %vm931, %v924, %v822
        %v974 = vsel %vm931, %v925, %v824
        %v975 = vsel %vm931, %v926, %v826
        %v976 = vsel %vm931, %v927, %v828
        %v977 = vsel %vm931, %v928, %v830
        %v978 = vsel %vm931, %v929, %v832
        %v979 = vsel %vm931, %v930, %v834
        %vm1028 = vcmask 1040384
        %v1029 = vrot.slane %v932, 7
        %v1030 = vrot.slane %v933, 7
        %v1031 = vsel %vm1028, %v1029, %v1030
        %v1032 = vrot.slane %v934, 7
        %v1033 = vsel %vm1028, %v1030, %v1032
        %v1034 = vrot.slane %v935, 7
        %v1035 = vrot.slane %v936, 7
        %v1036 = vsel %vm1028, %v1034, %v1035
        %v1037 = vrot.slane %v937, 7
        %v1038 = vsel %vm1028, %v1035, %v1037
        %v1039 = vrot.slane %v938, 7
        %v1040 = vrot.slane %v939, 7
        %v1041 = vsel %vm1028, %v1039, %v1040
        %v1042 = vrot.slane %v940, 7
        %v1043 = vsel %vm1028, %v1040, %v1042
        %v1044 = vrot.slane %v941, 7
        %v1045 = vrot.slane %v942, 7
        %v1046 = vsel %vm1028, %v1044, %v1045
        %v1047 = vrot.slane %v943, 7
        %v1048 = vsel %vm1028, %v1045, %v1047
        %v1049 = vrot.slane %v944, 7
        %v1050 = vrot.slane %v945, 7
        %v1051 = vsel %vm1028, %v1049, %v1050
        %v1052 = vrot.slane %v946, 7
        %v1053 = vsel %vm1028, %v1050, %v1052
        %v1054 = vrot.slane %v947, 7
        %v1055 = vrot.slane %v948, 7
        %v1056 = vsel %vm1028, %v1054, %v1055
        %v1057 = vrot.slane %v949, 7
        %v1058 = vsel %vm1028, %v1055, %v1057
        %v1059 = vrot.slane %v950, 7
        %v1060 = vrot.slane %v951, 7
        %v1061 = vsel %vm1028, %v1059, %v1060
        %v1062 = vrot.slane %v952, 7
        %v1063 = vsel %vm1028, %v1060, %v1062
        %v1064 = vrot.slane %v953, 7
        %v1065 = vrot.slane %v954, 7
        %v1066 = vsel %vm1028, %v1064, %v1065
        %v1067 = vrot.slane %v955, 7
        %v1068 = vsel %vm1028, %v1065, %v1067
        %v1069 = vrot.slane %v956, 7
        %v1070 = vrot.slane %v957, 7
        %v1071 = vsel %vm1028, %v1069, %v1070
        %v1072 = vrot.slane %v958, 7
        %v1073 = vsel %vm1028, %v1070, %v1072
        %v1074 = vrot.slane %v959, 7
        %v1075 = vrot.slane %v960, 7
        %v1076 = vsel %vm1028, %v1074, %v1075
        %v1077 = vrot.slane %v961, 7
        %v1078 = vsel %vm1028, %v1075, %v1077
        %v1079 = vrot.slane %v962, 7
        %v1080 = vrot.slane %v963, 7
        %v1081 = vsel %vm1028, %v1079, %v1080
        %v1082 = vrot.slane %v964, 7
        %v1083 = vsel %vm1028, %v1080, %v1082
        %v1084 = vrot.slane %v965, 7
        %v1085 = vrot.slane %v966, 7
        %v1086 = vsel %vm1028, %v1084, %v1085
        %v1087 = vrot.slane %v967, 7
        %v1088 = vsel %vm1028, %v1085, %v1087
        %v1089 = vrot.slane %v968, 7
        %v1090 = vrot.slane %v969, 7
        %v1091 = vsel %vm1028, %v1089, %v1090
        %v1092 = vrot.slane %v970, 7
        %v1093 = vsel %vm1028, %v1090, %v1092
        %v1094 = vrot.slane %v971, 7
        %v1095 = vrot.slane %v972, 7
        %v1096 = vsel %vm1028, %v1094, %v1095
        %v1097 = vrot.slane %v973, 7
        %v1098 = vsel %vm1028, %v1095, %v1097
        %v1099 = vrot.slane %v974, 7
        %v1100 = vrot.slane %v975, 7
        %v1101 = vsel %vm1028, %v1099, %v1100
        %v1102 = vrot.slane %v976, 7
        %v1103 = vsel %vm1028, %v1100, %v1102
        %v1104 = vrot.slane %v977, 7
        %v1105 = vrot.slane %v978, 7
        %v1106 = vsel %vm1028, %v1104, %v1105
        %v1107 = vrot.slane %v979, 7
        %v1108 = vsel %vm1028, %v1105, %v1107
        %v1141 = vpack.c.bf16 %v1033, %v1031
        %v1142 = vpack.c.bf16 %v1038, %v1036
        %v1143 = vpack.c.bf16 %v1043, %v1041
        %v1144 = vpack.c.bf16 %v1048, %v1046
        %v1145 = vpack.c.bf16 %v1053, %v1051
        %v1146 = vpack.c.bf16 %v1058, %v1056
        %v1147 = vpack.c.bf16 %v1063, %v1061
        %v1148 = vpack.c.bf16 %v1068, %v1066
        %v1149 = vpack.c.bf16 %v1073, %v1071
        %v1150 = vpack.c.bf16 %v1078, %v1076
        %v1151 = vpack.c.bf16 %v1083, %v1081
        %v1152 = vpack.c.bf16 %v1088, %v1086
        %v1153 = vpack.c.bf16 %v1093, %v1091
        %v1154 = vpack.c.bf16 %v1098, %v1096
        %v1155 = vpack.c.bf16 %v1103, %v1101
        %v1156 = vpack.c.bf16 %v1108, %v1106
        %v1157 = vld [vmem:[%s1] sm:$0xf]
        %v1158 = vld [vmem:[%s1 + $0x4] sm:$0xf]
        %v1159 = vld [vmem:[%s1 + $0x8] sm:$0xf]
        %v1160 = vld [vmem:[%s1 + $0xc] sm:$0xf]
        %v1161 = vld [vmem:[%s1 + $0x10] sm:$0xf]
        %v1162 = vld [vmem:[%s1 + $0x14] sm:$0xf]
        %v1163 = vld [vmem:[%s1 + $0x18] sm:$0xf]
        %v1164 = vld [vmem:[%s1 + $0x1c] sm:$0xf]
        %v1165 = vld [vmem:[%s1 + $0x20] sm:$0xf]
        %v1166 = vld [vmem:[%s1 + $0x24] sm:$0xf]
        %v1167 = vld [vmem:[%s1 + $0x28] sm:$0xf]
        %v1168 = vld [vmem:[%s1 + $0x2c] sm:$0xf]
        %v1169 = vpack.c.bf16 %v934, %v933
        %v1170 = vpack.c.bf16 %v937, %v936
        %v1171 = vpack.c.bf16 %v940, %v939
        %v1172 = vpack.c.bf16 %v943, %v942
        %v1173 = vpack.c.bf16 %v946, %v945
        %v1174 = vpack.c.bf16 %v949, %v948
        %v1175 = vpack.c.bf16 %v952, %v951
        %v1176 = vpack.c.bf16 %v955, %v954
        %v1177 = vpack.c.bf16 %v958, %v957
        %v1178 = vpack.c.bf16 %v961, %v960
        %v1179 = vpack.c.bf16 %v964, %v963
        %v1180 = vpack.c.bf16 %v967, %v966
        %v1181 = vpack.c.bf16 %v970, %v969
        %v1182 = vpack.c.bf16 %v973, %v972
        %v1183 = vpack.c.bf16 %v976, %v975
        %v1184 = vpack.c.bf16 %v979, %v978
        %s1185 = scalar_lea.vmem %s1, 48
        %v1186 = vld [vmem:[%s1185] sm:$0xf]
        %v1187 = vld [vmem:[%s1185 + $0x4] sm:$0xf]
        %v1188 = vld [vmem:[%s1185 + $0x8] sm:$0xf]
        %v1189 = vld [vmem:[%s1185 + $0xc] sm:$0xf]
        %v1190 = vld [vmem:[%s1185 + $0x10] sm:$0xf]
        %v1191 = vld [vmem:[%s1185 + $0x14] sm:$0xf]
        %v1192 = vld [vmem:[%s1185 + $0x18] sm:$0xf]
        %v1193 = vld [vmem:[%s1185 + $0x1c] sm:$0xf]
        %v1194 = vld [vmem:[%s1185 + $0x20] sm:$0xf]
        %v1195 = vld [vmem:[%s1185 + $0x24] sm:$0xf]
        %v1196 = vld [vmem:[%s1185 + $0x28] sm:$0xf]
        %v1197 = vld [vmem:[%s1185 + $0x2c] sm:$0xf]
        %v1210 = vunpack.c.l.b16 %v1186
        %v1211 = vunpack.c.l.b16 %v1187
        %v1212 = vunpack.c.l.b16 %v1188
        %v1213 = vunpack.c.l.b16 %v1189
        %v1214 = vunpack.c.l.b16 %v1190
        %v1215 = vunpack.c.l.b16 %v1191
        %v1216 = vunpack.c.l.b16 %v1192
        %v1217 = vunpack.c.l.b16 %v1193
        %v1218 = vunpack.c.l.b16 %v1194
        %v1219 = vunpack.c.l.b16 %v1195
        %v1220 = vunpack.c.l.b16 %v1196
        %v1221 = vunpack.c.l.b16 %v1197
        %v1222 = vpack.c.b16 %v1211, %v1210
        %v1223 = vpack.c.b16 %v1213, %v1212
        %v1224 = vpack.c.b16 %v1215, %v1214
        %v1225 = vpack.c.b16 %v1217, %v1216
        %v1226 = vpack.c.b16 %v1219, %v1218
        %v1227 = vpack.c.b16 %v1221, %v1220
        %vm1234 = vcmask 785408
        %v1236 = vsel %vm1234, %v1169, 0
        %v1239 = vsel %vm1234, %v1170, 0
        %v1242 = vsel %vm1234, %v1171, 0
        %v1245 = vsel %vm1234, %v1172, 0
        %v1248 = vsel %vm1234, %v1173, 0
        %v1251 = vsel %vm1234, %v1174, 0
        %v1254 = vsel %vm1234, %v1175, 0
        %v1257 = vsel %vm1234, %v1176, 0
        %v1260 = vsel %vm1234, %v1177, 0
        %v1263 = vsel %vm1234, %v1178, 0
        %v1266 = vsel %vm1234, %v1179, 0
        %v1269 = vsel %vm1234, %v1180, 0
        %v1272 = vsel %vm1234, %v1181, 0
        %v1275 = vsel %vm1234, %v1182, 0
        %v1278 = vsel %vm1234, %v1183, 0
        %v1281 = vsel %vm1234, %v1184, 0
        %1283 = vmatpush.bf16.msra.mxu0 0
        %1284 = vmatpush.bf16.msra.mxu0 0
        %1285 = vmatpush.bf16.msra.mxu0 %v1227
        %1286 = vmatpush.bf16.msra.mxu0 %v1226
        %1287 = vmatpush.bf16.msra.mxu0 %v1225
        %1288 = vmatpush.bf16.msra.mxu0 %v1224
        %1289 = vmatpush.bf16.msra.mxu0 %v1223
        %1290 = vmatpush.bf16.msra.mxu0 %v1222
        %1291 = vmatmul.bf16.gmra.mxu0 %v1236
        %v1292 = vpop.f32.mrf.mxu0
        %v1293 = vadd.f32 0.0, %v1292
        %v1294 = vpop.f32.mrf.mxu0
        %v1295 = vadd.f32 0.0, %v1294
        %1296 = vmatmul.bf16.gmra.mxu0 %v1239
        %v1297 = vpop.f32.mrf.mxu0
        %v1298 = vadd.f32 0.0, %v1297
        %v1299 = vpop.f32.mrf.mxu0
        %v1300 = vadd.f32 0.0, %v1299
        %1301 = vmatmul.bf16.gmra.mxu0 %v1242
        %v1302 = vpop.f32.mrf.mxu0
        %v1303 = vadd.f32 0.0, %v1302
        %v1304 = vpop.f32.mrf.mxu0
        %v1305 = vadd.f32 0.0, %v1304
        %1306 = vmatmul.bf16.gmra.mxu0 %v1245
        %v1307 = vpop.f32.mrf.mxu0
        %v1308 = vadd.f32 0.0, %v1307
        %v1309 = vpop.f32.mrf.mxu0
        %v1310 = vadd.f32 0.0, %v1309
        %1311 = vmatmul.bf16.gmra.mxu0 %v1248
        %v1312 = vpop.f32.mrf.mxu0
        %v1313 = vadd.f32 0.0, %v1312
        %v1314 = vpop.f32.mrf.mxu0
        %v1315 = vadd.f32 0.0, %v1314
        %1316 = vmatmul.bf16.gmra.mxu0 %v1251
        %v1317 = vpop.f32.mrf.mxu0
        %v1318 = vadd.f32 0.0, %v1317
        %v1319 = vpop.f32.mrf.mxu0
        %v1320 = vadd.f32 0.0, %v1319
        %1321 = vmatmul.bf16.gmra.mxu0 %v1254
        %v1322 = vpop.f32.mrf.mxu0
        %v1323 = vadd.f32 0.0, %v1322
        %v1324 = vpop.f32.mrf.mxu0
        %v1325 = vadd.f32 0.0, %v1324
        %1326 = vmatmul.bf16.gmra.mxu0 %v1257
        %v1327 = vpop.f32.mrf.mxu0
        %v1328 = vadd.f32 0.0, %v1327
        %v1329 = vpop.f32.mrf.mxu0
        %v1330 = vadd.f32 0.0, %v1329
        %1331 = vmatmul.bf16.gmra.mxu0 %v1260
        %v1332 = vpop.f32.mrf.mxu0
        %v1333 = vadd.f32 0.0, %v1332
        %v1334 = vpop.f32.mrf.mxu0
        %v1335 = vadd.f32 0.0, %v1334
        %1336 = vmatmul.bf16.gmra.mxu0 %v1263
        %v1337 = vpop.f32.mrf.mxu0
        %v1338 = vadd.f32 0.0, %v1337
        %v1339 = vpop.f32.mrf.mxu0
        %v1340 = vadd.f32 0.0, %v1339
        %1341 = vmatmul.bf16.gmra.mxu0 %v1266
        %v1342 = vpop.f32.mrf.mxu0
        %v1343 = vadd.f32 0.0, %v1342
        %v1344 = vpop.f32.mrf.mxu0
        %v1345 = vadd.f32 0.0, %v1344
        %1346 = vmatmul.bf16.gmra.mxu0 %v1269
        %v1347 = vpop.f32.mrf.mxu0
        %v1348 = vadd.f32 0.0, %v1347
        %v1349 = vpop.f32.mrf.mxu0
        %v1350 = vadd.f32 0.0, %v1349
        %1351 = vmatmul.bf16.gmra.mxu0 %v1272
        %v1352 = vpop.f32.mrf.mxu0
        %v1353 = vadd.f32 0.0, %v1352
        %v1354 = vpop.f32.mrf.mxu0
        %v1355 = vadd.f32 0.0, %v1354
        %1356 = vmatmul.bf16.gmra.mxu0 %v1275
        %v1357 = vpop.f32.mrf.mxu0
        %v1358 = vadd.f32 0.0, %v1357
        %v1359 = vpop.f32.mrf.mxu0
        %v1360 = vadd.f32 0.0, %v1359
        %1361 = vmatmul.bf16.gmra.mxu0 %v1278
        %v1362 = vpop.f32.mrf.mxu0
        %v1363 = vadd.f32 0.0, %v1362
        %v1364 = vpop.f32.mrf.mxu0
        %v1365 = vadd.f32 0.0, %v1364
        %1366 = vmatmul.bf16.gmra.mxu0 %v1281
        %v1367 = vpop.f32.mrf.mxu0
        %v1368 = vadd.f32 0.0, %v1367
        %v1369 = vpop.f32.mrf.mxu0
        %v1370 = vadd.f32 0.0, %v1369
        %1371 = vdwg.mxu0
        %v1384 = vunpack.c.l.b16 %v1157
        %v1385 = vunpack.c.l.b16 %v1158
        %v1386 = vunpack.c.l.b16 %v1159
        %v1387 = vunpack.c.l.b16 %v1160
        %v1388 = vunpack.c.l.b16 %v1161
        %v1389 = vunpack.c.l.b16 %v1162
        %v1390 = vunpack.c.l.b16 %v1163
        %v1391 = vunpack.c.l.b16 %v1164
        %v1392 = vunpack.c.l.b16 %v1165
        %v1393 = vunpack.c.l.b16 %v1166
        %v1394 = vunpack.c.l.b16 %v1167
        %v1395 = vunpack.c.l.b16 %v1168
        %v1396 = vpack.c.b16 %v1385, %v1384
        %v1397 = vpack.c.b16 %v1387, %v1386
        %v1398 = vpack.c.b16 %v1389, %v1388
        %v1399 = vpack.c.b16 %v1391, %v1390
        %v1400 = vpack.c.b16 %v1393, %v1392
        %v1401 = vpack.c.b16 %v1395, %v1394
        %v1409 = vsel %vm1234, %v1141, 0
        %v1412 = vsel %vm1234, %v1142, 0
        %v1415 = vsel %vm1234, %v1143, 0
        %v1418 = vsel %vm1234, %v1144, 0
        %v1421 = vsel %vm1234, %v1145, 0
        %v1424 = vsel %vm1234, %v1146, 0
        %v1427 = vsel %vm1234, %v1147, 0
        %v1430 = vsel %vm1234, %v1148, 0
        %v1433 = vsel %vm1234, %v1149, 0
        %v1436 = vsel %vm1234, %v1150, 0
        %v1439 = vsel %vm1234, %v1151, 0
        %v1442 = vsel %vm1234, %v1152, 0
        %v1445 = vsel %vm1234, %v1153, 0
        %v1448 = vsel %vm1234, %v1154, 0
        %v1451 = vsel %vm1234, %v1155, 0
        %v1454 = vsel %vm1234, %v1156, 0
        %1456 = vmatpush.bf16.msra.mxu0 0
        %1457 = vmatpush.bf16.msra.mxu0 0
        %1458 = vmatpush.bf16.msra.mxu0 %v1401
        %1459 = vmatpush.bf16.msra.mxu0 %v1400
        %1460 = vmatpush.bf16.msra.mxu0 %v1399
        %1461 = vmatpush.bf16.msra.mxu0 %v1398
        %1462 = vmatpush.bf16.msra.mxu0 %v1397
        %1463 = vmatpush.bf16.msra.mxu0 %v1396
        %1464 = vmatmul.bf16.gmra.mxu0 %v1409
        %v1465 = vpop.f32.mrf.mxu0
        %v1466 = vadd.f32 %v1293, %v1465
        %v1467 = vpop.f32.mrf.mxu0
        %v1468 = vadd.f32 %v1295, %v1467
        %1469 = vmatmul.bf16.gmra.mxu0 %v1412
        %v1470 = vpop.f32.mrf.mxu0
        %v1471 = vadd.f32 %v1298, %v1470
        %v1472 = vpop.f32.mrf.mxu0
        %v1473 = vadd.f32 %v1300, %v1472
        %1474 = vmatmul.bf16.gmra.mxu0 %v1415
        %v1475 = vpop.f32.mrf.mxu0
        %v1476 = vadd.f32 %v1303, %v1475
        %v1477 = vpop.f32.mrf.mxu0
        %v1478 = vadd.f32 %v1305, %v1477
        %1479 = vmatmul.bf16.gmra.mxu0 %v1418
        %v1480 = vpop.f32.mrf.mxu0
        %v1481 = vadd.f32 %v1308, %v1480
        %v1482 = vpop.f32.mrf.mxu0
        %v1483 = vadd.f32 %v1310, %v1482
        %1484 = vmatmul.bf16.gmra.mxu0 %v1421
        %v1485 = vpop.f32.mrf.mxu0
        %v1486 = vadd.f32 %v1313, %v1485
        %v1487 = vpop.f32.mrf.mxu0
        %v1488 = vadd.f32 %v1315, %v1487
        %1489 = vmatmul.bf16.gmra.mxu0 %v1424
        %v1490 = vpop.f32.mrf.mxu0
        %v1491 = vadd.f32 %v1318, %v1490
        %v1492 = vpop.f32.mrf.mxu0
        %v1493 = vadd.f32 %v1320, %v1492
        %1494 = vmatmul.bf16.gmra.mxu0 %v1427
        %v1495 = vpop.f32.mrf.mxu0
        %v1496 = vadd.f32 %v1323, %v1495
        %v1497 = vpop.f32.mrf.mxu0
        %v1498 = vadd.f32 %v1325, %v1497
        %1499 = vmatmul.bf16.gmra.mxu0 %v1430
        %v1500 = vpop.f32.mrf.mxu0
        %v1501 = vadd.f32 %v1328, %v1500
        %v1502 = vpop.f32.mrf.mxu0
        %v1503 = vadd.f32 %v1330, %v1502
        %1504 = vmatmul.bf16.gmra.mxu0 %v1433
        %v1505 = vpop.f32.mrf.mxu0
        %v1506 = vadd.f32 %v1333, %v1505
        %v1507 = vpop.f32.mrf.mxu0
        %v1508 = vadd.f32 %v1335, %v1507
        %1509 = vmatmul.bf16.gmra.mxu0 %v1436
        %v1510 = vpop.f32.mrf.mxu0
        %v1511 = vadd.f32 %v1338, %v1510
        %v1512 = vpop.f32.mrf.mxu0
        %v1513 = vadd.f32 %v1340, %v1512
        %1514 = vmatmul.bf16.gmra.mxu0 %v1439
        %v1515 = vpop.f32.mrf.mxu0
        %v1516 = vadd.f32 %v1343, %v1515
        %v1517 = vpop.f32.mrf.mxu0
        %v1518 = vadd.f32 %v1345, %v1517
        %1519 = vmatmul.bf16.gmra.mxu0 %v1442
        %v1520 = vpop.f32.mrf.mxu0
        %v1521 = vadd.f32 %v1348, %v1520
        %v1522 = vpop.f32.mrf.mxu0
        %v1523 = vadd.f32 %v1350, %v1522
        %1524 = vmatmul.bf16.gmra.mxu0 %v1445
        %v1525 = vpop.f32.mrf.mxu0
        %v1526 = vadd.f32 %v1353, %v1525
        %v1527 = vpop.f32.mrf.mxu0
        %v1528 = vadd.f32 %v1355, %v1527
        %1529 = vmatmul.bf16.gmra.mxu0 %v1448
        %v1530 = vpop.f32.mrf.mxu0
        %v1531 = vadd.f32 %v1358, %v1530
        %v1532 = vpop.f32.mrf.mxu0
        %v1533 = vadd.f32 %v1360, %v1532
        %1534 = vmatmul.bf16.gmra.mxu0 %v1451
        %v1535 = vpop.f32.mrf.mxu0
        %v1536 = vadd.f32 %v1363, %v1535
        %v1537 = vpop.f32.mrf.mxu0
        %v1538 = vadd.f32 %v1365, %v1537
        %1539 = vmatmul.bf16.gmra.mxu0 %v1454
        %v1540 = vpop.f32.mrf.mxu0
        %v1541 = vadd.f32 %v1368, %v1540
        %v1542 = vpop.f32.mrf.mxu0
        %v1543 = vadd.f32 %v1370, %v1542
        %1544 = vdwg.mxu0
        %1561 = vrot.lane.b32.xlu0 %v479, 32
        %v1562 = vpop.permute.xlu0 %1561
        %1563 = vrot.lane.b32.xlu0 %v483, 32
        %v1564 = vpop.permute.xlu0 %1563
        %1565 = vrot.lane.b32.xlu0 %v487, 32
        %v1566 = vpop.permute.xlu0 %1565
        %1567 = vrot.lane.b32.xlu0 %v491, 32
        %v1568 = vpop.permute.xlu0 %1567
        %1569 = vrot.lane.b32.xlu0 %v495, 32
        %v1570 = vpop.permute.xlu0 %1569
        %1571 = vrot.lane.b32.xlu0 %v499, 32
        %v1572 = vpop.permute.xlu0 %1571
        %1573 = vrot.lane.b32.xlu0 %v503, 32
        %v1574 = vpop.permute.xlu0 %1573
        %1575 = vrot.lane.b32.xlu0 %v507, 32
        %v1576 = vpop.permute.xlu0 %1575
        %1577 = vrot.lane.b32.xlu0 %v511, 32
        %v1578 = vpop.permute.xlu0 %1577
        %1579 = vrot.lane.b32.xlu0 %v515, 32
        %v1580 = vpop.permute.xlu0 %1579
        %1581 = vrot.lane.b32.xlu0 %v519, 32
        %v1582 = vpop.permute.xlu0 %1581
        %1583 = vrot.lane.b32.xlu0 %v523, 32
        %v1584 = vpop.permute.xlu0 %1583
        %1585 = vrot.lane.b32.xlu0 %v527, 32
        %v1586 = vpop.permute.xlu0 %1585
        %1587 = vrot.lane.b32.xlu0 %v531, 32
        %v1588 = vpop.permute.xlu0 %1587
        %1589 = vrot.lane.b32.xlu0 %v535, 32
        %v1590 = vpop.permute.xlu0 %1589
        %1591 = vrot.lane.b32.xlu0 %v539, 32
        %v1592 = vpop.permute.xlu0 %1591
        %1610 = vrot.lane.b32.xlu0 %v483, 64
        %v1611 = vpop.permute.xlu0 %1610
        %1612 = vrot.lane.b32.xlu0 %v487, 64
        %v1613 = vpop.permute.xlu0 %1612
        %1614 = vrot.lane.b32.xlu0 %v491, 64
        %v1615 = vpop.permute.xlu0 %1614
        %1616 = vrot.lane.b32.xlu0 %v495, 64
        %v1617 = vpop.permute.xlu0 %1616
        %1618 = vrot.lane.b32.xlu0 %v499, 64
        %v1619 = vpop.permute.xlu0 %1618
        %1620 = vrot.lane.b32.xlu0 %v503, 64
        %v1621 = vpop.permute.xlu0 %1620
        %1622 = vrot.lane.b32.xlu0 %v507, 64
        %v1623 = vpop.permute.xlu0 %1622
        %1624 = vrot.lane.b32.xlu0 %v511, 64
        %v1625 = vpop.permute.xlu0 %1624
        %1626 = vrot.lane.b32.xlu0 %v515, 64
        %v1627 = vpop.permute.xlu0 %1626
        %1628 = vrot.lane.b32.xlu0 %v519, 64
        %v1629 = vpop.permute.xlu0 %1628
        %1630 = vrot.lane.b32.xlu0 %v523, 64
        %v1631 = vpop.permute.xlu0 %1630
        %1632 = vrot.lane.b32.xlu0 %v527, 64
        %v1633 = vpop.permute.xlu0 %1632
        %1634 = vrot.lane.b32.xlu0 %v531, 64
        %v1635 = vpop.permute.xlu0 %1634
        %1636 = vrot.lane.b32.xlu0 %v535, 64
        %v1637 = vpop.permute.xlu0 %1636
        %1638 = vrot.lane.b32.xlu0 %v539, 64
        %v1639 = vpop.permute.xlu0 %1638
        %1640 = vrot.lane.b32.xlu0 %v543, 64
        %v1641 = vpop.permute.xlu0 %1640
        %v1658 = vsel %vm315, %v475, %v1562
        %v1659 = vsel %vm315, %v479, %v1564
        %v1660 = vsel %vm315, %v483, %v1566
        %v1661 = vsel %vm315, %v487, %v1568
        %v1662 = vsel %vm315, %v491, %v1570
        %v1663 = vsel %vm315, %v495, %v1572
        %v1664 = vsel %vm315, %v499, %v1574
        %v1665 = vsel %vm315, %v503, %v1576
        %v1666 = vsel %vm315, %v507, %v1578
        %v1667 = vsel %vm315, %v511, %v1580
        %v1668 = vsel %vm315, %v515, %v1582
        %v1669 = vsel %vm315, %v519, %v1584
        %v1670 = vsel %vm315, %v523, %v1586
        %v1671 = vsel %vm315, %v527, %v1588
        %v1672 = vsel %vm315, %v531, %v1590
        %v1673 = vsel %vm315, %v535, %v1592
        %v1674 = vsel %vm931, %v1658, %v1611
        %v1675 = vsel %vm931, %v1659, %v1613
        %v1676 = vsel %vm931, %v1660, %v1615
        %v1677 = vsel %vm931, %v1661, %v1617
        %v1678 = vsel %vm931, %v1662, %v1619
        %v1679 = vsel %vm931, %v1663, %v1621
        %v1680 = vsel %vm931, %v1664, %v1623
        %v1681 = vsel %vm931, %v1665, %v1625
        %v1682 = vsel %vm931, %v1666, %v1627
        %v1683 = vsel %vm931, %v1667, %v1629
        %v1684 = vsel %vm931, %v1668, %v1631
        %v1685 = vsel %vm931, %v1669, %v1633
        %v1686 = vsel %vm931, %v1670, %v1635
        %v1687 = vsel %vm931, %v1671, %v1637
        %v1688 = vsel %vm931, %v1672, %v1639
        %v1689 = vsel %vm931, %v1673, %v1641
        %vm1706 = vcmask 1046528
        %v1707 = vrot.slane %v933, 1
        %v1708 = vrot.slane %v934, 1
        %v1709 = vsel %vm1706, %v1707, %v1708
        %v1710 = vrot.slane %v1674, 1
        %v1711 = vsel %vm1706, %v1708, %v1710
        %v1712 = vrot.slane %v936, 1
        %v1713 = vrot.slane %v937, 1
        %v1714 = vsel %vm1706, %v1712, %v1713
        %v1715 = vrot.slane %v1675, 1
        %v1716 = vsel %vm1706, %v1713, %v1715
        %v1717 = vrot.slane %v939, 1
        %v1718 = vrot.slane %v940, 1
        %v1719 = vsel %vm1706, %v1717, %v1718
        %v1720 = vrot.slane %v1676, 1
        %v1721 = vsel %vm1706, %v1718, %v1720
        %v1722 = vrot.slane %v942, 1
        %v1723 = vrot.slane %v943, 1
        %v1724 = vsel %vm1706, %v1722, %v1723
        %v1725 = vrot.slane %v1677, 1
        %v1726 = vsel %vm1706, %v1723, %v1725
        %v1727 = vrot.slane %v945, 1
        %v1728 = vrot.slane %v946, 1
        %v1729 = vsel %vm1706, %v1727, %v1728
        %v1730 = vrot.slane %v1678, 1
        %v1731 = vsel %vm1706, %v1728, %v1730
        %v1732 = vrot.slane %v948, 1
        %v1733 = vrot.slane %v949, 1
        %v1734 = vsel %vm1706, %v1732, %v1733
        %v1735 = vrot.slane %v1679, 1
        %v1736 = vsel %vm1706, %v1733, %v1735
        %v1737 = vrot.slane %v951, 1
        %v1738 = vrot.slane %v952, 1
        %v1739 = vsel %vm1706, %v1737, %v1738
        %v1740 = vrot.slane %v1680, 1
        %v1741 = vsel %vm1706, %v1738, %v1740
        %v1742 = vrot.slane %v954, 1
        %v1743 = vrot.slane %v955, 1
        %v1744 = vsel %vm1706, %v1742, %v1743
        %v1745 = vrot.slane %v1681, 1
        %v1746 = vsel %vm1706, %v1743, %v1745
        %v1747 = vrot.slane %v957, 1
        %v1748 = vrot.slane %v958, 1
        %v1749 = vsel %vm1706, %v1747, %v1748
        %v1750 = vrot.slane %v1682, 1
        %v1751 = vsel %vm1706, %v1748, %v1750
        %v1752 = vrot.slane %v960, 1
        %v1753 = vrot.slane %v961, 1
        %v1754 = vsel %vm1706, %v1752, %v1753
        %v1755 = vrot.slane %v1683, 1
        %v1756 = vsel %vm1706, %v1753, %v1755
        %v1757 = vrot.slane %v963, 1
        %v1758 = vrot.slane %v964, 1
        %v1759 = vsel %vm1706, %v1757, %v1758
        %v1760 = vrot.slane %v1684, 1
        %v1761 = vsel %vm1706, %v1758, %v1760
        %v1762 = vrot.slane %v966, 1
        %v1763 = vrot.slane %v967, 1
        %v1764 = vsel %vm1706, %v1762, %v1763
        %v1765 = vrot.slane %v1685, 1
        %v1766 = vsel %vm1706, %v1763, %v1765
        %v1767 = vrot.slane %v969, 1
        %v1768 = vrot.slane %v970, 1
        %v1769 = vsel %vm1706, %v1767, %v1768
        %v1770 = vrot.slane %v1686, 1
        %v1771 = vsel %vm1706, %v1768, %v1770
        %v1772 = vrot.slane %v972, 1
        %v1773 = vrot.slane %v973, 1
        %v1774 = vsel %vm1706, %v1772, %v1773
        %v1775 = vrot.slane %v1687, 1
        %v1776 = vsel %vm1706, %v1773, %v1775
        %v1777 = vrot.slane %v975, 1
        %v1778 = vrot.slane %v976, 1
        %v1779 = vsel %vm1706, %v1777, %v1778
        %v1780 = vrot.slane %v1688, 1
        %v1781 = vsel %vm1706, %v1778, %v1780
        %v1782 = vrot.slane %v978, 1
        %v1783 = vrot.slane %v979, 1
        %v1784 = vsel %vm1706, %v1782, %v1783
        %v1785 = vrot.slane %v1689, 1
        %v1786 = vsel %vm1706, %v1783, %v1785
        %v1819 = vpack.c.bf16 %v1711, %v1709
        %v1820 = vpack.c.bf16 %v1716, %v1714
        %v1821 = vpack.c.bf16 %v1721, %v1719
        %v1822 = vpack.c.bf16 %v1726, %v1724
        %v1823 = vpack.c.bf16 %v1731, %v1729
        %v1824 = vpack.c.bf16 %v1736, %v1734
        %v1825 = vpack.c.bf16 %v1741, %v1739
        %v1826 = vpack.c.bf16 %v1746, %v1744
        %v1827 = vpack.c.bf16 %v1751, %v1749
        %v1828 = vpack.c.bf16 %v1756, %v1754
        %v1829 = vpack.c.bf16 %v1761, %v1759
        %v1830 = vpack.c.bf16 %v1766, %v1764
        %v1831 = vpack.c.bf16 %v1771, %v1769
        %v1832 = vpack.c.bf16 %v1776, %v1774
        %v1833 = vpack.c.bf16 %v1781, %v1779
        %v1834 = vpack.c.bf16 %v1786, %v1784
        %s1835 = scalar_lea.vmem %s1, 96
        %v1836 = vld [vmem:[%s1835] sm:$0xf]
        %v1837 = vld [vmem:[%s1835 + $0x4] sm:$0xf]
        %v1838 = vld [vmem:[%s1835 + $0x8] sm:$0xf]
        %v1839 = vld [vmem:[%s1835 + $0xc] sm:$0xf]
        %v1840 = vld [vmem:[%s1835 + $0x10] sm:$0xf]
        %v1841 = vld [vmem:[%s1835 + $0x14] sm:$0xf]
        %v1842 = vld [vmem:[%s1835 + $0x18] sm:$0xf]
        %v1843 = vld [vmem:[%s1835 + $0x1c] sm:$0xf]
        %v1844 = vld [vmem:[%s1835 + $0x20] sm:$0xf]
        %v1845 = vld [vmem:[%s1835 + $0x24] sm:$0xf]
        %v1846 = vld [vmem:[%s1835 + $0x28] sm:$0xf]
        %v1847 = vld [vmem:[%s1835 + $0x2c] sm:$0xf]
        %v1860 = vunpack.c.l.b16 %v1836
        %v1861 = vunpack.c.l.b16 %v1837
        %v1862 = vunpack.c.l.b16 %v1838
        %v1863 = vunpack.c.l.b16 %v1839
        %v1864 = vunpack.c.l.b16 %v1840
        %v1865 = vunpack.c.l.b16 %v1841
        %v1866 = vunpack.c.l.b16 %v1842
        %v1867 = vunpack.c.l.b16 %v1843
        %v1868 = vunpack.c.l.b16 %v1844
        %v1869 = vunpack.c.l.b16 %v1845
        %v1870 = vunpack.c.l.b16 %v1846
        %v1871 = vunpack.c.l.b16 %v1847
        %v1872 = vpack.c.b16 %v1861, %v1860
        %v1873 = vpack.c.b16 %v1863, %v1862
        %v1874 = vpack.c.b16 %v1865, %v1864
        %v1875 = vpack.c.b16 %v1867, %v1866
        %v1876 = vpack.c.b16 %v1869, %v1868
        %v1877 = vpack.c.b16 %v1871, %v1870
        %v1885 = vsel %vm1234, %v1819, 0
        %v1888 = vsel %vm1234, %v1820, 0
        %v1891 = vsel %vm1234, %v1821, 0
        %v1894 = vsel %vm1234, %v1822, 0
        %v1897 = vsel %vm1234, %v1823, 0
        %v1900 = vsel %vm1234, %v1824, 0
        %v1903 = vsel %vm1234, %v1825, 0
        %v1906 = vsel %vm1234, %v1826, 0
        %v1909 = vsel %vm1234, %v1827, 0
        %v1912 = vsel %vm1234, %v1828, 0
        %v1915 = vsel %vm1234, %v1829, 0
        %v1918 = vsel %vm1234, %v1830, 0
        %v1921 = vsel %vm1234, %v1831, 0
        %v1924 = vsel %vm1234, %v1832, 0
        %v1927 = vsel %vm1234, %v1833, 0
        %v1930 = vsel %vm1234, %v1834, 0
        %1932 = vmatpush.bf16.msra.mxu0 0
        %1933 = vmatpush.bf16.msra.mxu0 0
        %1934 = vmatpush.bf16.msra.mxu0 %v1877
        %1935 = vmatpush.bf16.msra.mxu0 %v1876
        %1936 = vmatpush.bf16.msra.mxu0 %v1875
        %1937 = vmatpush.bf16.msra.mxu0 %v1874
        %1938 = vmatpush.bf16.msra.mxu0 %v1873
        %1939 = vmatpush.bf16.msra.mxu0 %v1872
        %1940 = vmatmul.bf16.gmra.mxu0 %v1885
        %v1941 = vpop.f32.mrf.mxu0
        %v1942 = vadd.f32 0.0, %v1941
        %v1943 = vpop.f32.mrf.mxu0
        %v1944 = vadd.f32 0.0, %v1943
        %1945 = vmatmul.bf16.gmra.mxu0 %v1888
        %v1946 = vpop.f32.mrf.mxu0
        %v1947 = vadd.f32 0.0, %v1946
        %v1948 = vpop.f32.mrf.mxu0
        %v1949 = vadd.f32 0.0, %v1948
        %1950 = vmatmul.bf16.gmra.mxu0 %v1891
        %v1951 = vpop.f32.mrf.mxu0
        %v1952 = vadd.f32 0.0, %v1951
        %v1953 = vpop.f32.mrf.mxu0
        %v1954 = vadd.f32 0.0, %v1953
        %1955 = vmatmul.bf16.gmra.mxu0 %v1894
        %v1956 = vpop.f32.mrf.mxu0
        %v1957 = vadd.f32 0.0, %v1956
        %v1958 = vpop.f32.mrf.mxu0
        %v1959 = vadd.f32 0.0, %v1958
        %1960 = vmatmul.bf16.gmra.mxu0 %v1897
        %v1961 = vpop.f32.mrf.mxu0
        %v1962 = vadd.f32 0.0, %v1961
        %v1963 = vpop.f32.mrf.mxu0
        %v1964 = vadd.f32 0.0, %v1963
        %1965 = vmatmul.bf16.gmra.mxu0 %v1900
        %v1966 = vpop.f32.mrf.mxu0
        %v1967 = vadd.f32 0.0, %v1966
        %v1968 = vpop.f32.mrf.mxu0
        %v1969 = vadd.f32 0.0, %v1968
        %1970 = vmatmul.bf16.gmra.mxu0 %v1903
        %v1971 = vpop.f32.mrf.mxu0
        %v1972 = vadd.f32 0.0, %v1971
        %v1973 = vpop.f32.mrf.mxu0
        %v1974 = vadd.f32 0.0, %v1973
        %1975 = vmatmul.bf16.gmra.mxu0 %v1906
        %v1976 = vpop.f32.mrf.mxu0
        %v1977 = vadd.f32 0.0, %v1976
        %v1978 = vpop.f32.mrf.mxu0
        %v1979 = vadd.f32 0.0, %v1978
        %1980 = vmatmul.bf16.gmra.mxu0 %v1909
        %v1981 = vpop.f32.mrf.mxu0
        %v1982 = vadd.f32 0.0, %v1981
        %v1983 = vpop.f32.mrf.mxu0
        %v1984 = vadd.f32 0.0, %v1983
        %1985 = vmatmul.bf16.gmra.mxu0 %v1912
        %v1986 = vpop.f32.mrf.mxu0
        %v1987 = vadd.f32 0.0, %v1986
        %v1988 = vpop.f32.mrf.mxu0
        %v1989 = vadd.f32 0.0, %v1988
        %1990 = vmatmul.bf16.gmra.mxu0 %v1915
        %v1991 = vpop.f32.mrf.mxu0
        %v1992 = vadd.f32 0.0, %v1991
        %v1993 = vpop.f32.mrf.mxu0
        %v1994 = vadd.f32 0.0, %v1993
        %1995 = vmatmul.bf16.gmra.mxu0 %v1918
        %v1996 = vpop.f32.mrf.mxu0
        %v1997 = vadd.f32 0.0, %v1996
        %v1998 = vpop.f32.mrf.mxu0
        %v1999 = vadd.f32 0.0, %v1998
        %2000 = vmatmul.bf16.gmra.mxu0 %v1921
        %v2001 = vpop.f32.mrf.mxu0
        %v2002 = vadd.f32 0.0, %v2001
        %v2003 = vpop.f32.mrf.mxu0
        %v2004 = vadd.f32 0.0, %v2003
        %2005 = vmatmul.bf16.gmra.mxu0 %v1924
        %v2006 = vpop.f32.mrf.mxu0
        %v2007 = vadd.f32 0.0, %v2006
        %v2008 = vpop.f32.mrf.mxu0
        %v2009 = vadd.f32 0.0, %v2008
        %2010 = vmatmul.bf16.gmra.mxu0 %v1927
        %v2011 = vpop.f32.mrf.mxu0
        %v2012 = vadd.f32 0.0, %v2011
        %v2013 = vpop.f32.mrf.mxu0
        %v2014 = vadd.f32 0.0, %v2013
        %2015 = vmatmul.bf16.gmra.mxu0 %v1930
        %v2016 = vpop.f32.mrf.mxu0
        %v2017 = vadd.f32 0.0, %v2016
        %v2018 = vpop.f32.mrf.mxu0
        %v2019 = vadd.f32 0.0, %v2018
        %2020 = vdwg.mxu0
        %v2021 = vadd.f32 %v1466, %v1942
        %v2022 = vadd.f32 %v1468, %v1944
        %v2023 = vadd.f32 %v1471, %v1947
        %v2024 = vadd.f32 %v1473, %v1949
        %v2025 = vadd.f32 %v1476, %v1952
        %v2026 = vadd.f32 %v1478, %v1954
        %v2027 = vadd.f32 %v1481, %v1957
        %v2028 = vadd.f32 %v1483, %v1959
        %v2029 = vadd.f32 %v1486, %v1962
        %v2030 = vadd.f32 %v1488, %v1964
        %v2031 = vadd.f32 %v1491, %v1967
        %v2032 = vadd.f32 %v1493, %v1969
        %v2033 = vadd.f32 %v1496, %v1972
        %v2034 = vadd.f32 %v1498, %v1974
        %v2035 = vadd.f32 %v1501, %v1977
        %v2036 = vadd.f32 %v1503, %v1979
        %v2037 = vadd.f32 %v1506, %v1982
        %v2038 = vadd.f32 %v1508, %v1984
        %v2039 = vadd.f32 %v1511, %v1987
        %v2040 = vadd.f32 %v1513, %v1989
        %v2041 = vadd.f32 %v1516, %v1992
        %v2042 = vadd.f32 %v1518, %v1994
        %v2043 = vadd.f32 %v1521, %v1997
        %v2044 = vadd.f32 %v1523, %v1999
        %v2045 = vadd.f32 %v1526, %v2002
        %v2046 = vadd.f32 %v1528, %v2004
        %v2047 = vadd.f32 %v1531, %v2007
        %v2048 = vadd.f32 %v1533, %v2009
        %v2049 = vadd.f32 %v1536, %v2012
        %v2050 = vadd.f32 %v1538, %v2014
        %v2051 = vadd.f32 %v1541, %v2017
        %v2052 = vadd.f32 %v1543, %v2019
        %v2053 = vld [vmem:[%s2] sm:$0x1]
        %v2055 = vperm.slane %v2053, 0
        %v2057 = vadd.f32 %v2021, %v2055
        %v2058 = vadd.f32 %v2022, %v2055
        %v2059 = vadd.f32 %v2023, %v2055
        %v2060 = vadd.f32 %v2024, %v2055
        %v2061 = vadd.f32 %v2025, %v2055
        %v2062 = vadd.f32 %v2026, %v2055
        %v2063 = vadd.f32 %v2027, %v2055
        %v2064 = vadd.f32 %v2028, %v2055
        %v2065 = vadd.f32 %v2029, %v2055
        %v2066 = vadd.f32 %v2030, %v2055
        %v2067 = vadd.f32 %v2031, %v2055
        %v2068 = vadd.f32 %v2032, %v2055
        %v2069 = vadd.f32 %v2033, %v2055
        %v2070 = vadd.f32 %v2034, %v2055
        %v2071 = vadd.f32 %v2035, %v2055
        %v2072 = vadd.f32 %v2036, %v2055
        %v2073 = vadd.f32 %v2037, %v2055
        %v2074 = vadd.f32 %v2038, %v2055
        %v2075 = vadd.f32 %v2039, %v2055
        %v2076 = vadd.f32 %v2040, %v2055
        %v2077 = vadd.f32 %v2041, %v2055
        %v2078 = vadd.f32 %v2042, %v2055
        %v2079 = vadd.f32 %v2043, %v2055
        %v2080 = vadd.f32 %v2044, %v2055
        %v2081 = vadd.f32 %v2045, %v2055
        %v2082 = vadd.f32 %v2046, %v2055
        %v2083 = vadd.f32 %v2047, %v2055
        %v2084 = vadd.f32 %v2048, %v2055
        %v2085 = vadd.f32 %v2049, %v2055
        %v2086 = vadd.f32 %v2050, %v2055
        %v2087 = vadd.f32 %v2051, %v2055
        %v2088 = vadd.f32 %v2052, %v2055
        %v2089 = vmax.f32 %v2057, 0.0
        %v2090 = vmax.f32 %v2058, 0.0
        %v2091 = vmax.f32 %v2059, 0.0
        %v2092 = vmax.f32 %v2060, 0.0
        %v2093 = vmax.f32 %v2061, 0.0
        %v2094 = vmax.f32 %v2062, 0.0
        %v2095 = vmax.f32 %v2063, 0.0
        %v2096 = vmax.f32 %v2064, 0.0
        %v2097 = vmax.f32 %v2065, 0.0
        %v2098 = vmax.f32 %v2066, 0.0
        %v2099 = vmax.f32 %v2067, 0.0
        %v2100 = vmax.f32 %v2068, 0.0
        %v2101 = vmax.f32 %v2069, 0.0
        %v2102 = vmax.f32 %v2070, 0.0
        %v2103 = vmax.f32 %v2071, 0.0
        %v2104 = vmax.f32 %v2072, 0.0
        %v2105 = vmax.f32 %v2073, 0.0
        %v2106 = vmax.f32 %v2074, 0.0
        %v2107 = vmax.f32 %v2075, 0.0
        %v2108 = vmax.f32 %v2076, 0.0
        %v2109 = vmax.f32 %v2077, 0.0
        %v2110 = vmax.f32 %v2078, 0.0
        %v2111 = vmax.f32 %v2079, 0.0
        %v2112 = vmax.f32 %v2080, 0.0
        %v2113 = vmax.f32 %v2081, 0.0
        %v2114 = vmax.f32 %v2082, 0.0
        %v2115 = vmax.f32 %v2083, 0.0
        %v2116 = vmax.f32 %v2084, 0.0
        %v2117 = vmax.f32 %v2085, 0.0
        %v2118 = vmax.f32 %v2086, 0.0
        %v2119 = vmax.f32 %v2087, 0.0
        %v2120 = vmax.f32 %v2088, 0.0
        %s2121 = scalar_lea.vmem [#allocation3], 32
        %2122 = vst.msk [vmem:[%s2121 + $0x8] sm:$0xff] %vm315, %v2089
        %2123 = vst.msk [vmem:[%s2121 + $0x10] sm:$0xff] %vm315, %v2090
        %2124 = vst.msk [vmem:[%s2121 + $0x28] sm:$0xff] %vm315, %v2091
        %2125 = vst.msk [vmem:[%s2121 + $0x30] sm:$0xff] %vm315, %v2092
        %2126 = vst.msk [vmem:[%s2121 + $0x48] sm:$0xff] %vm315, %v2093
        %2127 = vst.msk [vmem:[%s2121 + $0x50] sm:$0xff] %vm315, %v2094
        %2128 = vst.msk [vmem:[%s2121 + $0x68] sm:$0xff] %vm315, %v2095
        %2129 = vst.msk [vmem:[%s2121 + $0x70] sm:$0xff] %vm315, %v2096
        %2130 = vst.msk [vmem:[%s2121 + $0x88] sm:$0xff] %vm315, %v2097
        %2131 = vst.msk [vmem:[%s2121 + $0x90] sm:$0xff] %vm315, %v2098
        %2132 = vst.msk [vmem:[%s2121 + $0xa8] sm:$0xff] %vm315, %v2099
        %2133 = vst.msk [vmem:[%s2121 + $0xb0] sm:$0xff] %vm315, %v2100
        %2134 = vst.msk [vmem:[%s2121 + $0xc8] sm:$0xff] %vm315, %v2101
        %2135 = vst.msk [vmem:[%s2121 + $0xd0] sm:$0xff] %vm315, %v2102
        %2136 = vst.msk [vmem:[%s2121 + $0xe8] sm:$0xff] %vm315, %v2103
        %2137 = vst.msk [vmem:[%s2121 + $0xf0] sm:$0xff] %vm315, %v2104
        %2138 = vst.msk [vmem:[%s2121 + $0x108] sm:$0xff] %vm315, %v2105
        %2139 = vst.msk [vmem:[%s2121 + $0x110] sm:$0xff] %vm315, %v2106
        %2140 = vst.msk [vmem:[%s2121 + $0x128] sm:$0xff] %vm315, %v2107
        %2141 = vst.msk [vmem:[%s2121 + $0x130] sm:$0xff] %vm315, %v2108
        %2142 = vst.msk [vmem:[%s2121 + $0x148] sm:$0xff] %vm315, %v2109
        %2143 = vst.msk [vmem:[%s2121 + $0x150] sm:$0xff] %vm315, %v2110
        %2144 = vst.msk [vmem:[%s2121 + $0x168] sm:$0xff] %vm315, %v2111
        %2145 = vst.msk [vmem:[%s2121 + $0x170] sm:$0xff] %vm315, %v2112
        %2146 = vst.msk [vmem:[%s2121 + $0x188] sm:$0xff] %vm315, %v2113
        %2147 = vst.msk [vmem:[%s2121 + $0x190] sm:$0xff] %vm315, %v2114
        %2148 = vst.msk [vmem:[%s2121 + $0x1a8] sm:$0xff] %vm315, %v2115
        %2149 = vst.msk [vmem:[%s2121 + $0x1b0] sm:$0xff] %vm315, %v2116
        %2150 = vst.msk [vmem:[%s2121 + $0x1c8] sm:$0xff] %vm315, %v2117
        %2151 = vst.msk [vmem:[%s2121 + $0x1d0] sm:$0xff] %vm315, %v2118
        %2152 = vst.msk [vmem:[%s2121 + $0x1e8] sm:$0xff] %vm315, %v2119
        %2153 = vst.msk [vmem:[%s2121 + $0x1f0] sm:$0xff] %vm315, %v2120
        %v2154 = vld [vmem:[#allocation3] sm:$0xff]
        %v2155 = vld [vmem:[#allocation3 + $0x8] sm:$0xff]
        %v2156 = vld [vmem:[#allocation3 + $0x10] sm:$0xff]
        %v2157 = vld [vmem:[#allocation3 + $0x18] sm:$0xff]
        %v2158 = vld [vmem:[#allocation3 + $0x20] sm:$0xff]
        %v2159 = vld [vmem:[#allocation3 + $0x28] sm:$0xff]
        %v2160 = vld [vmem:[#allocation3 + $0x30] sm:$0xff]
        %v2161 = vld [vmem:[#allocation3 + $0x38] sm:$0xff]
        %v2162 = vld [vmem:[#allocation3 + $0x40] sm:$0xff]
        %v2163 = vld [vmem:[#allocation3 + $0x48] sm:$0xff]
        %v2164 = vld [vmem:[#allocation3 + $0x50] sm:$0xff]
        %v2165 = vld [vmem:[#allocation3 + $0x58] sm:$0xff]
        %v2166 = vld [vmem:[#allocation3 + $0x60] sm:$0xff]
        %v2167 = vld [vmem:[#allocation3 + $0x68] sm:$0xff]
        %v2168 = vld [vmem:[#allocation3 + $0x70] sm:$0xff]
        %v2169 = vld [vmem:[#allocation3 + $0x78] sm:$0xff]
        %v2170 = vld [vmem:[#allocation3 + $0x80] sm:$0xff]
        %v2171 = vld [vmem:[#allocation3 + $0x88] sm:$0xff]
        %v2172 = vld [vmem:[#allocation3 + $0x90] sm:$0xff]
        %v2173 = vld [vmem:[#allocation3 + $0x98] sm:$0xff]
        %v2174 = vld [vmem:[#allocation3 + $0xa0] sm:$0xff]
        %v2175 = vld [vmem:[#allocation3 + $0xa8] sm:$0xff]
        %v2176 = vld [vmem:[#allocation3 + $0xb0] sm:$0xff]
        %v2177 = vld [vmem:[#allocation3 + $0xb8] sm:$0xff]
        %v2178 = vld [vmem:[#allocation3 + $0xc0] sm:$0xff]
        %v2179 = vld [vmem:[#allocation3 + $0xc8] sm:$0xff]
        %v2180 = vld [vmem:[#allocation3 + $0xd0] sm:$0xff]
        %v2181 = vld [vmem:[#allocation3 + $0xd8] sm:$0xff]
        %v2182 = vld [vmem:[#allocation3 + $0xe0] sm:$0xff]
        %v2183 = vld [vmem:[#allocation3 + $0xe8] sm:$0xff]
        %v2184 = vld [vmem:[#allocation3 + $0xf0] sm:$0xff]
        %v2185 = vld [vmem:[#allocation3 + $0xf8] sm:$0xff]
        %v2186 = vld [vmem:[#allocation3 + $0x100] sm:$0xff]
        %v2187 = vld [vmem:[#allocation3 + $0x108] sm:$0xff]
        %v2188 = vld [vmem:[#allocation3 + $0x110] sm:$0xff]
        %v2189 = vld [vmem:[#allocation3 + $0x118] sm:$0xff]
        %v2190 = vld [vmem:[#allocation3 + $0x120] sm:$0xff]
        %v2191 = vld [vmem:[#allocation3 + $0x128] sm:$0xff]
        %v2192 = vld [vmem:[#allocation3 + $0x130] sm:$0xff]
        %v2193 = vld [vmem:[#allocation3 + $0x138] sm:$0xff]
        %v2194 = vld [vmem:[#allocation3 + $0x140] sm:$0xff]
        %v2195 = vld [vmem:[#allocation3 + $0x148] sm:$0xff]
        %v2196 = vld [vmem:[#allocation3 + $0x150] sm:$0xff]
        %v2197 = vld [vmem:[#allocation3 + $0x158] sm:$0xff]
        %v2198 = vld [vmem:[#allocation3 + $0x160] sm:$0xff]
        %v2199 = vld [vmem:[#allocation3 + $0x168] sm:$0xff]
        %v2200 = vld [vmem:[#allocation3 + $0x170] sm:$0xff]
        %v2201 = vld [vmem:[#allocation3 + $0x178] sm:$0xff]
        %v2202 = vld [vmem:[#allocation3 + $0x180] sm:$0xff]
        %v2203 = vld [vmem:[#allocation3 + $0x188] sm:$0xff]
        %v2204 = vld [vmem:[#allocation3 + $0x190] sm:$0xff]
        %v2205 = vld [vmem:[#allocation3 + $0x198] sm:$0xff]
        %v2206 = vld [vmem:[#allocation3 + $0x1a0] sm:$0xff]
        %v2207 = vld [vmem:[#allocation3 + $0x1a8] sm:$0xff]
        %v2208 = vld [vmem:[#allocation3 + $0x1b0] sm:$0xff]
        %v2209 = vld [vmem:[#allocation3 + $0x1b8] sm:$0xff]
        %v2210 = vld [vmem:[#allocation3 + $0x1c0] sm:$0xff]
        %v2211 = vld [vmem:[#allocation3 + $0x1c8] sm:$0xff]
        %v2212 = vld [vmem:[#allocation3 + $0x1d0] sm:$0xff]
        %v2213 = vld [vmem:[#allocation3 + $0x1d8] sm:$0xff]
        %v2214 = vld [vmem:[#allocation3 + $0x1e0] sm:$0xff]
        %v2215 = vld [vmem:[#allocation3 + $0x1e8] sm:$0xff]
        %v2216 = vld [vmem:[#allocation3 + $0x1f0] sm:$0xff]
        %v2217 = vld [vmem:[#allocation3 + $0x1f8] sm:$0xff]
        %v2218 = vld [vmem:[#allocation3 + $0x200] sm:$0xff]
        %v2219 = vld [vmem:[#allocation3 + $0x208] sm:$0xff]
        %v2220 = vld [vmem:[#allocation3 + $0x210] sm:$0xff]
        %v2221 = vld [vmem:[#allocation3 + $0x218] sm:$0xff]
        %v2222 = vld [vmem:[#allocation3 + $0x220] sm:$0xff]
        %v2223 = vld [vmem:[#allocation3 + $0x228] sm:$0xff]
        %v2224 = vld [vmem:[#allocation3 + $0x230] sm:$0xff]
        %v2225 = vld [vmem:[#allocation3 + $0x238] sm:$0xff]
        %2274 = vrot.lane.b32.xlu0 %v2158, 32
        %v2275 = vpop.permute.xlu0 %2274
        %2276 = vrot.lane.b32.xlu0 %v2159, 32
        %v2277 = vpop.permute.xlu0 %2276
        %2278 = vrot.lane.b32.xlu0 %v2160, 32
        %v2279 = vpop.permute.xlu0 %2278
        %2280 = vrot.lane.b32.xlu0 %v2162, 32
        %v2281 = vpop.permute.xlu0 %2280
        %2282 = vrot.lane.b32.xlu0 %v2163, 32
        %v2283 = vpop.permute.xlu0 %2282
        %2284 = vrot.lane.b32.xlu0 %v2164, 32
        %v2285 = vpop.permute.xlu0 %2284
        %2286 = vrot.lane.b32.xlu0 %v2166, 32
        %v2287 = vpop.permute.xlu0 %2286
        %2288 = vrot.lane.b32.xlu0 %v2167, 32
        %v2289 = vpop.permute.xlu0 %2288
        %2290 = vrot.lane.b32.xlu0 %v2168, 32
        %v2291 = vpop.permute.xlu0 %2290
        %2292 = vrot.lane.b32.xlu0 %v2170, 32
        %v2293 = vpop.permute.xlu0 %2292
        %2294 = vrot.lane.b32.xlu0 %v2171, 32
        %v2295 = vpop.permute.xlu0 %2294
        %2296 = vrot.lane.b32.xlu0 %v2172, 32
        %v2297 = vpop.permute.xlu0 %2296
        %2298 = vrot.lane.b32.xlu0 %v2174, 32
        %v2299 = vpop.permute.xlu0 %2298
        %2300 = vrot.lane.b32.xlu0 %v2175, 32
        %v2301 = vpop.permute.xlu0 %2300
        %2302 = vrot.lane.b32.xlu0 %v2176, 32
        %v2303 = vpop.permute.xlu0 %2302
        %2304 = vrot.lane.b32.xlu0 %v2178, 32
        %v2305 = vpop.permute.xlu0 %2304
        %2306 = vrot.lane.b32.xlu0 %v2179, 32
        %v2307 = vpop.permute.xlu0 %2306
        %2308 = vrot.lane.b32.xlu0 %v2180, 32
        %v2309 = vpop.permute.xlu0 %2308
        %2310 = vrot.lane.b32.xlu0 %v2182, 32
        %v2311 = vpop.permute.xlu0 %2310
        %2312 = vrot.lane.b32.xlu0 %v2183, 32
        %v2313 = vpop.permute.xlu0 %2312
        %2314 = vrot.lane.b32.xlu0 %v2184, 32
        %v2315 = vpop.permute.xlu0 %2314
        %2316 = vrot.lane.b32.xlu0 %v2186, 32
        %v2317 = vpop.permute.xlu0 %2316
        %2318 = vrot.lane.b32.xlu0 %v2187, 32
        %v2319 = vpop.permute.xlu0 %2318
        %2320 = vrot.lane.b32.xlu0 %v2188, 32
        %v2321 = vpop.permute.xlu0 %2320
        %2322 = vrot.lane.b32.xlu0 %v2190, 32
        %v2323 = vpop.permute.xlu0 %2322
        %2324 = vrot.lane.b32.xlu0 %v2191, 32
        %v2325 = vpop.permute.xlu0 %2324
        %2326 = vrot.lane.b32.xlu0 %v2192, 32
        %v2327 = vpop.permute.xlu0 %2326
        %2328 = vrot.lane.b32.xlu0 %v2194, 32
        %v2329 = vpop.permute.xlu0 %2328
        %2330 = vrot.lane.b32.xlu0 %v2195, 32
        %v2331 = vpop.permute.xlu0 %2330
        %2332 = vrot.lane.b32.xlu0 %v2196, 32
        %v2333 = vpop.permute.xlu0 %2332
        %2334 = vrot.lane.b32.xlu0 %v2198, 32
        %v2335 = vpop.permute.xlu0 %2334
        %2336 = vrot.lane.b32.xlu0 %v2199, 32
        %v2337 = vpop.permute.xlu0 %2336
        %2338 = vrot.lane.b32.xlu0 %v2200, 32
        %v2339 = vpop.permute.xlu0 %2338
        %2340 = vrot.lane.b32.xlu0 %v2202, 32
        %v2341 = vpop.permute.xlu0 %2340
        %2342 = vrot.lane.b32.xlu0 %v2203, 32
        %v2343 = vpop.permute.xlu0 %2342
        %2344 = vrot.lane.b32.xlu0 %v2204, 32
        %v2345 = vpop.permute.xlu0 %2344
        %2346 = vrot.lane.b32.xlu0 %v2206, 32
        %v2347 = vpop.permute.xlu0 %2346
        %2348 = vrot.lane.b32.xlu0 %v2207, 32
        %v2349 = vpop.permute.xlu0 %2348
        %2350 = vrot.lane.b32.xlu0 %v2208, 32
        %v2351 = vpop.permute.xlu0 %2350
        %2352 = vrot.lane.b32.xlu0 %v2210, 32
        %v2353 = vpop.permute.xlu0 %2352
        %2354 = vrot.lane.b32.xlu0 %v2211, 32
        %v2355 = vpop.permute.xlu0 %2354
        %2356 = vrot.lane.b32.xlu0 %v2212, 32
        %v2357 = vpop.permute.xlu0 %2356
        %2358 = vrot.lane.b32.xlu0 %v2214, 32
        %v2359 = vpop.permute.xlu0 %2358
        %2360 = vrot.lane.b32.xlu0 %v2215, 32
        %v2361 = vpop.permute.xlu0 %2360
        %2362 = vrot.lane.b32.xlu0 %v2216, 32
        %v2363 = vpop.permute.xlu0 %2362
        %2364 = vrot.lane.b32.xlu0 %v2218, 32
        %v2365 = vpop.permute.xlu0 %2364
        %2366 = vrot.lane.b32.xlu0 %v2219, 32
        %v2367 = vpop.permute.xlu0 %2366
        %2368 = vrot.lane.b32.xlu0 %v2220, 32
        %v2369 = vpop.permute.xlu0 %2368
        %2421 = vrot.lane.b32.xlu0 %v2162, 64
        %v2422 = vpop.permute.xlu0 %2421
        %2423 = vrot.lane.b32.xlu0 %v2163, 64
        %v2424 = vpop.permute.xlu0 %2423
        %2425 = vrot.lane.b32.xlu0 %v2164, 64
        %v2426 = vpop.permute.xlu0 %2425
        %2427 = vrot.lane.b32.xlu0 %v2166, 64
        %v2428 = vpop.permute.xlu0 %2427
        %2429 = vrot.lane.b32.xlu0 %v2167, 64
        %v2430 = vpop.permute.xlu0 %2429
        %2431 = vrot.lane.b32.xlu0 %v2168, 64
        %v2432 = vpop.permute.xlu0 %2431
        %2433 = vrot.lane.b32.xlu0 %v2170, 64
        %v2434 = vpop.permute.xlu0 %2433
        %2435 = vrot.lane.b32.xlu0 %v2171, 64
        %v2436 = vpop.permute.xlu0 %2435
        %2437 = vrot.lane.b32.xlu0 %v2172, 64
        %v2438 = vpop.permute.xlu0 %2437
        %2439 = vrot.lane.b32.xlu0 %v2174, 64
        %v2440 = vpop.permute.xlu0 %2439
        %2441 = vrot.lane.b32.xlu0 %v2175, 64
        %v2442 = vpop.permute.xlu0 %2441
        %2443 = vrot.lane.b32.xlu0 %v2176, 64
        %v2444 = vpop.permute.xlu0 %2443
        %2445 = vrot.lane.b32.xlu0 %v2178, 64
        %v2446 = vpop.permute.xlu0 %2445
        %2447 = vrot.lane.b32.xlu0 %v2179, 64
        %v2448 = vpop.permute.xlu0 %2447
        %2449 = vrot.lane.b32.xlu0 %v2180, 64
        %v2450 = vpop.permute.xlu0 %2449
        %2451 = vrot.lane.b32.xlu0 %v2182, 64
        %v2452 = vpop.permute.xlu0 %2451
        %2453 = vrot.lane.b32.xlu0 %v2183, 64
        %v2454 = vpop.permute.xlu0 %2453
        %2455 = vrot.lane.b32.xlu0 %v2184, 64
        %v2456 = vpop.permute.xlu0 %2455
        %2457 = vrot.lane.b32.xlu0 %v2186, 64
        %v2458 = vpop.permute.xlu0 %2457
        %2459 = vrot.lane.b32.xlu0 %v2187, 64
        %v2460 = vpop.permute.xlu0 %2459
        %2461 = vrot.lane.b32.xlu0 %v2188, 64
        %v2462 = vpop.permute.xlu0 %2461
        %2463 = vrot.lane.b32.xlu0 %v2190, 64
        %v2464 = vpop.permute.xlu0 %2463
        %2465 = vrot.lane.b32.xlu0 %v2191, 64
        %v2466 = vpop.permute.xlu0 %2465
        %2467 = vrot.lane.b32.xlu0 %v2192, 64
        %v2468 = vpop.permute.xlu0 %2467
        %2469 = vrot.lane.b32.xlu0 %v2194, 64
        %v2470 = vpop.permute.xlu0 %2469
        %2471 = vrot.lane.b32.xlu0 %v2195, 64
        %v2472 = vpop.permute.xlu0 %2471
        %2473 = vrot.lane.b32.xlu0 %v2196, 64
        %v2474 = vpop.permute.xlu0 %2473
        %2475 = vrot.lane.b32.xlu0 %v2198, 64
        %v2476 = vpop.permute.xlu0 %2475
        %2477 = vrot.lane.b32.xlu0 %v2199, 64
        %v2478 = vpop.permute.xlu0 %2477
        %2479 = vrot.lane.b32.xlu0 %v2200, 64
        %v2480 = vpop.permute.xlu0 %2479
        %2481 = vrot.lane.b32.xlu0 %v2202, 64
        %v2482 = vpop.permute.xlu0 %2481
        %2483 = vrot.lane.b32.xlu0 %v2203, 64
        %v2484 = vpop.permute.xlu0 %2483
        %2485 = vrot.lane.b32.xlu0 %v2204, 64
        %v2486 = vpop.permute.xlu0 %2485
        %2487 = vrot.lane.b32.xlu0 %v2206, 64
        %v2488 = vpop.permute.xlu0 %2487
        %2489 = vrot.lane.b32.xlu0 %v2207, 64
        %v2490 = vpop.permute.xlu0 %2489
        %2491 = vrot.lane.b32.xlu0 %v2208, 64
        %v2492 = vpop.permute.xlu0 %2491
        %2493 = vrot.lane.b32.xlu0 %v2210, 64
        %v2494 = vpop.permute.xlu0 %2493
        %2495 = vrot.lane.b32.xlu0 %v2211, 64
        %v2496 = vpop.permute.xlu0 %2495
        %2497 = vrot.lane.b32.xlu0 %v2212, 64
        %v2498 = vpop.permute.xlu0 %2497
        %2499 = vrot.lane.b32.xlu0 %v2214, 64
        %v2500 = vpop.permute.xlu0 %2499
        %2501 = vrot.lane.b32.xlu0 %v2215, 64
        %v2502 = vpop.permute.xlu0 %2501
        %2503 = vrot.lane.b32.xlu0 %v2216, 64
        %v2504 = vpop.permute.xlu0 %2503
        %2505 = vrot.lane.b32.xlu0 %v2218, 64
        %v2506 = vpop.permute.xlu0 %2505
        %2507 = vrot.lane.b32.xlu0 %v2219, 64
        %v2508 = vpop.permute.xlu0 %2507
        %2509 = vrot.lane.b32.xlu0 %v2220, 64
        %v2510 = vpop.permute.xlu0 %2509
        %2511 = vrot.lane.b32.xlu0 %v2222, 64
        %v2512 = vpop.permute.xlu0 %2511
        %2513 = vrot.lane.b32.xlu0 %v2223, 64
        %v2514 = vpop.permute.xlu0 %2513
        %2515 = vrot.lane.b32.xlu0 %v2224, 64
        %v2516 = vpop.permute.xlu0 %2515
        %v2565 = vsel %vm315, %v2154, %v2275
        %v2566 = vsel %vm315, %v2155, %v2277
        %v2567 = vsel %vm315, %v2156, %v2279
        %v2568 = vsel %vm315, %v2158, %v2281
        %v2569 = vsel %vm315, %v2159, %v2283
        %v2570 = vsel %vm315, %v2160, %v2285
        %v2571 = vsel %vm315, %v2162, %v2287
        %v2572 = vsel %vm315, %v2163, %v2289
        %v2573 = vsel %vm315, %v2164, %v2291
        %v2574 = vsel %vm315, %v2166, %v2293
        %v2575 = vsel %vm315, %v2167, %v2295
        %v2576 = vsel %vm315, %v2168, %v2297
        %v2577 = vsel %vm315, %v2170, %v2299
        %v2578 = vsel %vm315, %v2171, %v2301
        %v2579 = vsel %vm315, %v2172, %v2303
        %v2580 = vsel %vm315, %v2174, %v2305
        %v2581 = vsel %vm315, %v2175, %v2307
        %v2582 = vsel %vm315, %v2176, %v2309
        %v2583 = vsel %vm315, %v2178, %v2311
        %v2584 = vsel %vm315, %v2179, %v2313
        %v2585 = vsel %vm315, %v2180, %v2315
        %v2586 = vsel %vm315, %v2182, %v2317
        %v2587 = vsel %vm315, %v2183, %v2319
        %v2588 = vsel %vm315, %v2184, %v2321
        %v2589 = vsel %vm315, %v2186, %v2323
        %v2590 = vsel %vm315, %v2187, %v2325
        %v2591 = vsel %vm315, %v2188, %v2327
        %v2592 = vsel %vm315, %v2190, %v2329
        %v2593 = vsel %vm315, %v2191, %v2331
        %v2594 = vsel %vm315, %v2192, %v2333
        %v2595 = vsel %vm315, %v2194, %v2335
        %v2596 = vsel %vm315, %v2195, %v2337
        %v2597 = vsel %vm315, %v2196, %v2339
        %v2598 = vsel %vm315, %v2198, %v2341
        %v2599 = vsel %vm315, %v2199, %v2343
        %v2600 = vsel %vm315, %v2200, %v2345
        %v2601 = vsel %vm315, %v2202, %v2347
        %v2602 = vsel %vm315, %v2203, %v2349
        %v2603 = vsel %vm315, %v2204, %v2351
        %v2604 = vsel %vm315, %v2206, %v2353
        %v2605 = vsel %vm315, %v2207, %v2355
        %v2606 = vsel %vm315, %v2208, %v2357
        %v2607 = vsel %vm315, %v2210, %v2359
        %v2608 = vsel %vm315, %v2211, %v2361
        %v2609 = vsel %vm315, %v2212, %v2363
        %v2610 = vsel %vm315, %v2214, %v2365
        %v2611 = vsel %vm315, %v2215, %v2367
        %v2612 = vsel %vm315, %v2216, %v2369
        %v2613 = vsel %vm931, %v2565, %v2422
        %v2614 = vsel %vm931, %v2566, %v2424
        %v2615 = vsel %vm931, %v2567, %v2426
        %v2616 = vsel %vm931, %v2568, %v2428
        %v2617 = vsel %vm931, %v2569, %v2430
        %v2618 = vsel %vm931, %v2570, %v2432
        %v2619 = vsel %vm931, %v2571, %v2434
        %v2620 = vsel %vm931, %v2572, %v2436
        %v2621 = vsel %vm931, %v2573, %v2438
        %v2622 = vsel %vm931, %v2574, %v2440
        %v2623 = vsel %vm931, %v2575, %v2442
        %v2624 = vsel %vm931, %v2576, %v2444
        %v2625 = vsel %vm931, %v2577, %v2446
        %v2626 = vsel %vm931, %v2578, %v2448
        %v2627 = vsel %vm931, %v2579, %v2450
        %v2628 = vsel %vm931, %v2580, %v2452
        %v2629 = vsel %vm931, %v2581, %v2454
        %v2630 = vsel %vm931, %v2582, %v2456
        %v2631 = vsel %vm931, %v2583, %v2458
        %v2632 = vsel %vm931, %v2584, %v2460
        %v2633 = vsel %vm931, %v2585, %v2462
        %v2634 = vsel %vm931, %v2586, %v2464
        %v2635 = vsel %vm931, %v2587, %v2466
        %v2636 = vsel %vm931, %v2588, %v2468
        %v2637 = vsel %vm931, %v2589, %v2470
        %v2638 = vsel %vm931, %v2590, %v2472
        %v2639 = vsel %vm931, %v2591, %v2474
        %v2640 = vsel %vm931, %v2592, %v2476
        %v2641 = vsel %vm931, %v2593, %v2478
        %v2642 = vsel %vm931, %v2594, %v2480
        %v2643 = vsel %vm931, %v2595, %v2482
        %v2644 = vsel %vm931, %v2596, %v2484
        %v2645 = vsel %vm931, %v2597, %v2486
        %v2646 = vsel %vm931, %v2598, %v2488
        %v2647 = vsel %vm931, %v2599, %v2490
        %v2648 = vsel %vm931, %v2600, %v2492
        %v2649 = vsel %vm931, %v2601, %v2494
        %v2650 = vsel %vm931, %v2602, %v2496
        %v2651 = vsel %vm931, %v2603, %v2498
        %v2652 = vsel %vm931, %v2604, %v2500
        %v2653 = vsel %vm931, %v2605, %v2502
        %v2654 = vsel %vm931, %v2606, %v2504
        %v2655 = vsel %vm931, %v2607, %v2506
        %v2656 = vsel %vm931, %v2608, %v2508
        %v2657 = vsel %vm931, %v2609, %v2510
        %v2658 = vsel %vm931, %v2610, %v2512
        %v2659 = vsel %vm931, %v2611, %v2514
        %v2660 = vsel %vm931, %v2612, %v2516
        %v2709 = vrot.slane %v2613, 7
        %v2710 = vrot.slane %v2614, 7
        %v2711 = vsel %vm1028, %v2709, %v2710
        %v2712 = vrot.slane %v2615, 7
        %v2713 = vsel %vm1028, %v2710, %v2712
        %v2714 = vrot.slane %v2616, 7
        %v2715 = vrot.slane %v2617, 7
        %v2716 = vsel %vm1028, %v2714, %v2715
        %v2717 = vrot.slane %v2618, 7
        %v2718 = vsel %vm1028, %v2715, %v2717
        %v2719 = vrot.slane %v2619, 7
        %v2720 = vrot.slane %v2620, 7
        %v2721 = vsel %vm1028, %v2719, %v2720
        %v2722 = vrot.slane %v2621, 7
        %v2723 = vsel %vm1028, %v2720, %v2722
        %v2724 = vrot.slane %v2622, 7
        %v2725 = vrot.slane %v2623, 7
        %v2726 = vsel %vm1028, %v2724, %v2725
        %v2727 = vrot.slane %v2624, 7
        %v2728 = vsel %vm1028, %v2725, %v2727
        %v2729 = vrot.slane %v2625, 7
        %v2730 = vrot.slane %v2626, 7
        %v2731 = vsel %vm1028, %v2729, %v2730
        %v2732 = vrot.slane %v2627, 7
        %v2733 = vsel %vm1028, %v2730, %v2732
        %v2734 = vrot.slane %v2628, 7
        %v2735 = vrot.slane %v2629, 7
        %v2736 = vsel %vm1028, %v2734, %v2735
        %v2737 = vrot.slane %v2630, 7
        %v2738 = vsel %vm1028, %v2735, %v2737
        %v2739 = vrot.slane %v2631, 7
        %v2740 = vrot.slane %v2632, 7
        %v2741 = vsel %vm1028, %v2739, %v2740
        %v2742 = vrot.slane %v2633, 7
        %v2743 = vsel %vm1028, %v2740, %v2742
        %v2744 = vrot.slane %v2634, 7
        %v2745 = vrot.slane %v2635, 7
        %v2746 = vsel %vm1028, %v2744, %v2745
        %v2747 = vrot.slane %v2636, 7
        %v2748 = vsel %vm1028, %v2745, %v2747
        %v2749 = vrot.slane %v2637, 7
        %v2750 = vrot.slane %v2638, 7
        %v2751 = vsel %vm1028, %v2749, %v2750
        %v2752 = vrot.slane %v2639, 7
        %v2753 = vsel %vm1028, %v2750, %v2752
        %v2754 = vrot.slane %v2640, 7
        %v2755 = vrot.slane %v2641, 7
        %v2756 = vsel %vm1028, %v2754, %v2755
        %v2757 = vrot.slane %v2642, 7
        %v2758 = vsel %vm1028, %v2755, %v2757
        %v2759 = vrot.slane %v2643, 7
        %v2760 = vrot.slane %v2644, 7
        %v2761 = vsel %vm1028, %v2759, %v2760
        %v2762 = vrot.slane %v2645, 7
        %v2763 = vsel %vm1028, %v2760, %v2762
        %v2764 = vrot.slane %v2646, 7
        %v2765 = vrot.slane %v2647, 7
        %v2766 = vsel %vm1028, %v2764, %v2765
        %v2767 = vrot.slane %v2648, 7
        %v2768 = vsel %vm1028, %v2765, %v2767
        %v2769 = vrot.slane %v2649, 7
        %v2770 = vrot.slane %v2650, 7
        %v2771 = vsel %vm1028, %v2769, %v2770
        %v2772 = vrot.slane %v2651, 7
        %v2773 = vsel %vm1028, %v2770, %v2772
        %v2774 = vrot.slane %v2652, 7
        %v2775 = vrot.slane %v2653, 7
        %v2776 = vsel %vm1028, %v2774, %v2775
        %v2777 = vrot.slane %v2654, 7
        %v2778 = vsel %vm1028, %v2775, %v2777
        %v2779 = vrot.slane %v2655, 7
        %v2780 = vrot.slane %v2656, 7
        %v2781 = vsel %vm1028, %v2779, %v2780
        %v2782 = vrot.slane %v2657, 7
        %v2783 = vsel %vm1028, %v2780, %v2782
        %v2784 = vrot.slane %v2658, 7
        %v2785 = vrot.slane %v2659, 7
        %v2786 = vsel %vm1028, %v2784, %v2785
        %v2787 = vrot.slane %v2660, 7
        %v2788 = vsel %vm1028, %v2785, %v2787
        %v2821 = vpack.c.bf16 %v2713, %v2711
        %v2822 = vpack.c.bf16 %v2718, %v2716
        %v2823 = vpack.c.bf16 %v2723, %v2721
        %v2824 = vpack.c.bf16 %v2728, %v2726
        %v2825 = vpack.c.bf16 %v2733, %v2731
        %v2826 = vpack.c.bf16 %v2738, %v2736
        %v2827 = vpack.c.bf16 %v2743, %v2741
        %v2828 = vpack.c.bf16 %v2748, %v2746
        %v2829 = vpack.c.bf16 %v2753, %v2751
        %v2830 = vpack.c.bf16 %v2758, %v2756
        %v2831 = vpack.c.bf16 %v2763, %v2761
        %v2832 = vpack.c.bf16 %v2768, %v2766
        %v2833 = vpack.c.bf16 %v2773, %v2771
        %v2834 = vpack.c.bf16 %v2778, %v2776
        %v2835 = vpack.c.bf16 %v2783, %v2781
        %v2836 = vpack.c.bf16 %v2788, %v2786
        %v2837 = vld [vmem:[%s3] sm:$0xf]
        %v2838 = vld [vmem:[%s3 + $0x4] sm:$0xf]
        %v2839 = vld [vmem:[%s3 + $0x8] sm:$0xf]
        %v2840 = vld [vmem:[%s3 + $0xc] sm:$0xf]
        %v2841 = vld [vmem:[%s3 + $0x10] sm:$0xf]
        %v2842 = vld [vmem:[%s3 + $0x14] sm:$0xf]
        %v2843 = vld [vmem:[%s3 + $0x18] sm:$0xf]
        %v2844 = vld [vmem:[%s3 + $0x1c] sm:$0xf]
        %v2845 = vld [vmem:[%s3 + $0x20] sm:$0xf]
        %v2846 = vld [vmem:[%s3 + $0x24] sm:$0xf]
        %v2847 = vld [vmem:[%s3 + $0x28] sm:$0xf]
        %v2848 = vld [vmem:[%s3 + $0x2c] sm:$0xf]
        %v2849 = vpack.c.bf16 %v2615, %v2614
        %v2850 = vpack.c.bf16 %v2618, %v2617
        %v2851 = vpack.c.bf16 %v2621, %v2620
        %v2852 = vpack.c.bf16 %v2624, %v2623
        %v2853 = vpack.c.bf16 %v2627, %v2626
        %v2854 = vpack.c.bf16 %v2630, %v2629
        %v2855 = vpack.c.bf16 %v2633, %v2632
        %v2856 = vpack.c.bf16 %v2636, %v2635
        %v2857 = vpack.c.bf16 %v2639, %v2638
        %v2858 = vpack.c.bf16 %v2642, %v2641
        %v2859 = vpack.c.bf16 %v2645, %v2644
        %v2860 = vpack.c.bf16 %v2648, %v2647
        %v2861 = vpack.c.bf16 %v2651, %v2650
        %v2862 = vpack.c.bf16 %v2654, %v2653
        %v2863 = vpack.c.bf16 %v2657, %v2656
        %v2864 = vpack.c.bf16 %v2660, %v2659
        %s2865 = scalar_lea.vmem %s3, 48
        %v2866 = vld [vmem:[%s2865] sm:$0xf]
        %v2867 = vld [vmem:[%s2865 + $0x4] sm:$0xf]
        %v2868 = vld [vmem:[%s2865 + $0x8] sm:$0xf]
        %v2869 = vld [vmem:[%s2865 + $0xc] sm:$0xf]
        %v2870 = vld [vmem:[%s2865 + $0x10] sm:$0xf]
        %v2871 = vld [vmem:[%s2865 + $0x14] sm:$0xf]
        %v2872 = vld [vmem:[%s2865 + $0x18] sm:$0xf]
        %v2873 = vld [vmem:[%s2865 + $0x1c] sm:$0xf]
        %v2874 = vld [vmem:[%s2865 + $0x20] sm:$0xf]
        %v2875 = vld [vmem:[%s2865 + $0x24] sm:$0xf]
        %v2876 = vld [vmem:[%s2865 + $0x28] sm:$0xf]
        %v2877 = vld [vmem:[%s2865 + $0x2c] sm:$0xf]
        %v2890 = vunpack.c.l.b16 %v2866
        %v2891 = vunpack.c.l.b16 %v2867
        %v2892 = vunpack.c.l.b16 %v2868
        %v2893 = vunpack.c.l.b16 %v2869
        %v2894 = vunpack.c.l.b16 %v2870
        %v2895 = vunpack.c.l.b16 %v2871
        %v2896 = vunpack.c.l.b16 %v2872
        %v2897 = vunpack.c.l.b16 %v2873
        %v2898 = vunpack.c.l.b16 %v2874
        %v2899 = vunpack.c.l.b16 %v2875
        %v2900 = vunpack.c.l.b16 %v2876
        %v2901 = vunpack.c.l.b16 %v2877
        %v2902 = vpack.c.b16 %v2891, %v2890
        %v2903 = vpack.c.b16 %v2893, %v2892
        %v2904 = vpack.c.b16 %v2895, %v2894
        %v2905 = vpack.c.b16 %v2897, %v2896
        %v2906 = vpack.c.b16 %v2899, %v2898
        %v2907 = vpack.c.b16 %v2901, %v2900
        %v2915 = vsel %vm1234, %v2849, 0
        %v2918 = vsel %vm1234, %v2850, 0
        %v2921 = vsel %vm1234, %v2851, 0
        %v2924 = vsel %vm1234, %v2852, 0
        %v2927 = vsel %vm1234, %v2853, 0
        %v2930 = vsel %vm1234, %v2854, 0
        %v2933 = vsel %vm1234, %v2855, 0
        %v2936 = vsel %vm1234, %v2856, 0
        %v2939 = vsel %vm1234, %v2857, 0
        %v2942 = vsel %vm1234, %v2858, 0
        %v2945 = vsel %vm1234, %v2859, 0
        %v2948 = vsel %vm1234, %v2860, 0
        %v2951 = vsel %vm1234, %v2861, 0
        %v2954 = vsel %vm1234, %v2862, 0
        %v2957 = vsel %vm1234, %v2863, 0
        %v2960 = vsel %vm1234, %v2864, 0
        %2962 = vmatpush.bf16.msra.mxu0 0
        %2963 = vmatpush.bf16.msra.mxu0 0
        %2964 = vmatpush.bf16.msra.mxu0 %v2907
        %2965 = vmatpush.bf16.msra.mxu0 %v2906
        %2966 = vmatpush.bf16.msra.mxu0 %v2905
        %2967 = vmatpush.bf16.msra.mxu0 %v2904
        %2968 = vmatpush.bf16.msra.mxu0 %v2903
        %2969 = vmatpush.bf16.msra.mxu0 %v2902
        %2970 = vmatmul.bf16.gmra.mxu0 %v2915
        %v2971 = vpop.f32.mrf.mxu0
        %v2972 = vadd.f32 0.0, %v2971
        %v2973 = vpop.f32.mrf.mxu0
        %v2974 = vadd.f32 0.0, %v2973
        %2975 = vmatmul.bf16.gmra.mxu0 %v2918
        %v2976 = vpop.f32.mrf.mxu0
        %v2977 = vadd.f32 0.0, %v2976
        %v2978 = vpop.f32.mrf.mxu0
        %v2979 = vadd.f32 0.0, %v2978
        %2980 = vmatmul.bf16.gmra.mxu0 %v2921
        %v2981 = vpop.f32.mrf.mxu0
        %v2982 = vadd.f32 0.0, %v2981
        %v2983 = vpop.f32.mrf.mxu0
        %v2984 = vadd.f32 0.0, %v2983
        %2985 = vmatmul.bf16.gmra.mxu0 %v2924
        %v2986 = vpop.f32.mrf.mxu0
        %v2987 = vadd.f32 0.0, %v2986
        %v2988 = vpop.f32.mrf.mxu0
        %v2989 = vadd.f32 0.0, %v2988
        %2990 = vmatmul.bf16.gmra.mxu0 %v2927
        %v2991 = vpop.f32.mrf.mxu0
        %v2992 = vadd.f32 0.0, %v2991
        %v2993 = vpop.f32.mrf.mxu0
        %v2994 = vadd.f32 0.0, %v2993
        %2995 = vmatmul.bf16.gmra.mxu0 %v2930
        %v2996 = vpop.f32.mrf.mxu0
        %v2997 = vadd.f32 0.0, %v2996
        %v2998 = vpop.f32.mrf.mxu0
        %v2999 = vadd.f32 0.0, %v2998
        %3000 = vmatmul.bf16.gmra.mxu0 %v2933
        %v3001 = vpop.f32.mrf.mxu0
        %v3002 = vadd.f32 0.0, %v3001
        %v3003 = vpop.f32.mrf.mxu0
        %v3004 = vadd.f32 0.0, %v3003
        %3005 = vmatmul.bf16.gmra.mxu0 %v2936
        %v3006 = vpop.f32.mrf.mxu0
        %v3007 = vadd.f32 0.0, %v3006
        %v3008 = vpop.f32.mrf.mxu0
        %v3009 = vadd.f32 0.0, %v3008
        %3010 = vmatmul.bf16.gmra.mxu0 %v2939
        %v3011 = vpop.f32.mrf.mxu0
        %v3012 = vadd.f32 0.0, %v3011
        %v3013 = vpop.f32.mrf.mxu0
        %v3014 = vadd.f32 0.0, %v3013
        %3015 = vmatmul.bf16.gmra.mxu0 %v2942
        %v3016 = vpop.f32.mrf.mxu0
        %v3017 = vadd.f32 0.0, %v3016
        %v3018 = vpop.f32.mrf.mxu0
        %v3019 = vadd.f32 0.0, %v3018
        %3020 = vmatmul.bf16.gmra.mxu0 %v2945
        %v3021 = vpop.f32.mrf.mxu0
        %v3022 = vadd.f32 0.0, %v3021
        %v3023 = vpop.f32.mrf.mxu0
        %v3024 = vadd.f32 0.0, %v3023
        %3025 = vmatmul.bf16.gmra.mxu0 %v2948
        %v3026 = vpop.f32.mrf.mxu0
        %v3027 = vadd.f32 0.0, %v3026
        %v3028 = vpop.f32.mrf.mxu0
        %v3029 = vadd.f32 0.0, %v3028
        %3030 = vmatmul.bf16.gmra.mxu0 %v2951
        %v3031 = vpop.f32.mrf.mxu0
        %v3032 = vadd.f32 0.0, %v3031
        %v3033 = vpop.f32.mrf.mxu0
        %v3034 = vadd.f32 0.0, %v3033
        %3035 = vmatmul.bf16.gmra.mxu0 %v2954
        %v3036 = vpop.f32.mrf.mxu0
        %v3037 = vadd.f32 0.0, %v3036
        %v3038 = vpop.f32.mrf.mxu0
        %v3039 = vadd.f32 0.0, %v3038
        %3040 = vmatmul.bf16.gmra.mxu0 %v2957
        %v3041 = vpop.f32.mrf.mxu0
        %v3042 = vadd.f32 0.0, %v3041
        %v3043 = vpop.f32.mrf.mxu0
        %v3044 = vadd.f32 0.0, %v3043
        %3045 = vmatmul.bf16.gmra.mxu0 %v2960
        %v3046 = vpop.f32.mrf.mxu0
        %v3047 = vadd.f32 0.0, %v3046
        %v3048 = vpop.f32.mrf.mxu0
        %v3049 = vadd.f32 0.0, %v3048
        %3050 = vdwg.mxu0
        %v3063 = vunpack.c.l.b16 %v2837
        %v3064 = vunpack.c.l.b16 %v2838
        %v3065 = vunpack.c.l.b16 %v2839
        %v3066 = vunpack.c.l.b16 %v2840
        %v3067 = vunpack.c.l.b16 %v2841
        %v3068 = vunpack.c.l.b16 %v2842
        %v3069 = vunpack.c.l.b16 %v2843
        %v3070 = vunpack.c.l.b16 %v2844
        %v3071 = vunpack.c.l.b16 %v2845
        %v3072 = vunpack.c.l.b16 %v2846
        %v3073 = vunpack.c.l.b16 %v2847
        %v3074 = vunpack.c.l.b16 %v2848
        %v3075 = vpack.c.b16 %v3064, %v3063
        %v3076 = vpack.c.b16 %v3066, %v3065
        %v3077 = vpack.c.b16 %v3068, %v3067
        %v3078 = vpack.c.b16 %v3070, %v3069
        %v3079 = vpack.c.b16 %v3072, %v3071
        %v3080 = vpack.c.b16 %v3074, %v3073
        %v3088 = vsel %vm1234, %v2821, 0
        %v3091 = vsel %vm1234, %v2822, 0
        %v3094 = vsel %vm1234, %v2823, 0
        %v3097 = vsel %vm1234, %v2824, 0
        %v3100 = vsel %vm1234, %v2825, 0
        %v3103 = vsel %vm1234, %v2826, 0
        %v3106 = vsel %vm1234, %v2827, 0
        %v3109 = vsel %vm1234, %v2828, 0
        %v3112 = vsel %vm1234, %v2829, 0
        %v3115 = vsel %vm1234, %v2830, 0
        %v3118 = vsel %vm1234, %v2831, 0
        %v3121 = vsel %vm1234, %v2832, 0
        %v3124 = vsel %vm1234, %v2833, 0
        %v3127 = vsel %vm1234, %v2834, 0
        %v3130 = vsel %vm1234, %v2835, 0
        %v3133 = vsel %vm1234, %v2836, 0
        %3135 = vmatpush.bf16.msra.mxu0 0
        %3136 = vmatpush.bf16.msra.mxu0 0
        %3137 = vmatpush.bf16.msra.mxu0 %v3080
        %3138 = vmatpush.bf16.msra.mxu0 %v3079
        %3139 = vmatpush.bf16.msra.mxu0 %v3078
        %3140 = vmatpush.bf16.msra.mxu0 %v3077
        %3141 = vmatpush.bf16.msra.mxu0 %v3076
        %3142 = vmatpush.bf16.msra.mxu0 %v3075
        %3143 = vmatmul.bf16.gmra.mxu0 %v3088
        %v3144 = vpop.f32.mrf.mxu0
        %v3145 = vadd.f32 %v2972, %v3144
        %v3146 = vpop.f32.mrf.mxu0
        %v3147 = vadd.f32 %v2974, %v3146
        %3148 = vmatmul.bf16.gmra.mxu0 %v3091
        %v3149 = vpop.f32.mrf.mxu0
        %v3150 = vadd.f32 %v2977, %v3149
        %v3151 = vpop.f32.mrf.mxu0
        %v3152 = vadd.f32 %v2979, %v3151
        %3153 = vmatmul.bf16.gmra.mxu0 %v3094
        %v3154 = vpop.f32.mrf.mxu0
        %v3155 = vadd.f32 %v2982, %v3154
        %v3156 = vpop.f32.mrf.mxu0
        %v3157 = vadd.f32 %v2984, %v3156
        %3158 = vmatmul.bf16.gmra.mxu0 %v3097
        %v3159 = vpop.f32.mrf.mxu0
        %v3160 = vadd.f32 %v2987, %v3159
        %v3161 = vpop.f32.mrf.mxu0
        %v3162 = vadd.f32 %v2989, %v3161
        %3163 = vmatmul.bf16.gmra.mxu0 %v3100
        %v3164 = vpop.f32.mrf.mxu0
        %v3165 = vadd.f32 %v2992, %v3164
        %v3166 = vpop.f32.mrf.mxu0
        %v3167 = vadd.f32 %v2994, %v3166
        %3168 = vmatmul.bf16.gmra.mxu0 %v3103
        %v3169 = vpop.f32.mrf.mxu0
        %v3170 = vadd.f32 %v2997, %v3169
        %v3171 = vpop.f32.mrf.mxu0
        %v3172 = vadd.f32 %v2999, %v3171
        %3173 = vmatmul.bf16.gmra.mxu0 %v3106
        %v3174 = vpop.f32.mrf.mxu0
        %v3175 = vadd.f32 %v3002, %v3174
        %v3176 = vpop.f32.mrf.mxu0
        %v3177 = vadd.f32 %v3004, %v3176
        %3178 = vmatmul.bf16.gmra.mxu0 %v3109
        %v3179 = vpop.f32.mrf.mxu0
        %v3180 = vadd.f32 %v3007, %v3179
        %v3181 = vpop.f32.mrf.mxu0
        %v3182 = vadd.f32 %v3009, %v3181
        %3183 = vmatmul.bf16.gmra.mxu0 %v3112
        %v3184 = vpop.f32.mrf.mxu0
        %v3185 = vadd.f32 %v3012, %v3184
        %v3186 = vpop.f32.mrf.mxu0
        %v3187 = vadd.f32 %v3014, %v3186
        %3188 = vmatmul.bf16.gmra.mxu0 %v3115
        %v3189 = vpop.f32.mrf.mxu0
        %v3190 = vadd.f32 %v3017, %v3189
        %v3191 = vpop.f32.mrf.mxu0
        %v3192 = vadd.f32 %v3019, %v3191
        %3193 = vmatmul.bf16.gmra.mxu0 %v3118
        %v3194 = vpop.f32.mrf.mxu0
        %v3195 = vadd.f32 %v3022, %v3194
        %v3196 = vpop.f32.mrf.mxu0
        %v3197 = vadd.f32 %v3024, %v3196
        %3198 = vmatmul.bf16.gmra.mxu0 %v3121
        %v3199 = vpop.f32.mrf.mxu0
        %v3200 = vadd.f32 %v3027, %v3199
        %v3201 = vpop.f32.mrf.mxu0
        %v3202 = vadd.f32 %v3029, %v3201
        %3203 = vmatmul.bf16.gmra.mxu0 %v3124
        %v3204 = vpop.f32.mrf.mxu0
        %v3205 = vadd.f32 %v3032, %v3204
        %v3206 = vpop.f32.mrf.mxu0
        %v3207 = vadd.f32 %v3034, %v3206
        %3208 = vmatmul.bf16.gmra.mxu0 %v3127
        %v3209 = vpop.f32.mrf.mxu0
        %v3210 = vadd.f32 %v3037, %v3209
        %v3211 = vpop.f32.mrf.mxu0
        %v3212 = vadd.f32 %v3039, %v3211
        %3213 = vmatmul.bf16.gmra.mxu0 %v3130
        %v3214 = vpop.f32.mrf.mxu0
        %v3215 = vadd.f32 %v3042, %v3214
        %v3216 = vpop.f32.mrf.mxu0
        %v3217 = vadd.f32 %v3044, %v3216
        %3218 = vmatmul.bf16.gmra.mxu0 %v3133
        %v3219 = vpop.f32.mrf.mxu0
        %v3220 = vadd.f32 %v3047, %v3219
        %v3221 = vpop.f32.mrf.mxu0
        %v3222 = vadd.f32 %v3049, %v3221
        %3223 = vdwg.mxu0
        %3240 = vrot.lane.b32.xlu0 %v2161, 32
        %v3241 = vpop.permute.xlu0 %3240
        %3242 = vrot.lane.b32.xlu0 %v2165, 32
        %v3243 = vpop.permute.xlu0 %3242
        %3244 = vrot.lane.b32.xlu0 %v2169, 32
        %v3245 = vpop.permute.xlu0 %3244
        %3246 = vrot.lane.b32.xlu0 %v2173, 32
        %v3247 = vpop.permute.xlu0 %3246
        %3248 = vrot.lane.b32.xlu0 %v2177, 32
        %v3249 = vpop.permute.xlu0 %3248
        %3250 = vrot.lane.b32.xlu0 %v2181, 32
        %v3251 = vpop.permute.xlu0 %3250
        %3252 = vrot.lane.b32.xlu0 %v2185, 32
        %v3253 = vpop.permute.xlu0 %3252
        %3254 = vrot.lane.b32.xlu0 %v2189, 32
        %v3255 = vpop.permute.xlu0 %3254
        %3256 = vrot.lane.b32.xlu0 %v2193, 32
        %v3257 = vpop.permute.xlu0 %3256
        %3258 = vrot.lane.b32.xlu0 %v2197, 32
        %v3259 = vpop.permute.xlu0 %3258
        %3260 = vrot.lane.b32.xlu0 %v2201, 32
        %v3261 = vpop.permute.xlu0 %3260
        %3262 = vrot.lane.b32.xlu0 %v2205, 32
        %v3263 = vpop.permute.xlu0 %3262
        %3264 = vrot.lane.b32.xlu0 %v2209, 32
        %v3265 = vpop.permute.xlu0 %3264
        %3266 = vrot.lane.b32.xlu0 %v2213, 32
        %v3267 = vpop.permute.xlu0 %3266
        %3268 = vrot.lane.b32.xlu0 %v2217, 32
        %v3269 = vpop.permute.xlu0 %3268
        %3270 = vrot.lane.b32.xlu0 %v2221, 32
        %v3271 = vpop.permute.xlu0 %3270
        %3289 = vrot.lane.b32.xlu0 %v2165, 64
        %v3290 = vpop.permute.xlu0 %3289
        %3291 = vrot.lane.b32.xlu0 %v2169, 64
        %v3292 = vpop.permute.xlu0 %3291
        %3293 = vrot.lane.b32.xlu0 %v2173, 64
        %v3294 = vpop.permute.xlu0 %3293
        %3295 = vrot.lane.b32.xlu0 %v2177, 64
        %v3296 = vpop.permute.xlu0 %3295
        %3297 = vrot.lane.b32.xlu0 %v2181, 64
        %v3298 = vpop.permute.xlu0 %3297
        %3299 = vrot.lane.b32.xlu0 %v2185, 64
        %v3300 = vpop.permute.xlu0 %3299
        %3301 = vrot.lane.b32.xlu0 %v2189, 64
        %v3302 = vpop.permute.xlu0 %3301
        %3303 = vrot.lane.b32.xlu0 %v2193, 64
        %v3304 = vpop.permute.xlu0 %3303
        %3305 = vrot.lane.b32.xlu0 %v2197, 64
        %v3306 = vpop.permute.xlu0 %3305
        %3307 = vrot.lane.b32.xlu0 %v2201, 64
        %v3308 = vpop.permute.xlu0 %3307
        %3309 = vrot.lane.b32.xlu0 %v2205, 64
        %v3310 = vpop.permute.xlu0 %3309
        %3311 = vrot.lane.b32.xlu0 %v2209, 64
        %v3312 = vpop.permute.xlu0 %3311
        %3313 = vrot.lane.b32.xlu0 %v2213, 64
        %v3314 = vpop.permute.xlu0 %3313
        %3315 = vrot.lane.b32.xlu0 %v2217, 64
        %v3316 = vpop.permute.xlu0 %3315
        %3317 = vrot.lane.b32.xlu0 %v2221, 64
        %v3318 = vpop.permute.xlu0 %3317
        %3319 = vrot.lane.b32.xlu0 %v2225, 64
        %v3320 = vpop.permute.xlu0 %3319
        %v3337 = vsel %vm315, %v2157, %v3241
        %v3338 = vsel %vm315, %v2161, %v3243
        %v3339 = vsel %vm315, %v2165, %v3245
        %v3340 = vsel %vm315, %v2169, %v3247
        %v3341 = vsel %vm315, %v2173, %v3249
        %v3342 = vsel %vm315, %v2177, %v3251
        %v3343 = vsel %vm315, %v2181, %v3253
        %v3344 = vsel %vm315, %v2185, %v3255
        %v3345 = vsel %vm315, %v2189, %v3257
        %v3346 = vsel %vm315, %v2193, %v3259
        %v3347 = vsel %vm315, %v2197, %v3261
        %v3348 = vsel %vm315, %v2201, %v3263
        %v3349 = vsel %vm315, %v2205, %v3265
        %v3350 = vsel %vm315, %v2209, %v3267
        %v3351 = vsel %vm315, %v2213, %v3269
        %v3352 = vsel %vm315, %v2217, %v3271
        %v3353 = vsel %vm931, %v3337, %v3290
        %v3354 = vsel %vm931, %v3338, %v3292
        %v3355 = vsel %vm931, %v3339, %v3294
        %v3356 = vsel %vm931, %v3340, %v3296
        %v3357 = vsel %vm931, %v3341, %v3298
        %v3358 = vsel %vm931, %v3342, %v3300
        %v3359 = vsel %vm931, %v3343, %v3302
        %v3360 = vsel %vm931, %v3344, %v3304
        %v3361 = vsel %vm931, %v3345, %v3306
        %v3362 = vsel %vm931, %v3346, %v3308
        %v3363 = vsel %vm931, %v3347, %v3310
        %v3364 = vsel %vm931, %v3348, %v3312
        %v3365 = vsel %vm931, %v3349, %v3314
        %v3366 = vsel %vm931, %v3350, %v3316
        %v3367 = vsel %vm931, %v3351, %v3318
        %v3368 = vsel %vm931, %v3352, %v3320
        %v3385 = vrot.slane %v2614, 1
        %v3386 = vrot.slane %v2615, 1
        %v3387 = vsel %vm1706, %v3385, %v3386
        %v3388 = vrot.slane %v3353, 1
        %v3389 = vsel %vm1706, %v3386, %v3388
        %v3390 = vrot.slane %v2617, 1
        %v3391 = vrot.slane %v2618, 1
        %v3392 = vsel %vm1706, %v3390, %v3391
        %v3393 = vrot.slane %v3354, 1
        %v3394 = vsel %vm1706, %v3391, %v3393
        %v3395 = vrot.slane %v2620, 1
        %v3396 = vrot.slane %v2621, 1
        %v3397 = vsel %vm1706, %v3395, %v3396
        %v3398 = vrot.slane %v3355, 1
        %v3399 = vsel %vm1706, %v3396, %v3398
        %v3400 = vrot.slane %v2623, 1
        %v3401 = vrot.slane %v2624, 1
        %v3402 = vsel %vm1706, %v3400, %v3401
        %v3403 = vrot.slane %v3356, 1
        %v3404 = vsel %vm1706, %v3401, %v3403
        %v3405 = vrot.slane %v2626, 1
        %v3406 = vrot.slane %v2627, 1
        %v3407 = vsel %vm1706, %v3405, %v3406
        %v3408 = vrot.slane %v3357, 1
        %v3409 = vsel %vm1706, %v3406, %v3408
        %v3410 = vrot.slane %v2629, 1
        %v3411 = vrot.slane %v2630, 1
        %v3412 = vsel %vm1706, %v3410, %v3411
        %v3413 = vrot.slane %v3358, 1
        %v3414 = vsel %vm1706, %v3411, %v3413
        %v3415 = vrot.slane %v2632, 1
        %v3416 = vrot.slane %v2633, 1
        %v3417 = vsel %vm1706, %v3415, %v3416
        %v3418 = vrot.slane %v3359, 1
        %v3419 = vsel %vm1706, %v3416, %v3418
        %v3420 = vrot.slane %v2635, 1
        %v3421 = vrot.slane %v2636, 1
        %v3422 = vsel %vm1706, %v3420, %v3421
        %v3423 = vrot.slane %v3360, 1
        %v3424 = vsel %vm1706, %v3421, %v3423
        %v3425 = vrot.slane %v2638, 1
        %v3426 = vrot.slane %v2639, 1
        %v3427 = vsel %vm1706, %v3425, %v3426
        %v3428 = vrot.slane %v3361, 1
        %v3429 = vsel %vm1706, %v3426, %v3428
        %v3430 = vrot.slane %v2641, 1
        %v3431 = vrot.slane %v2642, 1
        %v3432 = vsel %vm1706, %v3430, %v3431
        %v3433 = vrot.slane %v3362, 1
        %v3434 = vsel %vm1706, %v3431, %v3433
        %v3435 = vrot.slane %v2644, 1
        %v3436 = vrot.slane %v2645, 1
        %v3437 = vsel %vm1706, %v3435, %v3436
        %v3438 = vrot.slane %v3363, 1
        %v3439 = vsel %vm1706, %v3436, %v3438
        %v3440 = vrot.slane %v2647, 1
        %v3441 = vrot.slane %v2648, 1
        %v3442 = vsel %vm1706, %v3440, %v3441
        %v3443 = vrot.slane %v3364, 1
        %v3444 = vsel %vm1706, %v3441, %v3443
        %v3445 = vrot.slane %v2650, 1
        %v3446 = vrot.slane %v2651, 1
        %v3447 = vsel %vm1706, %v3445, %v3446
        %v3448 = vrot.slane %v3365, 1
        %v3449 = vsel %vm1706, %v3446, %v3448
        %v3450 = vrot.slane %v2653, 1
        %v3451 = vrot.slane %v2654, 1
        %v3452 = vsel %vm1706, %v3450, %v3451
        %v3453 = vrot.slane %v3366, 1
        %v3454 = vsel %vm1706, %v3451, %v3453
        %v3455 = vrot.slane %v2656, 1
        %v3456 = vrot.slane %v2657, 1
        %v3457 = vsel %vm1706, %v3455, %v3456
        %v3458 = vrot.slane %v3367, 1
        %v3459 = vsel %vm1706, %v3456, %v3458
        %v3460 = vrot.slane %v2659, 1
        %v3461 = vrot.slane %v2660, 1
        %v3462 = vsel %vm1706, %v3460, %v3461
        %v3463 = vrot.slane %v3368, 1
        %v3464 = vsel %vm1706, %v3461, %v3463
        %v3497 = vpack.c.bf16 %v3389, %v3387
        %v3498 = vpack.c.bf16 %v3394, %v3392
        %v3499 = vpack.c.bf16 %v3399, %v3397
        %v3500 = vpack.c.bf16 %v3404, %v3402
        %v3501 = vpack.c.bf16 %v3409, %v3407
        %v3502 = vpack.c.bf16 %v3414, %v3412
        %v3503 = vpack.c.bf16 %v3419, %v3417
        %v3504 = vpack.c.bf16 %v3424, %v3422
        %v3505 = vpack.c.bf16 %v3429, %v3427
        %v3506 = vpack.c.bf16 %v3434, %v3432
        %v3507 = vpack.c.bf16 %v3439, %v3437
        %v3508 = vpack.c.bf16 %v3444, %v3442
        %v3509 = vpack.c.bf16 %v3449, %v3447
        %v3510 = vpack.c.bf16 %v3454, %v3452
        %v3511 = vpack.c.bf16 %v3459, %v3457
        %v3512 = vpack.c.bf16 %v3464, %v3462
        %s3513 = scalar_lea.vmem %s3, 96
        %v3514 = vld [vmem:[%s3513] sm:$0xf]
        %v3515 = vld [vmem:[%s3513 + $0x4] sm:$0xf]
        %v3516 = vld [vmem:[%s3513 + $0x8] sm:$0xf]
        %v3517 = vld [vmem:[%s3513 + $0xc] sm:$0xf]
        %v3518 = vld [vmem:[%s3513 + $0x10] sm:$0xf]
        %v3519 = vld [vmem:[%s3513 + $0x14] sm:$0xf]
        %v3520 = vld [vmem:[%s3513 + $0x18] sm:$0xf]
        %v3521 = vld [vmem:[%s3513 + $0x1c] sm:$0xf]
        %v3522 = vld [vmem:[%s3513 + $0x20] sm:$0xf]
        %v3523 = vld [vmem:[%s3513 + $0x24] sm:$0xf]
        %v3524 = vld [vmem:[%s3513 + $0x28] sm:$0xf]
        %v3525 = vld [vmem:[%s3513 + $0x2c] sm:$0xf]
        %v3538 = vunpack.c.l.b16 %v3514
        %v3539 = vunpack.c.l.b16 %v3515
        %v3540 = vunpack.c.l.b16 %v3516
        %v3541 = vunpack.c.l.b16 %v3517
        %v3542 = vunpack.c.l.b16 %v3518
        %v3543 = vunpack.c.l.b16 %v3519
        %v3544 = vunpack.c.l.b16 %v3520
        %v3545 = vunpack.c.l.b16 %v3521
        %v3546 = vunpack.c.l.b16 %v3522
        %v3547 = vunpack.c.l.b16 %v3523
        %v3548 = vunpack.c.l.b16 %v3524
        %v3549 = vunpack.c.l.b16 %v3525
        %v3550 = vpack.c.b16 %v3539, %v3538
        %v3551 = vpack.c.b16 %v3541, %v3540
        %v3552 = vpack.c.b16 %v3543, %v3542
        %v3553 = vpack.c.b16 %v3545, %v3544
        %v3554 = vpack.c.b16 %v3547, %v3546
        %v3555 = vpack.c.b16 %v3549, %v3548
        %v3563 = vsel %vm1234, %v3497, 0
        %v3566 = vsel %vm1234, %v3498, 0
        %v3569 = vsel %vm1234, %v3499, 0
        %v3572 = vsel %vm1234, %v3500, 0
        %v3575 = vsel %vm1234, %v3501, 0
        %v3578 = vsel %vm1234, %v3502, 0
        %v3581 = vsel %vm1234, %v3503, 0
        %v3584 = vsel %vm1234, %v3504, 0
        %v3587 = vsel %vm1234, %v3505, 0
        %v3590 = vsel %vm1234, %v3506, 0
        %v3593 = vsel %vm1234, %v3507, 0
        %v3596 = vsel %vm1234, %v3508, 0
        %v3599 = vsel %vm1234, %v3509, 0
        %v3602 = vsel %vm1234, %v3510, 0
        %v3605 = vsel %vm1234, %v3511, 0
        %v3608 = vsel %vm1234, %v3512, 0
        %3610 = vmatpush.bf16.msra.mxu0 0
        %3611 = vmatpush.bf16.msra.mxu0 0
        %3612 = vmatpush.bf16.msra.mxu0 %v3555
        %3613 = vmatpush.bf16.msra.mxu0 %v3554
        %3614 = vmatpush.bf16.msra.mxu0 %v3553
        %3615 = vmatpush.bf16.msra.mxu0 %v3552
        %3616 = vmatpush.bf16.msra.mxu0 %v3551
        %3617 = vmatpush.bf16.msra.mxu0 %v3550
        %3618 = vmatmul.bf16.gmra.mxu0 %v3563
        %v3619 = vpop.f32.mrf.mxu0
        %v3620 = vadd.f32 0.0, %v3619
        %v3621 = vpop.f32.mrf.mxu0
        %v3622 = vadd.f32 0.0, %v3621
        %3623 = vmatmul.bf16.gmra.mxu0 %v3566
        %v3624 = vpop.f32.mrf.mxu0
        %v3625 = vadd.f32 0.0, %v3624
        %v3626 = vpop.f32.mrf.mxu0
        %v3627 = vadd.f32 0.0, %v3626
        %3628 = vmatmul.bf16.gmra.mxu0 %v3569
        %v3629 = vpop.f32.mrf.mxu0
        %v3630 = vadd.f32 0.0, %v3629
        %v3631 = vpop.f32.mrf.mxu0
        %v3632 = vadd.f32 0.0, %v3631
        %3633 = vmatmul.bf16.gmra.mxu0 %v3572
        %v3634 = vpop.f32.mrf.mxu0
        %v3635 = vadd.f32 0.0, %v3634
        %v3636 = vpop.f32.mrf.mxu0
        %v3637 = vadd.f32 0.0, %v3636
        %3638 = vmatmul.bf16.gmra.mxu0 %v3575
        %v3639 = vpop.f32.mrf.mxu0
        %v3640 = vadd.f32 0.0, %v3639
        %v3641 = vpop.f32.mrf.mxu0
        %v3642 = vadd.f32 0.0, %v3641
        %3643 = vmatmul.bf16.gmra.mxu0 %v3578
        %v3644 = vpop.f32.mrf.mxu0
        %v3645 = vadd.f32 0.0, %v3644
        %v3646 = vpop.f32.mrf.mxu0
        %v3647 = vadd.f32 0.0, %v3646
        %3648 = vmatmul.bf16.gmra.mxu0 %v3581
        %v3649 = vpop.f32.mrf.mxu0
        %v3650 = vadd.f32 0.0, %v3649
        %v3651 = vpop.f32.mrf.mxu0
        %v3652 = vadd.f32 0.0, %v3651
        %3653 = vmatmul.bf16.gmra.mxu0 %v3584
        %v3654 = vpop.f32.mrf.mxu0
        %v3655 = vadd.f32 0.0, %v3654
        %v3656 = vpop.f32.mrf.mxu0
        %v3657 = vadd.f32 0.0, %v3656
        %3658 = vmatmul.bf16.gmra.mxu0 %v3587
        %v3659 = vpop.f32.mrf.mxu0
        %v3660 = vadd.f32 0.0, %v3659
        %v3661 = vpop.f32.mrf.mxu0
        %v3662 = vadd.f32 0.0, %v3661
        %3663 = vmatmul.bf16.gmra.mxu0 %v3590
        %v3664 = vpop.f32.mrf.mxu0
        %v3665 = vadd.f32 0.0, %v3664
        %v3666 = vpop.f32.mrf.mxu0
        %v3667 = vadd.f32 0.0, %v3666
        %3668 = vmatmul.bf16.gmra.mxu0 %v3593
        %v3669 = vpop.f32.mrf.mxu0
        %v3670 = vadd.f32 0.0, %v3669
        %v3671 = vpop.f32.mrf.mxu0
        %v3672 = vadd.f32 0.0, %v3671
        %3673 = vmatmul.bf16.gmra.mxu0 %v3596
        %v3674 = vpop.f32.mrf.mxu0
        %v3675 = vadd.f32 0.0, %v3674
        %v3676 = vpop.f32.mrf.mxu0
        %v3677 = vadd.f32 0.0, %v3676
        %3678 = vmatmul.bf16.gmra.mxu0 %v3599
        %v3679 = vpop.f32.mrf.mxu0
        %v3680 = vadd.f32 0.0, %v3679
        %v3681 = vpop.f32.mrf.mxu0
        %v3682 = vadd.f32 0.0, %v3681
        %3683 = vmatmul.bf16.gmra.mxu0 %v3602
        %v3684 = vpop.f32.mrf.mxu0
        %v3685 = vadd.f32 0.0, %v3684
        %v3686 = vpop.f32.mrf.mxu0
        %v3687 = vadd.f32 0.0, %v3686
        %3688 = vmatmul.bf16.gmra.mxu0 %v3605
        %v3689 = vpop.f32.mrf.mxu0
        %v3690 = vadd.f32 0.0, %v3689
        %v3691 = vpop.f32.mrf.mxu0
        %v3692 = vadd.f32 0.0, %v3691
        %3693 = vmatmul.bf16.gmra.mxu0 %v3608
        %v3694 = vpop.f32.mrf.mxu0
        %v3695 = vadd.f32 0.0, %v3694
        %v3696 = vpop.f32.mrf.mxu0
        %v3697 = vadd.f32 0.0, %v3696
        %3698 = vdwg.mxu0
        %v3699 = vadd.f32 %v3145, %v3620
        %v3700 = vadd.f32 %v3147, %v3622
        %v3701 = vadd.f32 %v3150, %v3625
        %v3702 = vadd.f32 %v3152, %v3627
        %v3703 = vadd.f32 %v3155, %v3630
        %v3704 = vadd.f32 %v3157, %v3632
        %v3705 = vadd.f32 %v3160, %v3635
        %v3706 = vadd.f32 %v3162, %v3637
        %v3707 = vadd.f32 %v3165, %v3640
        %v3708 = vadd.f32 %v3167, %v3642
        %v3709 = vadd.f32 %v3170, %v3645
        %v3710 = vadd.f32 %v3172, %v3647
        %v3711 = vadd.f32 %v3175, %v3650
        %v3712 = vadd.f32 %v3177, %v3652
        %v3713 = vadd.f32 %v3180, %v3655
        %v3714 = vadd.f32 %v3182, %v3657
        %v3715 = vadd.f32 %v3185, %v3660
        %v3716 = vadd.f32 %v3187, %v3662
        %v3717 = vadd.f32 %v3190, %v3665
        %v3718 = vadd.f32 %v3192, %v3667
        %v3719 = vadd.f32 %v3195, %v3670
        %v3720 = vadd.f32 %v3197, %v3672
        %v3721 = vadd.f32 %v3200, %v3675
        %v3722 = vadd.f32 %v3202, %v3677
        %v3723 = vadd.f32 %v3205, %v3680
        %v3724 = vadd.f32 %v3207, %v3682
        %v3725 = vadd.f32 %v3210, %v3685
        %v3726 = vadd.f32 %v3212, %v3687
        %v3727 = vadd.f32 %v3215, %v3690
        %v3728 = vadd.f32 %v3217, %v3692
        %v3729 = vadd.f32 %v3220, %v3695
        %v3730 = vadd.f32 %v3222, %v3697
        %v3731 = vld [vmem:[%s4] sm:$0x1]
        %v3733 = vperm.slane %v3731, 0
        %v3735 = vadd.f32 %v3699, %v3733
        %v3736 = vadd.f32 %v3700, %v3733
        %v3737 = vadd.f32 %v3701, %v3733
        %v3738 = vadd.f32 %v3702, %v3733
        %v3739 = vadd.f32 %v3703, %v3733
        %v3740 = vadd.f32 %v3704, %v3733
        %v3741 = vadd.f32 %v3705, %v3733
        %v3742 = vadd.f32 %v3706, %v3733
        %v3743 = vadd.f32 %v3707, %v3733
        %v3744 = vadd.f32 %v3708, %v3733
        %v3745 = vadd.f32 %v3709, %v3733
        %v3746 = vadd.f32 %v3710, %v3733
        %v3747 = vadd.f32 %v3711, %v3733
        %v3748 = vadd.f32 %v3712, %v3733
        %v3749 = vadd.f32 %v3713, %v3733
        %v3750 = vadd.f32 %v3714, %v3733
        %v3751 = vadd.f32 %v3715, %v3733
        %v3752 = vadd.f32 %v3716, %v3733
        %v3753 = vadd.f32 %v3717, %v3733
        %v3754 = vadd.f32 %v3718, %v3733
        %v3755 = vadd.f32 %v3719, %v3733
        %v3756 = vadd.f32 %v3720, %v3733
        %v3757 = vadd.f32 %v3721, %v3733
        %v3758 = vadd.f32 %v3722, %v3733
        %v3759 = vadd.f32 %v3723, %v3733
        %v3760 = vadd.f32 %v3724, %v3733
        %v3761 = vadd.f32 %v3725, %v3733
        %v3762 = vadd.f32 %v3726, %v3733
        %v3763 = vadd.f32 %v3727, %v3733
        %v3764 = vadd.f32 %v3728, %v3733
        %v3765 = vadd.f32 %v3729, %v3733
        %v3766 = vadd.f32 %v3730, %v3733
        %3767 = vxpose.xlu0.b32.start [1/16] %v3735, 128
        %3768 = vxpose.xlu0.b32.cont [2/16] %v3736, 128
        %3769 = vxpose.xlu0.b32.cont [3/16] %v3737, 128
        %3770 = vxpose.xlu0.b32.cont [4/16] %v3738, 128
        %3771 = vxpose.xlu0.b32.cont [5/16] %v3739, 128
        %3772 = vxpose.xlu0.b32.cont [6/16] %v3740, 128
        %3773 = vxpose.xlu0.b32.cont [7/16] %v3741, 128
        %3774 = vxpose.xlu0.b32.cont [8/16] %v3742, 128
        %3775 = vxpose.xlu0.b32.cont [9/16] %v3743, 128
        %3776 = vxpose.xlu0.b32.cont [10/16] %v3744, 128
        %3777 = vxpose.xlu0.b32.cont [11/16] %v3745, 128
        %3778 = vxpose.xlu0.b32.cont [12/16] %v3746, 128
        %3779 = vxpose.xlu0.b32.cont [13/16] %v3747, 128
        %3780 = vxpose.xlu0.b32.cont [14/16] %v3748, 128
        %3781 = vxpose.xlu0.b32.cont [15/16] %v3749, 128
        %3782 = vxpose.xlu0.b32.end [16/16] %v3750, 128
        %v3783 = vpop.trf.xlu0
        %v3784 = vpop.trf.xlu0
        %v3785 = vpop.trf.xlu0
        %v3786 = vpop.trf.xlu0
        %v3787 = vpop.trf.xlu0
        %v3788 = vpop.trf.xlu0
        %v3789 = vpop.trf.xlu0
        %v3790 = vpop.trf.xlu0
        %v3791 = vpop.trf.xlu0
        %v3792 = vpop.trf.xlu0
        %v3793 = vpop.trf.xlu0
        %v3794 = vpop.trf.xlu0
        %v3795 = vpop.trf.xlu0
        %v3796 = vpop.trf.xlu0
        %v3797 = vpop.trf.xlu0
        %v3798 = vpop.trf.xlu0
        %3799 = vxpose.xlu0.b32.start [1/16] %v3751, 128
        %3800 = vxpose.xlu0.b32.cont [2/16] %v3752, 128
        %3801 = vxpose.xlu0.b32.cont [3/16] %v3753, 128
        %3802 = vxpose.xlu0.b32.cont [4/16] %v3754, 128
        %3803 = vxpose.xlu0.b32.cont [5/16] %v3755, 128
        %3804 = vxpose.xlu0.b32.cont [6/16] %v3756, 128
        %3805 = vxpose.xlu0.b32.cont [7/16] %v3757, 128
        %3806 = vxpose.xlu0.b32.cont [8/16] %v3758, 128
        %3807 = vxpose.xlu0.b32.cont [9/16] %v3759, 128
        %3808 = vxpose.xlu0.b32.cont [10/16] %v3760, 128
        %3809 = vxpose.xlu0.b32.cont [11/16] %v3761, 128
        %3810 = vxpose.xlu0.b32.cont [12/16] %v3762, 128
        %3811 = vxpose.xlu0.b32.cont [13/16] %v3763, 128
        %3812 = vxpose.xlu0.b32.cont [14/16] %v3764, 128
        %3813 = vxpose.xlu0.b32.cont [15/16] %v3765, 128
        %3814 = vxpose.xlu0.b32.end [16/16] %v3766, 128
        %v3815 = vpop.trf.xlu0
        %v3816 = vpop.trf.xlu0
        %v3817 = vpop.trf.xlu0
        %v3818 = vpop.trf.xlu0
        %v3819 = vpop.trf.xlu0
        %v3820 = vpop.trf.xlu0
        %v3821 = vpop.trf.xlu0
        %v3822 = vpop.trf.xlu0
        %v3823 = vpop.trf.xlu0
        %v3824 = vpop.trf.xlu0
        %v3825 = vpop.trf.xlu0
        %v3826 = vpop.trf.xlu0
        %v3827 = vpop.trf.xlu0
        %v3828 = vpop.trf.xlu0
        %v3829 = vpop.trf.xlu0
        %v3830 = vpop.trf.xlu0
        %v3833 = vrot.slane %v3815, 4
        %vm3834 = vcmask 1043456
        %v3835 = vsel %vm3834, %v3783, %v3833
        %3837 = vst [vmem:[%s308] sm:$0x77] %v3835
        %v3838 = vld [vmem:[%s5] ss:$2 sm:$0x3]
        %s3839 = scalar_lea.vmem %s5, 1
        %v3840 = vld [vmem:[%s3839] ss:$2 sm:$0x3]
        %v3841 = vmul.f32 %v3783, 0.8
        %v3842 = vmul.f32 %v3815, 0.8
        %v3844 = vperm.slane %v3838, 0
        %v3845 = vperm.slane %v3838, 1
        %v3848 = vadd.f32 %v3841, %v3844
        %v3849 = vadd.f32 %v3842, %v3845
        %3852 = vst [vmem:[#allocation1] sm:$0xff] %v3848
        %3853 = vst [vmem:[#allocation1 + $0x9] sm:$0xff] %v3849
        %s3854 = scalar_lea.vmem [#allocation1], 3
        %v3855 = vld [vmem:[%s3854] ss:$9 sm:$0xff]
        %v3857 = vlaneseq
        %vm3858 = vcmp.ge.s32.totalorder %v3857, 0
        %vm3859 = vcmp.lt.s32.totalorder %v3857, 256
        %vm3860 = vmand %vm3858, %vm3859
        %3861 = vst.msk [vmem:[%s313] ss:$8 sm:$0x3] %vm3860, %v3855
        %3862 = vst.msk [vmem:[%s313] ss:$8 sm:$0x0] %vm3860, %v3855
        %3863 = vst [vmem:[#allocation1] sm:$0xff] %v3783
        %3864 = vst [vmem:[#allocation1 + $0x9] sm:$0xff] %v3815
        %s3865 = scalar_lea.vmem [#allocation1], 4
        %v3866 = vld [vmem:[%s3865] ss:$9 sm:$0xff]
        %s3868 = scalar_lea.vmem %s313, 1
        %3869 = vst.msk [vmem:[%s3868] ss:$8 sm:$0x3] %vm3860, %v3866
        %3870 = vst.msk [vmem:[%s3868] ss:$8 sm:$0x0] %vm3860, %v3866
        %v3872 = vperm.slane %v3840, 0
        %v3873 = vperm.slane %v3840, 1
        %v3876 = vadd.f32 %v3841, %v3872
        %v3877 = vadd.f32 %v3842, %v3873
        %3880 = vst [vmem:[#allocation1] sm:$0xff] %v3876
        %3881 = vst [vmem:[#allocation1 + $0x9] sm:$0xff] %v3877
        %s3882 = scalar_lea.vmem [#allocation1], 5
        %v3883 = vld [vmem:[%s3882] ss:$9 sm:$0xff]
        %s3885 = scalar_lea.vmem %s313, 2
        %3886 = vst.msk [vmem:[%s3885] ss:$8 sm:$0x3] %vm3860, %v3883
        %3887 = vst.msk [vmem:[%s3885] ss:$8 sm:$0x0] %vm3860, %v3883
        %v3888 = vmul.f32 %v3783, 1.442695
        %v3889 = vpow.pop %v3888
        %v3890 = vmul.f32 %v3815, 1.442695
        %v3891 = vpow.pop %v3890
        %v3892 = vmul.f32 %v3784, 1.442695
        %v3893 = vpow.pop %v3892
        %v3894 = vmul.f32 %v3816, 1.442695
        %v3895 = vpow.pop %v3894
        %vm3900 = vcmask 1044480
        %v3901 = vrot.slane %v3889, 3
        %v3902 = vrot.slane %v3893, 3
        %v3903 = vsel %vm3900, %v3901, %v3902
        %v3904 = vrot.slane %v3891, 3
        %v3905 = vrot.slane %v3895, 3
        %v3906 = vsel %vm3900, %v3904, %v3905
        %3909 = vst [vmem:[%s313] sm:$0x38] %v3903
        %3910 = vst [vmem:[%s313 + $0x8] sm:$0x38] %v3906
        %v3911 = vand.u32 2147483647, %v3784
        %v3912 = vand.u32 2147483647, %v3816
        %v3915 = vrot.slane %v3911, 7
        %v3916 = vrot.slane %v3912, 7
        %v3919 = vmin.f32 %v3911, %v3915
        %v3920 = vmin.f32 %v3912, %v3916
        %v3921 = vmax.f32 %v3911, %v3915
        %v3922 = vmax.f32 %v3912, %v3916
        %v3923 = vmax.f32 %v3921, 1e-30
        %v3924 = vmax.f32 %v3922, 1e-30
        %v3925 = vrcp.pop %v3923
        %v3926 = vrcp.pop %v3924
        %v3927 = vmul.f32 %v3919, %v3925
        %v3928 = vmul.f32 %v3920, %v3926
        %v3929 = vmul.f32 %v3927, %v3927
        %v3930 = vmul.f32 %v3928, %v3928
        %v3931 = vmul.f32 %v3929, 0.0208351
        %v3932 = vmul.f32 %v3930, 0.0208351
        %v3933 = vsub.f32 %v3931, 0.085133
        %v3934 = vsub.f32 %v3932, 0.085133
        %v3935 = vmul.f32 %v3933, %v3929
        %v3936 = vmul.f32 %v3934, %v3930
        %v3937 = vadd.f32 %v3935, 0.180141
        %v3938 = vadd.f32 %v3936, 0.180141
        %v3939 = vmul.f32 %v3937, %v3929
        %v3940 = vmul.f32 %v3938, %v3930
        %v3941 = vsub.f32 %v3939, 0.3302995
        %v3942 = vsub.f32 %v3940, 0.3302995
        %v3943 = vmul.f32 %v3941, %v3929
        %v3944 = vmul.f32 %v3942, %v3930
        %v3945 = vadd.f32 %v3943, 0.999866
        %v3946 = vadd.f32 %v3944, 0.999866
        %v3947 = vmul.f32 %v3927, %v3945
        %v3948 = vmul.f32 %v3928, %v3946
        %v3949 = vrot.slane %v3911, 1
        %v3950 = vrot.slane %v3912, 1
        %vm3953 = vcmp.gt.f32.partialorder %v3911, %v3949
        %vm3954 = vcmp.gt.f32.partialorder %v3912, %v3950
        %v3955 = vsub.f32 1.5707964, %v3947
        %v3956 = vsub.f32 1.5707964, %v3948
        %v3959 = vrot.slane %v3955, 1
        %v3960 = vrot.slane %v3956, 1
        %v3965 = vrot.slane %v3947, 1
        %v3966 = vrot.slane %v3948, 1
        %v3969 = vsel %vm3953, %v3959, %v3965
        %v3970 = vsel %vm3954, %v3960, %v3966
        %vm3971 = vcmp.lt.f32.partialorder %v3784, 0.0
        %vm3972 = vcmp.lt.f32.partialorder %v3816, 0.0
        %v3973 = vsub.f32 3.1415927, %v3969
        %v3974 = vsub.f32 3.1415927, %v3970
        %v3977 = vrot.slane %v3973, 7
        %v3978 = vrot.slane %v3974, 7
        %v3983 = vrot.slane %v3969, 7
        %v3984 = vrot.slane %v3970, 7
        %v3987 = vsel %vm3971, %v3977, %v3983
        %v3988 = vsel %vm3972, %v3978, %v3984
        %v3989 = vsub.f32 0.0, %v3987
        %v3990 = vsub.f32 0.0, %v3988
        %v3993 = vrot.slane %v3989, 1
        %v3994 = vrot.slane %v3990, 1
        %v3999 = vrot.slane %v3987, 1
        %v4000 = vrot.slane %v3988, 1
        %v4003 = vsel %vm3971, %v3993, %v3999
        %v4004 = vsel %vm3972, %v3994, %v4000
        %4007 = vst [vmem:[#allocation1] sm:$0xff] %v4003
        %4008 = vst [vmem:[#allocation1 + $0x9] sm:$0xff] %v4004
        %s4009 = scalar_lea.vmem [#allocation1], 1
        %v4010 = vld [vmem:[%s4009] ss:$9 sm:$0xff]
        %s4012 = scalar_lea.vmem %s313, 6
        %4013 = vst.msk [vmem:[%s4012] ss:$8 sm:$0x3] %vm3860, %v4010
        %4014 = vst.msk [vmem:[%s4012] ss:$8 sm:$0x0] %vm3860, %v4010
        %v4017 = vrot.slane %v3784, 4
        %v4018 = vrot.slane %v3816, 4
        %4021 = vst [vmem:[%s313] sm:$0x80] %v4017
        %4022 = vst [vmem:[%s313 + $0x8] sm:$0x80] %v4018
        %4023 = vst [vmem:[%s313 + $0x20] sm:$0x1] %v4017
        %4024 = vst [vmem:[%s313 + $0x28] sm:$0x1] %v4018
        %v4025 = vmul.f32 %v3784, 0.8
        %v4026 = vmul.f32 %v3816, 0.8
        %v4027 = vadd.f32 %v4025, %v3844
        %v4028 = vadd.f32 %v4026, %v3845
        %4031 = vst [vmem:[#allocation1] sm:$0xff] %v4027
        %4032 = vst [vmem:[#allocation1 + $0x9] sm:$0xff] %v4028
        %s4033 = scalar_lea.vmem [#allocation1], 5
        %v4034 = vld [vmem:[%s4033] ss:$9 sm:$0xff]
        %s4036 = scalar_lea.vmem %s313, 16
        %4037 = vst.msk [vmem:[%s4036] ss:$8 sm:$0x3] %vm3860, %v4034
        %4038 = vst.msk [vmem:[%s4036] ss:$8 sm:$0x0] %vm3860, %v4034
        %4039 = vst [vmem:[#allocation1] sm:$0xff] %v3784
        %4040 = vst [vmem:[#allocation1 + $0x9] sm:$0xff] %v3816
        %s4041 = scalar_lea.vmem [#allocation1], 6
        %v4042 = vld [vmem:[%s4041] ss:$9 sm:$0xff]
        %s4044 = scalar_lea.vmem %s313, 17
        %4045 = vst.msk [vmem:[%s4044] ss:$8 sm:$0x3] %vm3860, %v4042
        %4046 = vst.msk [vmem:[%s4044] ss:$8 sm:$0x0] %vm3860, %v4042
        %v4047 = vadd.f32 %v4025, %v3872
        %v4048 = vadd.f32 %v4026, %v3873
        %4051 = vst [vmem:[#allocation1] sm:$0xff] %v4047
        %4052 = vst [vmem:[#allocation1 + $0x9] sm:$0xff] %v4048
        %s4053 = scalar_lea.vmem [#allocation1], 7
        %v4054 = vld [vmem:[%s4053] ss:$9 sm:$0xff]
        %s4056 = scalar_lea.vmem %s313, 18
        %4057 = vst.msk [vmem:[%s4056] ss:$8 sm:$0x3] %vm3860, %v4054
        %4058 = vst.msk [vmem:[%s4056] ss:$8 sm:$0x0] %vm3860, %v4054
        %v4059 = vmul.f32 %v3785, 1.442695
        %v4060 = vpow.pop %v4059
        %v4061 = vmul.f32 %v3817, 1.442695
        %v4062 = vpow.pop %v4061
        %v4065 = vrot.slane %v4060, 5
        %v4066 = vrot.slane %v4062, 5
        %4069 = vst [vmem:[%s313 + $0x10] sm:$0x38] %v4065
        %4070 = vst [vmem:[%s313 + $0x18] sm:$0x38] %v4066
        %v4071 = vand.u32 2147483647, %v3785
        %v4072 = vand.u32 2147483647, %v3817
        %v4075 = vrot.slane %v4071, 7
        %v4076 = vrot.slane %v4072, 7
        %v4079 = vmin.f32 %v4071, %v4075
        %v4080 = vmin.f32 %v4072, %v4076
        %v4081 = vmax.f32 %v4071, %v4075
        %v4082 = vmax.f32 %v4072, %v4076
        %v4083 = vmax.f32 %v4081, 1e-30
        %v4084 = vmax.f32 %v4082, 1e-30
        %v4085 = vrcp.pop %v4083
        %v4086 = vrcp.pop %v4084
        %v4087 = vmul.f32 %v4079, %v4085
        %v4088 = vmul.f32 %v4080, %v4086
        %v4089 = vmul.f32 %v4087, %v4087
        %v4090 = vmul.f32 %v4088, %v4088
        %v4091 = vmul.f32 %v4089, 0.0208351
        %v4092 = vmul.f32 %v4090, 0.0208351
        %v4093 = vsub.f32 %v4091, 0.085133
        %v4094 = vsub.f32 %v4092, 0.085133
        %v4095 = vmul.f32 %v4093, %v4089
        %v4096 = vmul.f32 %v4094, %v4090
        %v4097 = vadd.f32 %v4095, 0.180141
        %v4098 = vadd.f32 %v4096, 0.180141
        %v4099 = vmul.f32 %v4097, %v4089
        %v4100 = vmul.f32 %v4098, %v4090
        %v4101 = vsub.f32 %v4099, 0.3302995
        %v4102 = vsub.f32 %v4100, 0.3302995
        %v4103 = vmul.f32 %v4101, %v4089
        %v4104 = vmul.f32 %v4102, %v4090
        %v4105 = vadd.f32 %v4103, 0.999866
        %v4106 = vadd.f32 %v4104, 0.999866
        %v4107 = vmul.f32 %v4087, %v4105
        %v4108 = vmul.f32 %v4088, %v4106
        %v4109 = vrot.slane %v4071, 1
        %v4110 = vrot.slane %v4072, 1
        %vm4113 = vcmp.gt.f32.partialorder %v4071, %v4109
        %vm4114 = vcmp.gt.f32.partialorder %v4072, %v4110
        %v4115 = vsub.f32 1.5707964, %v4107
        %v4116 = vsub.f32 1.5707964, %v4108
        %v4119 = vrot.slane %v4115, 1
        %v4120 = vrot.slane %v4116, 1
        %v4125 = vrot.slane %v4107, 1
        %v4126 = vrot.slane %v4108, 1
        %v4129 = vsel %vm4113, %v4119, %v4125
        %v4130 = vsel %vm4114, %v4120, %v4126
        %vm4131 = vcmp.lt.f32.partialorder %v3785, 0.0
        %vm4132 = vcmp.lt.f32.partialorder %v3817, 0.0
        %v4133 = vsub.f32 3.1415927, %v4129
        %v4134 = vsub.f32 3.1415927, %v4130
        %v4137 = vrot.slane %v4133, 7
        %v4138 = vrot.slane %v4134, 7
        %v4143 = vrot.slane %v4129, 7
        %v4144 = vrot.slane %v4130, 7
        %v4147 = vsel %vm4131, %v4137, %v4143
        %v4148 = vsel %vm4132, %v4138, %v4144
        %v4149 = vsub.f32 0.0, %v4147
        %v4150 = vsub.f32 0.0, %v4148
        %v4153 = vrot.slane %v4149, 1
        %v4154 = vrot.slane %v4150, 1
        %v4159 = vrot.slane %v4147, 1
        %v4160 = vrot.slane %v4148, 1
        %v4163 = vsel %vm4131, %v4153, %v4159
        %v4164 = vsel %vm4132, %v4154, %v4160
        %4167 = vst [vmem:[#allocation1] sm:$0xff] %v4163
        %4168 = vst [vmem:[#allocation1 + $0x9] sm:$0xff] %v4164
        %s4169 = scalar_lea.vmem [#allocation1], 3
        %v4170 = vld [vmem:[%s4169] ss:$9 sm:$0xff]
        %s4172 = scalar_lea.vmem %s313, 22
        %4173 = vst.msk [vmem:[%s4172] ss:$8 sm:$0x3] %vm3860, %v4170
        %4174 = vst.msk [vmem:[%s4172] ss:$8 sm:$0x0] %vm3860, %v4170
        %v4177 = vrot.slane %v3785, 6
        %v4178 = vrot.slane %v3817, 6
        %4181 = vst [vmem:[%s313 + $0x10] sm:$0x80] %v4177
        %4182 = vst [vmem:[%s313 + $0x18] sm:$0x80] %v4178
        %4183 = vst [vmem:[%s313 + $0x30] sm:$0x1] %v4177
        %4184 = vst [vmem:[%s313 + $0x38] sm:$0x1] %v4178
        %p4185 = scmp.lt.s32.totalorder %s22, 1
        %s4186 = scalar_select %p4185, %s22, 1
        %s4187 = smul.addr %s4186, 2
        %s4188 = smul.addr %s4187, 4
        %s4189 = scalar_lea.vmem %s6, %s4188
        %p4190 = scmp.lt.s32.totalorder %s22, 1
        %s4191 = scalar_select %p4190, %s22, 1
        %s4192 = smul.addr %s4191, 8
        %s4193 = smul.addr %s4192, 8
        %s4194 = scalar_lea.vmem %s7, %s4193
        // Predicated region
        $region49: #{tpu_custom_call.1} parent=43 // pred_check
          %p4195 = pneg %p171
        $region50: #{tpu_custom_call.1} parent=43 // pred_check_branch
          %4197 = sbr.rel (%p4195) target = $region52
        $region51: #{tpu_custom_call.1} parent=43 // pred_region
          _
        $region52: #{tpu_custom_call.1} parent=43 // pred_fallthru
          _
        // Predicated region
        $region53: #{tpu_custom_call.1} parent=43 // pred_check
          %p4198 = pneg %p197
        $region54: #{tpu_custom_call.1} parent=43 // pred_check_branch
          %4200 = sbr.rel (%p4198) target = $region56
        $region55: #{tpu_custom_call.1} parent=43 // pred_region
          _
        $region56: #{tpu_custom_call.1} parent=43 // pred_fallthru
          _
      $region44: #{tpu_custom_call.1} parent=5 // pred_fallthru
        _
      %p4201 = scmp.le.s32.totalorder 2, %s17
      // Predicated region
      $region57: #{tpu_custom_call.1} parent=5 // pred_check
        %p4202 = pneg %p4201
      $region58: #{tpu_custom_call.1} parent=5 // pred_check_branch
        %4204 = sbr.rel (%p4202) target = $region60
      $region59: #{tpu_custom_call.1} parent=5 // pred_region
        %s4205 = ssub.s32 %s17, 2
        // Predicated region
        $region61: #{tpu_custom_call.1} parent=59 // pred_check
          %p4206 = pneg %p177
        $region62: #{tpu_custom_call.1} parent=59 // pred_check_branch
          %4208 = sbr.rel (%p4206) target = $region64
        $region63: #{tpu_custom_call.1} parent=59 // pred_region
          %p4209 = scmp.lt.s32.totalorder %s23, 1
          %s4210 = scalar_select %p4209, %s23, 1
          %s4211 = smul.addr %s4210, 2
          %s4212 = smul.addr %s4211, 4
          %s4213 = scalar_lea.vmem %s6, %s4212
        $region64: #{tpu_custom_call.1} parent=59 // pred_fallthru
          _
        // Predicated region
        $region65: #{tpu_custom_call.1} parent=59 // pred_check
          %p4214 = pneg %p203
        $region66: #{tpu_custom_call.1} parent=59 // pred_check_branch
          %4216 = sbr.rel (%p4214) target = $region68
        $region67: #{tpu_custom_call.1} parent=59 // pred_region
          %p4217 = scmp.lt.s32.totalorder %s23, 1
          %s4218 = scalar_select %p4217, %s23, 1
          %s4219 = smul.addr %s4218, 8
          %s4220 = smul.addr %s4219, 8
          %s4221 = scalar_lea.vmem %s7, %s4220
        $region68: #{tpu_custom_call.1} parent=59 // pred_fallthru
          _
      $region60: #{tpu_custom_call.1} parent=5 // pred_fallthru
        _
    $region6: #{tpu_custom_call.1} parent=1 // loop_footer
      %s21 = sadd.s32 1, %s17
    $region7: #{tpu_custom_call.1} parent=1 // loop_footer_branch
      %16 = sbr.rel target = $region3
    $region8: #{tpu_custom_call.1} parent=1 // loop_exit
      _
    %4222 = vsyncpa [#allocation5], 1
    %s4223 = scalar_lea.sflag [#allocation5], 1
    %4224 = vsyncpa %s4223, 1

</llo_original>
